<compile_context>
chip_gen: v6e
topology: v6e:2x2x1
jax: 0.10.0
libtpu: 0.0.40
codegen_flags: <defaults>
</compile_context>

<pallas_src>
import functools
import math

import jax
import jax.numpy as jnp
from jax.experimental import pallas as pl
from jax.experimental.pallas import tpu as pltpu


def cross_attn_kernel(
    tgt_ref, qpos_ref, mem_ref, pos_ref,
    wq_ref, wk_ref, wv_ref, wo_ref,
    bq_ref, bk_ref, bv_ref, bo_ref,
    ln_g_ref, ln_b_ref,
    o_ref,
    q_sc, m_sc, l_sc, acc_sc,
    *, nhead: int, compute_dtype, approx_recip: bool, eps: float = 1e-5,
):
    s_idx = pl.program_id(1)
    n_s = pl.num_programs(1)

    L, E = q_sc.shape
    hd = E // nhead

    # ---- per-batch init (first S tile): project Q once, reset online-softmax
    # state.  1/sqrt(hd) is folded into Wq / bq in the wrapper.
    @pl.when(s_idx == 0)
    def _init():
        q_in = (tgt_ref[0].astype(jnp.float32)
                + qpos_ref[0].astype(jnp.float32)).astype(compute_dtype)
        q = (jnp.dot(q_in, wq_ref[...], preferred_element_type=jnp.float32)
             + bq_ref[...])
        q_sc[...] = q.astype(compute_dtype)
        m_sc[...] = jnp.full(m_sc.shape, -jnp.inf, jnp.float32)
        l_sc[...] = jnp.zeros(l_sc.shape, jnp.float32)
        acc_sc[...] = jnp.zeros(acc_sc.shape, jnp.float32)

    # ---- current S tile: K / V projections (compute_dtype MXU operands, f32
    # accumulation).  memory/pos arrive already in compute_dtype (cast in the
    # wrapper), so the mem+pos add runs at DMA width (bf16 on the fast path).
    mem = mem_ref[0]                              # (S_t, E) compute_dtype
    k_in = mem + pos_ref[0]                       # (S_t, E) compute_dtype
    k = (jnp.dot(k_in, wk_ref[...], preferred_element_type=jnp.float32)
         + bk_ref[...]).astype(compute_dtype)     # (S_t, E)
    v = (jnp.dot(mem, wv_ref[...], preferred_element_type=jnp.float32)
         + bv_ref[...]).astype(compute_dtype)     # (S_t, E)

    q = q_sc[...]                                 # (L, E) compute_dtype

    # ---- per-head online-softmax update (static, unrolled head loop).
    for h in range(nhead):
        lo, hi = h * hd, (h + 1) * hd
        qh = q[:, lo:hi]                          # (L, hd)
        kh = k[:, lo:hi]                          # (S_t, hd)
        vh = v[:, lo:hi]                          # (S_t, hd)

        # (L,hd) . (S_t,hd)^T contraction: keeps S_t on the lane axis, and the
        # transpose stays inside the MXU weight push (same contraction pattern
        # as the flash-attention reference kernel; no explicit XLU transpose).
        s = jax.lax.dot_general(qh, kh, (((1,), (1,)), ((), ())),
                                preferred_element_type=jnp.float32)   # (L, S_t)

        m_prev = m_sc[h]                                              # (L, 1)
        m_new = jnp.maximum(m_prev, jnp.max(s, axis=-1, keepdims=True))
        alpha = jnp.exp(m_prev - m_new)                               # (L, 1)
        p = jnp.exp(s - m_new)                                        # (L, S_t)
        l_sc[h] = alpha * l_sc[h] + jnp.sum(p, axis=-1, keepdims=True)
        pv = jnp.dot(p.astype(compute_dtype), vh,
                     preferred_element_type=jnp.float32)              # (L, hd)
        acc_sc[:, lo:hi] = alpha * acc_sc[:, lo:hi] + pv
        m_sc[h] = m_new

    # ---- finalize on the last S tile: normalize per head, single gathered
    # output projection, residual + LayerNorm (all f32 VPU/EUP math).
    @pl.when(s_idx == n_s - 1)
    def _finalize():
        inv_l = pl.reciprocal(l_sc[...], approx=approx_recip)         # (H, L, 1)
        for h in range(nhead):
            lo, hi = h * hd, (h + 1) * hd
            acc_sc[:, lo:hi] = acc_sc[:, lo:hi] * inv_l[h]
        o_cat = acc_sc[...].astype(compute_dtype)                     # (L, E)
        tgt2 = (jnp.dot(o_cat, wo_ref[...], preferred_element_type=jnp.float32)
                + bo_ref[...])                                        # (L, E)

        x = tgt_ref[0].astype(jnp.float32) + tgt2                     # f32 residual
        mean = jnp.mean(x, axis=-1, keepdims=True)
        xc = x - mean
        var = jnp.mean(xc * xc, axis=-1, keepdims=True)
        inv_std = jax.lax.rsqrt(var + eps)
        y = xc * inv_std * ln_g_ref[...] + ln_b_ref[...]
        o_ref[0] = y.astype(o_ref.dtype)


def _pick_s_tile(S: int, max_tile: int = 512) -> int:
    """Largest multiple-of-8 divisor of S that is <= max_tile (else S itself)."""
    if S <= max_tile:
        return S
    t = (max_tile // 8) * 8
    while t >= 8:
        if S % t == 0:
            return t
        t -= 8
    return S   # TODO(synk): mask a ragged tail tile instead of untiled fallback


def cross_attention_layer(tgt, memory, query_pos, pos, params, *, nhead,
                          compute_dtype=jnp.bfloat16, s_tile=None):
    """tgt:(B,L,E) memory:(B,S,E) query_pos:(B,L,E) pos:(B,S,E) -> (B,L,E)."""
    B, L, E = tgt.shape
    S = memory.shape[1]
    assert E % nhead == 0
    hd = E // nhead
    scale = 1.0 / math.sqrt(hd)

    if s_tile is None:
        s_tile = _pick_s_tile(S)
    assert S % s_tile == 0, "s_tile must divide the memory length"
    n_s = S // s_tile

    # Pre-transpose projection weights so the kernel does x @ W; fold the
    # attention scale into Wq / bq; cast MXU operands to compute_dtype.
    wq_t = (params['wq'].T * scale).astype(compute_dtype)
    wk_t = params['wk'].T.astype(compute_dtype)
    wv_t = params['wv'].T.astype(compute_dtype)
    wo_t = params['wo'].T.astype(compute_dtype)
    bq = (params['bq'] * scale).reshape(1, E).astype(jnp.float32)
    bk = params['bk'].reshape(1, E).astype(jnp.float32)
    bv = params['bv'].reshape(1, E).astype(jnp.float32)
    bo = params['bo'].reshape(1, E).astype(jnp.float32)
    ln_g = params['ln_gamma'].reshape(1, E).astype(jnp.float32)
    ln_b = params['ln_beta'].reshape(1, E).astype(jnp.float32)

    # memory/pos dominate HBM traffic (O(S*E) per batch element): DMA them in
    # compute_dtype (bf16 on the fast path) to halve bytes + VMEM footprint.
    # tgt/query_pos stay f32 (tiny; residual + LayerNorm use f32 tgt).
    mem_c = memory.astype(compute_dtype)
    pos_c = pos.astype(compute_dtype)
    tgt_f32 = tgt.astype(jnp.float32)
    qpos_f32 = query_pos.astype(jnp.float32)

    kernel = functools.partial(
        cross_attn_kernel,
        nhead=nhead,
        compute_dtype=compute_dtype,
        approx_recip=(compute_dtype != jnp.float32),
    )

    seq_q_spec = pl.BlockSpec((1, L, E), lambda b, s: (b, 0, 0))       # revisited
    kv_spec = pl.BlockSpec((1, s_tile, E), lambda b, s: (b, s, 0))     # streamed
    out_spec = pl.BlockSpec((1, L, E), lambda b, s: (b, 0, 0))         # accumulator

    scratch = [
        pltpu.VMEM((L, E), compute_dtype),         # q_sc: projected queries
        pltpu.VMEM((nhead, L, 1), jnp.float32),    # m_sc: running row max
        pltpu.VMEM((nhead, L, 1), jnp.float32),    # l_sc: running softmax denom
        pltpu.VMEM((L, E), jnp.float32),           # acc_sc: unnormalized P@V
    ]

    # Rough VMEM budget: double-buffered K/V/pos tiles + revisited seq blocks +
    # constants + scratch, with 4x headroom, clamped under v7x's 64 MiB physical
    # (and above v5e's 16 MiB / v6e's 32 MiB scoped defaults).
    cds = jnp.dtype(compute_dtype).itemsize
    est = (2 * 2 * s_tile * E * cds            # memory + pos tiles, 2 buffers
           + 2 * 2 * L * E * 4                 # tgt + qpos blocks
           + 2 * L * E * 4                     # output block
           + 4 * E * E * cds + 6 * E * 4       # weights / biases / LN params
           + L * E * cds + L * E * 4 + 2 * nhead * L * 128 * 4)   # scratch
    vmem_limit = int(min(max(4 * est, 16 << 20), 48 << 20))

    def build_call(single_buffer_consts: bool):
        if single_buffer_consts:
            # Constant-index blocks are revisited every grid step; the second
            # pipeline buffer is dead weight -> single-buffer them (frees VMEM
            # headroom, which matters most on v7x's 64 MiB).
            mat_spec = pl.BlockSpec((E, E), lambda b, s: (0, 0),
                                    pipeline_mode=pl.Buffered(1))
            vec_spec = pl.BlockSpec((1, E), lambda b, s: (0, 0),
                                    pipeline_mode=pl.Buffered(1))
        else:
            mat_spec = pl.BlockSpec((E, E), lambda b, s: (0, 0))
            vec_spec = pl.BlockSpec((1, E), lambda b, s: (0, 0))
        return pl.pallas_call(
            kernel,
            out_shape=jax.ShapeDtypeStruct((B, L, E), tgt.dtype),
            grid_spec=pltpu.PrefetchScalarGridSpec(
                num_scalar_prefetch=0,
                grid=(B, n_s),
                in_specs=[
                    seq_q_spec, seq_q_spec, kv_spec, kv_spec,
                    mat_spec, mat_spec, mat_spec, mat_spec,
                    vec_spec, vec_spec, vec_spec, vec_spec,
                    vec_spec, vec_spec,
                ],
                out_specs=out_spec,
                scratch_shapes=scratch,
            ),
            compiler_params=pltpu.CompilerParams(
                # S axis carries the online-softmax accumulator -> "arbitrary";
                # batch axis is independent -> "parallel" (megacore sharding).
                dimension_semantics=("parallel", "arbitrary"),
                vmem_limit_bytes=vmem_limit,
            ),
        )

    args = (tgt_f32, qpos_f32, mem_c, pos_c,
            wq_t, wk_t, wv_t, wo_t,
            bq, bk, bv, bo,
            ln_g, ln_b)
    try:
        return build_call(True)(*args)
    except Exception:
        # Graceful fallback to default double-buffering if this JAX build's
        # top-level Mosaic pipeline rejects single-buffered constant specs.
        return build_call(False)(*args)


def reference_cross_attention(tgt, memory, query_pos, pos, params, *, nhead):
    """Pure-JAX reference mirroring nn.MultiheadAttention + residual + LayerNorm."""
    B, L, E = tgt.shape
    S = memory.shape[1]
    hd = E // nhead
    scale = 1.0 / (hd ** 0.5)

    q_in = tgt + query_pos
    k_in = memory + pos
    v_in = memory

    q = jnp.einsum('ble,fe->blf', q_in, params['wq']) + params['bq']
    k = jnp.einsum('bse,fe->bsf', k_in, params['wk']) + params['bk']
    v = jnp.einsum('bse,fe->bsf', v_in, params['wv']) + params['bv']

    qh = q.reshape(B, L, nhead, hd)
    kh = k.reshape(B, S, nhead, hd)
    vh = v.reshape(B, S, nhead, hd)

    s = jnp.einsum('blhd,bshd->bhls', qh, kh) * scale
    p = jax.nn.softmax(s, axis=-1)
    o = jnp.einsum('bhls,bshd->blhd', p, vh).reshape(B, L, E)

    tgt2 = jnp.einsum('ble,fe->blf', o, params['wo']) + params['bo']

    x = tgt + tgt2
    mean = jnp.mean(x, axis=-1, keepdims=True)
    var = jnp.mean((x - mean) ** 2, axis=-1, keepdims=True)
    return (x - mean) / jnp.sqrt(var + 1e-5) * params['ln_gamma'] + params['ln_beta']


def _xavier_uniform(key, shape):
    fan_out, fan_in = shape
    limit = (6.0 / (fan_in + fan_out)) ** 0.5
    return jax.random.uniform(key, shape, jnp.float32, -limit, limit)


if __name__ == "__main__":
    # Small, module-consistent shapes; S chosen so the S-tiled online-softmax
    # path is exercised with multiple tiles (S=64, s_tile=16 -> 4 steps).
    B, L, S = 2, 8, 64      # batch, num queries, memory length
    E, H = 32, 4            # d_model, nhead

    key = jax.random.PRNGKey(0)
    keys = jax.random.split(key, 6)

    tgt = jax.random.normal(keys[0], (B, L, E), jnp.float32)
    memory = jax.random.normal(keys[1], (B, S, E), jnp.float32)
    query_pos = jax.random.normal(keys[2], (B, L, E), jnp.float32)
    pos = jax.random.normal(keys[3], (B, S, E), jnp.float32)

    # Deterministic parameter init (xavier_uniform for weight matrices, zeros
    # for biases, ones/zeros for LayerNorm — matching nn defaults).
    in_proj_w = _xavier_uniform(keys[4], (3 * E, E))   # in_proj_weight
    params = {
        'wq': in_proj_w[:E],
        'wk': in_proj_w[E:2 * E],
        'wv': in_proj_w[2 * E:],
        'wo': _xavier_uniform(keys[5], (E, E)),        # out_proj.weight
        'bq': jnp.zeros((E,), jnp.float32),
        'bk': jnp.zeros((E,), jnp.float32),
        'bv': jnp.zeros((E,), jnp.float32),
        'bo': jnp.zeros((E,), jnp.float32),
        'ln_gamma': jnp.ones((E,), jnp.float32),
        'ln_beta': jnp.zeros((E,), jnp.float32),
    }

    ref = reference_cross_attention(tgt, memory, query_pos, pos, params, nhead=H)

    # Strict f32 path, S tiled: 4 online-softmax steps per batch element.
    out_f32 = cross_attention_layer(tgt, memory, query_pos, pos, params,
                                    nhead=H, compute_dtype=jnp.float32, s_tile=16)
    out_f32 = jax.block_until_ready(out_f32)
    assert out_f32.shape == (B, L, E)
    assert jnp.allclose(out_f32, ref, atol=1e-4, rtol=1e-4), "f32 tiled mismatch"

    # Strict f32 path, single S tile (init + finalize in the same grid step).
    out_f32_1 = cross_attention_layer(tgt, memory, query_pos, pos, params,
                                      nhead=H, compute_dtype=jnp.float32)
    out_f32_1 = jax.block_until_ready(out_f32_1)
    assert jnp.allclose(out_f32_1, ref, atol=1e-4, rtol=1e-4), "f32 untiled mismatch"

    # Fast path: bf16 DMA of memory/pos, bf16 MXU operands, f32 accumulation,
    # approx EUP reciprocal.  Compare against a reference fed the same
    # bf16-rounded memory/pos so only in-kernel bf16 effects remain.
    ref_bf16_in = reference_cross_attention(
        tgt, memory.astype(jnp.bfloat16).astype(jnp.float32), query_pos,
        pos.astype(jnp.bfloat16).astype(jnp.float32), params, nhead=H)
    out_bf16 = cross_attention_layer(tgt, memory, query_pos, pos, params,
                                     nhead=H, compute_dtype=jnp.bfloat16, s_tile=16)
    out_bf16 = jax.block_until_ready(out_bf16)
    assert out_bf16.shape == (B, L, E)
    assert jnp.allclose(out_bf16, ref_bf16_in, atol=5e-2, rtol=5e-2), "bf16 mismatch"

    print("KERNEL_OK")
</pallas_src>

<mosaic_0001>
module attributes {stable_mosaic.version = 11 : i64} {
  func.func @cross_attn_kernel(%arg0: i32, %arg1: i32, %arg2: memref<1x8x32xf32, #tpu.memory_space<vmem>>, %arg3: memref<1x8x32xf32, #tpu.memory_space<vmem>>, %arg4: memref<1x16x32xf32, #tpu.memory_space<vmem>>, %arg5: memref<1x16x32xf32, #tpu.memory_space<vmem>>, %arg6: memref<32x32xf32, #tpu.memory_space<vmem>>, %arg7: memref<32x32xf32, #tpu.memory_space<vmem>>, %arg8: memref<32x32xf32, #tpu.memory_space<vmem>>, %arg9: memref<32x32xf32, #tpu.memory_space<vmem>>, %arg10: memref<1x32xf32, #tpu.memory_space<vmem>>, %arg11: memref<1x32xf32, #tpu.memory_space<vmem>>, %arg12: memref<1x32xf32, #tpu.memory_space<vmem>>, %arg13: memref<1x32xf32, #tpu.memory_space<vmem>>, %arg14: memref<1x32xf32, #tpu.memory_space<vmem>>, %arg15: memref<1x32xf32, #tpu.memory_space<vmem>>, %arg16: memref<1x8x32xf32, #tpu.memory_space<vmem>>, %arg17: memref<8x32xf32, #tpu.memory_space<vmem>>, %arg18: memref<4x8x1xf32, #tpu.memory_space<vmem>>, %arg19: memref<4x8x1xf32, #tpu.memory_space<vmem>>, %arg20: memref<8x32xf32, #tpu.memory_space<vmem>>) attributes {dimension_semantics = [#tpu.dimension_semantics<parallel>, #tpu.dimension_semantics<arbitrary>], iteration_bounds = array<i64: 2, 4>, scalar_prefetch = 0 : i64, scratch_operands = 4 : i64, tpu.core_type = #tpu.core_type<tc>, window_params = [{transform_indices = @transform_0, window_bounds = array<i64: 1, 8, 32>}, {transform_indices = @transform_1, window_bounds = array<i64: 1, 8, 32>}, {transform_indices = @transform_2, window_bounds = array<i64: 1, 16, 32>}, {transform_indices = @transform_3, window_bounds = array<i64: 1, 16, 32>}, {pipeline_mode = #tpu.pipeline_mode<synchronous>, transform_indices = @transform_4, window_bounds = array<i64: 32, 32>}, {pipeline_mode = #tpu.pipeline_mode<synchronous>, transform_indices = @transform_5, window_bounds = array<i64: 32, 32>}, {pipeline_mode = #tpu.pipeline_mode<synchronous>, transform_indices = @transform_6, window_bounds = array<i64: 32, 32>}, {pipeline_mode = #tpu.pipeline_mode<synchronous>, transform_indices = @transform_7, window_bounds = array<i64: 32, 32>}, {pipeline_mode = #tpu.pipeline_mode<synchronous>, transform_indices = @transform_8, window_bounds = array<i64: 1, 32>}, {pipeline_mode = #tpu.pipeline_mode<synchronous>, transform_indices = @transform_9, window_bounds = array<i64: 1, 32>}, {pipeline_mode = #tpu.pipeline_mode<synchronous>, transform_indices = @transform_10, window_bounds = array<i64: 1, 32>}, {pipeline_mode = #tpu.pipeline_mode<synchronous>, transform_indices = @transform_11, window_bounds = array<i64: 1, 32>}, {pipeline_mode = #tpu.pipeline_mode<synchronous>, transform_indices = @transform_12, window_bounds = array<i64: 1, 32>}, {pipeline_mode = #tpu.pipeline_mode<synchronous>, transform_indices = @transform_13, window_bounds = array<i64: 1, 32>}, {transform_indices = @transform_14, window_bounds = array<i64: 1, 8, 32>}]} {
    %c0_i32 = arith.constant 0 : i32
    %0 = arith.cmpi eq, %arg1, %c0_i32 : i32
    %1 = arith.extui %0 : i1 to i32
    %c0_i32_0 = arith.constant 0 : i32
    %2 = arith.cmpi ne, %1, %c0_i32_0 : i32
    scf.if %2 {
      %c0_92 = arith.constant 0 : index
      %c0_93 = arith.constant 0 : index
      %c0_94 = arith.constant 0 : index
      %150 = vector.load %arg2[%c0_92, %c0_93, %c0_94] : memref<1x8x32xf32, #tpu.memory_space<vmem>>, vector<1x8x32xf32>
      %151 = vector.shape_cast %150 : vector<1x8x32xf32> to vector<8x32xf32>
      %c0_95 = arith.constant 0 : index
      %c0_96 = arith.constant 0 : index
      %c0_97 = arith.constant 0 : index
      %152 = vector.load %arg3[%c0_95, %c0_96, %c0_97] : memref<1x8x32xf32, #tpu.memory_space<vmem>>, vector<1x8x32xf32>
      %153 = vector.shape_cast %152 : vector<1x8x32xf32> to vector<8x32xf32>
      %154 = arith.addf %151, %153 : vector<8x32xf32>
      %c0_98 = arith.constant 0 : index
      %c0_99 = arith.constant 0 : index
      %155 = vector.load %arg6[%c0_98, %c0_99] : memref<32x32xf32, #tpu.memory_space<vmem>>, vector<32x32xf32>
      %cst_100 = arith.constant dense<0.000000e+00> : vector<8x32xf32>
      %156 = tpu.matmul %154, %155, %cst_100 {dimension_numbers = #tpu.dot_dimension_numbers<[1], [0], [0], [1], [0, 0, 1, 1], [], []>} : vector<8x32xf32>, vector<32x32xf32>, vector<8x32xf32> -> vector<8x32xf32>
      %c0_101 = arith.constant 0 : index
      %c0_102 = arith.constant 0 : index
      %157 = vector.load %arg10[%c0_101, %c0_102] : memref<1x32xf32, #tpu.memory_space<vmem>>, vector<1x32xf32>
      %158 = vector.broadcast %157 : vector<1x32xf32> to vector<8x32xf32>
      %159 = arith.addf %156, %158 : vector<8x32xf32>
      %c0_103 = arith.constant 0 : index
      %c0_104 = arith.constant 0 : index
      %160 = vector.load %arg17[%c0_103, %c0_104] : memref<8x32xf32, #tpu.memory_space<vmem>>, vector<8x32xf32>
      tpu.vector_store %arg17[%c0_103, %c0_104], %159 {strides = array<i32>} : memref<8x32xf32, #tpu.memory_space<vmem>>, vector<8x32xf32>,
      %cst_105 = arith.constant 0xFF800000 : f32
      %161 = vector.broadcast %cst_105 : f32 to vector<4x8x1xf32>
      %c0_106 = arith.constant 0 : index
      %c0_107 = arith.constant 0 : index
      %c0_108 = arith.constant 0 : index
      %162 = vector.load %arg18[%c0_106, %c0_107, %c0_108] : memref<4x8x1xf32, #tpu.memory_space<vmem>>, vector<4x8x1xf32>
      tpu.vector_store %arg18[%c0_106, %c0_107, %c0_108], %161 {strides = array<i32>} : memref<4x8x1xf32, #tpu.memory_space<vmem>>, vector<4x8x1xf32>,
      %cst_109 = arith.constant 0.000000e+00 : f32
      %163 = vector.broadcast %cst_109 : f32 to vector<4x8x1xf32>
      %c0_110 = arith.constant 0 : index
      %c0_111 = arith.constant 0 : index
      %c0_112 = arith.constant 0 : index
      %164 = vector.load %arg19[%c0_110, %c0_111, %c0_112] : memref<4x8x1xf32, #tpu.memory_space<vmem>>, vector<4x8x1xf32>
      tpu.vector_store %arg19[%c0_110, %c0_111, %c0_112], %163 {strides = array<i32>} : memref<4x8x1xf32, #tpu.memory_space<vmem>>, vector<4x8x1xf32>,
      %cst_113 = arith.constant 0.000000e+00 : f32
      %165 = vector.broadcast %cst_113 : f32 to vector<8x32xf32>
      %c0_114 = arith.constant 0 : index
      %c0_115 = arith.constant 0 : index
      %166 = vector.load %arg20[%c0_114, %c0_115] : memref<8x32xf32, #tpu.memory_space<vmem>>, vector<8x32xf32>
      tpu.vector_store %arg20[%c0_114, %c0_115], %165 {strides = array<i32>} : memref<8x32xf32, #tpu.memory_space<vmem>>, vector<8x32xf32>,
    } else {
    }
    %c0 = arith.constant 0 : index
    %c0_1 = arith.constant 0 : index
    %c0_2 = arith.constant 0 : index
    %3 = vector.load %arg4[%c0, %c0_1, %c0_2] : memref<1x16x32xf32, #tpu.memory_space<vmem>>, vector<1x16x32xf32>
    %4 = vector.shape_cast %3 : vector<1x16x32xf32> to vector<16x32xf32>
    %c0_3 = arith.constant 0 : index
    %c0_4 = arith.constant 0 : index
    %c0_5 = arith.constant 0 : index
    %5 = vector.load %arg5[%c0_3, %c0_4, %c0_5] : memref<1x16x32xf32, #tpu.memory_space<vmem>>, vector<1x16x32xf32>
    %6 = vector.shape_cast %5 : vector<1x16x32xf32> to vector<16x32xf32>
    %7 = arith.addf %4, %6 : vector<16x32xf32>
    %c0_6 = arith.constant 0 : index
    %c0_7 = arith.constant 0 : index
    %8 = vector.load %arg7[%c0_6, %c0_7] : memref<32x32xf32, #tpu.memory_space<vmem>>, vector<32x32xf32>
    %cst = arith.constant dense<0.000000e+00> : vector<16x32xf32>
    %9 = tpu.matmul %7, %8, %cst {dimension_numbers = #tpu.dot_dimension_numbers<[1], [0], [0], [1], [0, 0, 1, 1], [], []>} : vector<16x32xf32>, vector<32x32xf32>, vector<16x32xf32> -> vector<16x32xf32>
    %c0_8 = arith.constant 0 : index
    %c0_9 = arith.constant 0 : index
    %10 = vector.load %arg11[%c0_8, %c0_9] : memref<1x32xf32, #tpu.memory_space<vmem>>, vector<1x32xf32>
    %11 = vector.broadcast %10 : vector<1x32xf32> to vector<16x32xf32>
    %12 = arith.addf %9, %11 : vector<16x32xf32>
    %c0_10 = arith.constant 0 : index
    %c0_11 = arith.constant 0 : index
    %13 = vector.load %arg8[%c0_10, %c0_11] : memref<32x32xf32, #tpu.memory_space<vmem>>, vector<32x32xf32>
    %cst_12 = arith.constant dense<0.000000e+00> : vector<16x32xf32>
    %14 = tpu.matmul %4, %13, %cst_12 {dimension_numbers = #tpu.dot_dimension_numbers<[1], [0], [0], [1], [0, 0, 1, 1], [], []>} : vector<16x32xf32>, vector<32x32xf32>, vector<16x32xf32> -> vector<16x32xf32>
    %c0_13 = arith.constant 0 : index
    %c0_14 = arith.constant 0 : index
    %15 = vector.load %arg12[%c0_13, %c0_14] : memref<1x32xf32, #tpu.memory_space<vmem>>, vector<1x32xf32>
    %16 = vector.broadcast %15 : vector<1x32xf32> to vector<16x32xf32>
    %17 = arith.addf %14, %16 : vector<16x32xf32>
    %c0_15 = arith.constant 0 : index
    %c0_16 = arith.constant 0 : index
    %18 = vector.load %arg17[%c0_15, %c0_16] : memref<8x32xf32, #tpu.memory_space<vmem>>, vector<8x32xf32>
    %19 = vector.extract_strided_slice %18 {offsets = [0, 0], sizes = [8, 8], strides = [1, 1]} : vector<8x32xf32> to vector<8x8xf32>
    %20 = vector.extract_strided_slice %12 {offsets = [0, 0], sizes = [16, 8], strides = [1, 1]} : vector<16x32xf32> to vector<16x8xf32>
    %21 = vector.extract_strided_slice %17 {offsets = [0, 0], sizes = [16, 8], strides = [1, 1]} : vector<16x32xf32> to vector<16x8xf32>
    %cst_17 = arith.constant dense<0.000000e+00> : vector<8x16xf32>
    %22 = tpu.matmul %19, %20, %cst_17 {dimension_numbers = #tpu.dot_dimension_numbers<[1], [1], [0], [0], [0, 0, 1, 0], [], []>} : vector<8x8xf32>, vector<16x8xf32>, vector<8x16xf32> -> vector<8x16xf32>
    %c0_18 = arith.constant 0 : index
    %c0_19 = arith.constant 0 : index
    %c0_20 = arith.constant 0 : index
    %23 = vector.load %arg18[%c0_18, %c0_19, %c0_20] : memref<4x8x1xf32, #tpu.memory_space<vmem>>, vector<1x8x1xf32>
    %24 = vector.shape_cast %23 : vector<1x8x1xf32> to vector<8x1xf32>
    %cst_21 = arith.constant dense<0xFF800000> : vector<8xf32>
    %25 = vector.multi_reduction <maximumf>, %22, %cst_21 [1] : vector<8x16xf32> to vector<8xf32>
    %26 = vector.shape_cast %25 : vector<8xf32> to vector<8x1xf32>
    %27 = arith.maximumf %24, %26 : vector<8x1xf32>
    %28 = arith.subf %24, %27 : vector<8x1xf32>
    %29 = math.exp %28 : vector<8x1xf32>
    %30 = vector.broadcast %27 : vector<8x1xf32> to vector<8x16xf32>
    %31 = arith.subf %22, %30 : vector<8x16xf32>
    %32 = math.exp %31 : vector<8x16xf32>
    %c0_22 = arith.constant 0 : index
    %c0_23 = arith.constant 0 : index
    %c0_24 = arith.constant 0 : index
    %33 = vector.load %arg19[%c0_22, %c0_23, %c0_24] : memref<4x8x1xf32, #tpu.memory_space<vmem>>, vector<1x8x1xf32>
    %34 = vector.shape_cast %33 : vector<1x8x1xf32> to vector<8x1xf32>
    %35 = arith.mulf %29, %34 : vector<8x1xf32>
    %cst_25 = arith.constant dense<0.000000e+00> : vector<8xf32>
    %36 = vector.multi_reduction <add>, %32, %cst_25 [1] : vector<8x16xf32> to vector<8xf32>
    %37 = vector.shape_cast %36 : vector<8xf32> to vector<8x1xf32>
    %38 = arith.addf %35, %37 : vector<8x1xf32>
    %c0_26 = arith.constant 0 : index
    %c0_27 = arith.constant 0 : index
    %c0_28 = arith.constant 0 : index
    %39 = vector.load %arg19[%c0_26, %c0_27, %c0_28] : memref<4x8x1xf32, #tpu.memory_space<vmem>>, vector<1x8x1xf32>
    %40 = vector.shape_cast %39 : vector<1x8x1xf32> to vector<8x1xf32>
    %41 = vector.shape_cast %38 : vector<8x1xf32> to vector<1x8x1xf32>
    tpu.vector_store %arg19[%c0_26, %c0_27, %c0_28], %41 {strides = array<i32>} : memref<4x8x1xf32, #tpu.memory_space<vmem>>, vector<1x8x1xf32>,
    %cst_29 = arith.constant dense<0.000000e+00> : vector<8x8xf32>
    %42 = tpu.matmul %32, %21, %cst_29 {dimension_numbers = #tpu.dot_dimension_numbers<[1], [0], [0], [1], [0, 0, 1, 1], [], []>} : vector<8x16xf32>, vector<16x8xf32>, vector<8x8xf32> -> vector<8x8xf32>
    %c0_30 = arith.constant 0 : index
    %c0_31 = arith.constant 0 : index
    %43 = vector.load %arg20[%c0_30, %c0_31] : memref<8x32xf32, #tpu.memory_space<vmem>>, vector<8x8xf32>
    %44 = vector.broadcast %29 : vector<8x1xf32> to vector<8x8xf32>
    %45 = arith.mulf %44, %43 : vector<8x8xf32>
    %46 = arith.addf %45, %42 : vector<8x8xf32>
    %c0_32 = arith.constant 0 : index
    %c0_33 = arith.constant 0 : index
    %47 = vector.load %arg20[%c0_32, %c0_33] : memref<8x32xf32, #tpu.memory_space<vmem>>, vector<8x8xf32>
    tpu.vector_store %arg20[%c0_32, %c0_33], %46 {strides = array<i32>} : memref<8x32xf32, #tpu.memory_space<vmem>>, vector<8x8xf32>,
    %c0_34 = arith.constant 0 : index
    %c0_35 = arith.constant 0 : index
    %c0_36 = arith.constant 0 : index
    %48 = vector.load %arg18[%c0_34, %c0_35, %c0_36] : memref<4x8x1xf32, #tpu.memory_space<vmem>>, vector<1x8x1xf32>
    %49 = vector.shape_cast %48 : vector<1x8x1xf32> to vector<8x1xf32>
    %50 = vector.shape_cast %27 : vector<8x1xf32> to vector<1x8x1xf32>
    tpu.vector_store %arg18[%c0_34, %c0_35, %c0_36], %50 {strides = array<i32>} : memref<4x8x1xf32, #tpu.memory_space<vmem>>, vector<1x8x1xf32>,
    %51 = vector.extract_strided_slice %18 {offsets = [0, 8], sizes = [8, 8], strides = [1, 1]} : vector<8x32xf32> to vector<8x8xf32>
    %52 = vector.extract_strided_slice %12 {offsets = [0, 8], sizes = [16, 8], strides = [1, 1]} : vector<16x32xf32> to vector<16x8xf32>
    %53 = vector.extract_strided_slice %17 {offsets = [0, 8], sizes = [16, 8], strides = [1, 1]} : vector<16x32xf32> to vector<16x8xf32>
    %cst_37 = arith.constant dense<0.000000e+00> : vector<8x16xf32>
    %54 = tpu.matmul %51, %52, %cst_37 {dimension_numbers = #tpu.dot_dimension_numbers<[1], [1], [0], [0], [0, 0, 1, 0], [], []>} : vector<8x8xf32>, vector<16x8xf32>, vector<8x16xf32> -> vector<8x16xf32>
    %c1 = arith.constant 1 : index
    %c0_38 = arith.constant 0 : index
    %c0_39 = arith.constant 0 : index
    %55 = vector.load %arg18[%c1, %c0_38, %c0_39] : memref<4x8x1xf32, #tpu.memory_space<vmem>>, vector<1x8x1xf32>
    %56 = vector.shape_cast %55 : vector<1x8x1xf32> to vector<8x1xf32>
    %cst_40 = arith.constant dense<0xFF800000> : vector<8xf32>
    %57 = vector.multi_reduction <maximumf>, %54, %cst_40 [1] : vector<8x16xf32> to vector<8xf32>
    %58 = vector.shape_cast %57 : vector<8xf32> to vector<8x1xf32>
    %59 = arith.maximumf %56, %58 : vector<8x1xf32>
    %60 = arith.subf %56, %59 : vector<8x1xf32>
    %61 = math.exp %60 : vector<8x1xf32>
    %62 = vector.broadcast %59 : vector<8x1xf32> to vector<8x16xf32>
    %63 = arith.subf %54, %62 : vector<8x16xf32>
    %64 = math.exp %63 : vector<8x16xf32>
    %c1_41 = arith.constant 1 : index
    %c0_42 = arith.constant 0 : index
    %c0_43 = arith.constant 0 : index
    %65 = vector.load %arg19[%c1_41, %c0_42, %c0_43] : memref<4x8x1xf32, #tpu.memory_space<vmem>>, vector<1x8x1xf32>
    %66 = vector.shape_cast %65 : vector<1x8x1xf32> to vector<8x1xf32>
    %67 = arith.mulf %61, %66 : vector<8x1xf32>
    %cst_44 = arith.constant dense<0.000000e+00> : vector<8xf32>
    %68 = vector.multi_reduction <add>, %64, %cst_44 [1] : vector<8x16xf32> to vector<8xf32>
    %69 = vector.shape_cast %68 : vector<8xf32> to vector<8x1xf32>
    %70 = arith.addf %67, %69 : vector<8x1xf32>
    %c1_45 = arith.constant 1 : index
    %c0_46 = arith.constant 0 : index
    %c0_47 = arith.constant 0 : index
    %71 = vector.load %arg19[%c1_45, %c0_46, %c0_47] : memref<4x8x1xf32, #tpu.memory_space<vmem>>, vector<1x8x1xf32>
    %72 = vector.shape_cast %71 : vector<1x8x1xf32> to vector<8x1xf32>
    %73 = vector.shape_cast %70 : vector<8x1xf32> to vector<1x8x1xf32>
    tpu.vector_store %arg19[%c1_45, %c0_46, %c0_47], %73 {strides = array<i32>} : memref<4x8x1xf32, #tpu.memory_space<vmem>>, vector<1x8x1xf32>,
    %cst_48 = arith.constant dense<0.000000e+00> : vector<8x8xf32>
    %74 = tpu.matmul %64, %53, %cst_48 {dimension_numbers = #tpu.dot_dimension_numbers<[1], [0], [0], [1], [0, 0, 1, 1], [], []>} : vector<8x16xf32>, vector<16x8xf32>, vector<8x8xf32> -> vector<8x8xf32>
    %c0_49 = arith.constant 0 : index
    %c8 = arith.constant 8 : index
    %75 = vector.load %arg20[%c0_49, %c8] : memref<8x32xf32, #tpu.memory_space<vmem>>, vector<8x8xf32>
    %76 = vector.broadcast %61 : vector<8x1xf32> to vector<8x8xf32>
    %77 = arith.mulf %76, %75 : vector<8x8xf32>
    %78 = arith.addf %77, %74 : vector<8x8xf32>
    %c0_50 = arith.constant 0 : index
    %c8_51 = arith.constant 8 : index
    %79 = vector.load %arg20[%c0_50, %c8_51] : memref<8x32xf32, #tpu.memory_space<vmem>>, vector<8x8xf32>
    tpu.vector_store %arg20[%c0_50, %c8_51], %78 {strides = array<i32>} : memref<8x32xf32, #tpu.memory_space<vmem>>, vector<8x8xf32>,
    %c1_52 = arith.constant 1 : index
    %c0_53 = arith.constant 0 : index
    %c0_54 = arith.constant 0 : index
    %80 = vector.load %arg18[%c1_52, %c0_53, %c0_54] : memref<4x8x1xf32, #tpu.memory_space<vmem>>, vector<1x8x1xf32>
    %81 = vector.shape_cast %80 : vector<1x8x1xf32> to vector<8x1xf32>
    %82 = vector.shape_cast %59 : vector<8x1xf32> to vector<1x8x1xf32>
    tpu.vector_store %arg18[%c1_52, %c0_53, %c0_54], %82 {strides = array<i32>} : memref<4x8x1xf32, #tpu.memory_space<vmem>>, vector<1x8x1xf32>,
    %83 = vector.extract_strided_slice %18 {offsets = [0, 16], sizes = [8, 8], strides = [1, 1]} : vector<8x32xf32> to vector<8x8xf32>
    %84 = vector.extract_strided_slice %12 {offsets = [0, 16], sizes = [16, 8], strides = [1, 1]} : vector<16x32xf32> to vector<16x8xf32>
    %85 = vector.extract_strided_slice %17 {offsets = [0, 16], sizes = [16, 8], strides = [1, 1]} : vector<16x32xf32> to vector<16x8xf32>
    %cst_55 = arith.constant dense<0.000000e+00> : vector<8x16xf32>
    %86 = tpu.matmul %83, %84, %cst_55 {dimension_numbers = #tpu.dot_dimension_numbers<[1], [1], [0], [0], [0, 0, 1, 0], [], []>} : vector<8x8xf32>, vector<16x8xf32>, vector<8x16xf32> -> vector<8x16xf32>
    %c2 = arith.constant 2 : index
    %c0_56 = arith.constant 0 : index
    %c0_57 = arith.constant 0 : index
    %87 = vector.load %arg18[%c2, %c0_56, %c0_57] : memref<4x8x1xf32, #tpu.memory_space<vmem>>, vector<1x8x1xf32>
    %88 = vector.shape_cast %87 : vector<1x8x1xf32> to vector<8x1xf32>
    %cst_58 = arith.constant dense<0xFF800000> : vector<8xf32>
    %89 = vector.multi_reduction <maximumf>, %86, %cst_58 [1] : vector<8x16xf32> to vector<8xf32>
    %90 = vector.shape_cast %89 : vector<8xf32> to vector<8x1xf32>
    %91 = arith.maximumf %88, %90 : vector<8x1xf32>
    %92 = arith.subf %88, %91 : vector<8x1xf32>
    %93 = math.exp %92 : vector<8x1xf32>
    %94 = vector.broadcast %91 : vector<8x1xf32> to vector<8x16xf32>
    %95 = arith.subf %86, %94 : vector<8x16xf32>
    %96 = math.exp %95 : vector<8x16xf32>
    %c2_59 = arith.constant 2 : index
    %c0_60 = arith.constant 0 : index
    %c0_61 = arith.constant 0 : index
    %97 = vector.load %arg19[%c2_59, %c0_60, %c0_61] : memref<4x8x1xf32, #tpu.memory_space<vmem>>, vector<1x8x1xf32>
    %98 = vector.shape_cast %97 : vector<1x8x1xf32> to vector<8x1xf32>
    %99 = arith.mulf %93, %98 : vector<8x1xf32>
    %cst_62 = arith.constant dense<0.000000e+00> : vector<8xf32>
    %100 = vector.multi_reduction <add>, %96, %cst_62 [1] : vector<8x16xf32> to vector<8xf32>
    %101 = vector.shape_cast %100 : vector<8xf32> to vector<8x1xf32>
    %102 = arith.addf %99, %101 : vector<8x1xf32>
    %c2_63 = arith.constant 2 : index
    %c0_64 = arith.constant 0 : index
    %c0_65 = arith.constant 0 : index
    %103 = vector.load %arg19[%c2_63, %c0_64, %c0_65] : memref<4x8x1xf32, #tpu.memory_space<vmem>>, vector<1x8x1xf32>
    %104 = vector.shape_cast %103 : vector<1x8x1xf32> to vector<8x1xf32>
    %105 = vector.shape_cast %102 : vector<8x1xf32> to vector<1x8x1xf32>
    tpu.vector_store %arg19[%c2_63, %c0_64, %c0_65], %105 {strides = array<i32>} : memref<4x8x1xf32, #tpu.memory_space<vmem>>, vector<1x8x1xf32>,
    %cst_66 = arith.constant dense<0.000000e+00> : vector<8x8xf32>
    %106 = tpu.matmul %96, %85, %cst_66 {dimension_numbers = #tpu.dot_dimension_numbers<[1], [0], [0], [1], [0, 0, 1, 1], [], []>} : vector<8x16xf32>, vector<16x8xf32>, vector<8x8xf32> -> vector<8x8xf32>
    %c0_67 = arith.constant 0 : index
    %c16 = arith.constant 16 : index
    %107 = vector.load %arg20[%c0_67, %c16] : memref<8x32xf32, #tpu.memory_space<vmem>>, vector<8x8xf32>
    %108 = vector.broadcast %93 : vector<8x1xf32> to vector<8x8xf32>
    %109 = arith.mulf %108, %107 : vector<8x8xf32>
    %110 = arith.addf %109, %106 : vector<8x8xf32>
    %c0_68 = arith.constant 0 : index
    %c16_69 = arith.constant 16 : index
    %111 = vector.load %arg20[%c0_68, %c16_69] : memref<8x32xf32, #tpu.memory_space<vmem>>, vector<8x8xf32>
    tpu.vector_store %arg20[%c0_68, %c16_69], %110 {strides = array<i32>} : memref<8x32xf32, #tpu.memory_space<vmem>>, vector<8x8xf32>,
    %c2_70 = arith.constant 2 : index
    %c0_71 = arith.constant 0 : index
    %c0_72 = arith.constant 0 : index
    %112 = vector.load %arg18[%c2_70, %c0_71, %c0_72] : memref<4x8x1xf32, #tpu.memory_space<vmem>>, vector<1x8x1xf32>
    %113 = vector.shape_cast %112 : vector<1x8x1xf32> to vector<8x1xf32>
    %114 = vector.shape_cast %91 : vector<8x1xf32> to vector<1x8x1xf32>
    tpu.vector_store %arg18[%c2_70, %c0_71, %c0_72], %114 {strides = array<i32>} : memref<4x8x1xf32, #tpu.memory_space<vmem>>, vector<1x8x1xf32>,
    %115 = vector.extract_strided_slice %18 {offsets = [0, 24], sizes = [8, 8], strides = [1, 1]} : vector<8x32xf32> to vector<8x8xf32>
    %116 = vector.extract_strided_slice %12 {offsets = [0, 24], sizes = [16, 8], strides = [1, 1]} : vector<16x32xf32> to vector<16x8xf32>
    %117 = vector.extract_strided_slice %17 {offsets = [0, 24], sizes = [16, 8], strides = [1, 1]} : vector<16x32xf32> to vector<16x8xf32>
    %cst_73 = arith.constant dense<0.000000e+00> : vector<8x16xf32>
    %118 = tpu.matmul %115, %116, %cst_73 {dimension_numbers = #tpu.dot_dimension_numbers<[1], [1], [0], [0], [0, 0, 1, 0], [], []>} : vector<8x8xf32>, vector<16x8xf32>, vector<8x16xf32> -> vector<8x16xf32>
    %c3 = arith.constant 3 : index
    %c0_74 = arith.constant 0 : index
    %c0_75 = arith.constant 0 : index
    %119 = vector.load %arg18[%c3, %c0_74, %c0_75] : memref<4x8x1xf32, #tpu.memory_space<vmem>>, vector<1x8x1xf32>
    %120 = vector.shape_cast %119 : vector<1x8x1xf32> to vector<8x1xf32>
    %cst_76 = arith.constant dense<0xFF800000> : vector<8xf32>
    %121 = vector.multi_reduction <maximumf>, %118, %cst_76 [1] : vector<8x16xf32> to vector<8xf32>
    %122 = vector.shape_cast %121 : vector<8xf32> to vector<8x1xf32>
    %123 = arith.maximumf %120, %122 : vector<8x1xf32>
    %124 = arith.subf %120, %123 : vector<8x1xf32>
    %125 = math.exp %124 : vector<8x1xf32>
    %126 = vector.broadcast %123 : vector<8x1xf32> to vector<8x16xf32>
    %127 = arith.subf %118, %126 : vector<8x16xf32>
    %128 = math.exp %127 : vector<8x16xf32>
    %c3_77 = arith.constant 3 : index
    %c0_78 = arith.constant 0 : index
    %c0_79 = arith.constant 0 : index
    %129 = vector.load %arg19[%c3_77, %c0_78, %c0_79] : memref<4x8x1xf32, #tpu.memory_space<vmem>>, vector<1x8x1xf32>
    %130 = vector.shape_cast %129 : vector<1x8x1xf32> to vector<8x1xf32>
    %131 = arith.mulf %125, %130 : vector<8x1xf32>
    %cst_80 = arith.constant dense<0.000000e+00> : vector<8xf32>
    %132 = vector.multi_reduction <add>, %128, %cst_80 [1] : vector<8x16xf32> to vector<8xf32>
    %133 = vector.shape_cast %132 : vector<8xf32> to vector<8x1xf32>
    %134 = arith.addf %131, %133 : vector<8x1xf32>
    %c3_81 = arith.constant 3 : index
    %c0_82 = arith.constant 0 : index
    %c0_83 = arith.constant 0 : index
    %135 = vector.load %arg19[%c3_81, %c0_82, %c0_83] : memref<4x8x1xf32, #tpu.memory_space<vmem>>, vector<1x8x1xf32>
    %136 = vector.shape_cast %135 : vector<1x8x1xf32> to vector<8x1xf32>
    %137 = vector.shape_cast %134 : vector<8x1xf32> to vector<1x8x1xf32>
    tpu.vector_store %arg19[%c3_81, %c0_82, %c0_83], %137 {strides = array<i32>} : memref<4x8x1xf32, #tpu.memory_space<vmem>>, vector<1x8x1xf32>,
    %cst_84 = arith.constant dense<0.000000e+00> : vector<8x8xf32>
    %138 = tpu.matmul %128, %117, %cst_84 {dimension_numbers = #tpu.dot_dimension_numbers<[1], [0], [0], [1], [0, 0, 1, 1], [], []>} : vector<8x16xf32>, vector<16x8xf32>, vector<8x8xf32> -> vector<8x8xf32>
    %c0_85 = arith.constant 0 : index
    %c24 = arith.constant 24 : index
    %139 = vector.load %arg20[%c0_85, %c24] : memref<8x32xf32, #tpu.memory_space<vmem>>, vector<8x8xf32>
    %140 = vector.broadcast %125 : vector<8x1xf32> to vector<8x8xf32>
    %141 = arith.mulf %140, %139 : vector<8x8xf32>
    %142 = arith.addf %141, %138 : vector<8x8xf32>
    %c0_86 = arith.constant 0 : index
    %c24_87 = arith.constant 24 : index
    %143 = vector.load %arg20[%c0_86, %c24_87] : memref<8x32xf32, #tpu.memory_space<vmem>>, vector<8x8xf32>
    tpu.vector_store %arg20[%c0_86, %c24_87], %142 {strides = array<i32>} : memref<8x32xf32, #tpu.memory_space<vmem>>, vector<8x8xf32>,
    %c3_88 = arith.constant 3 : index
    %c0_89 = arith.constant 0 : index
    %c0_90 = arith.constant 0 : index
    %144 = vector.load %arg18[%c3_88, %c0_89, %c0_90] : memref<4x8x1xf32, #tpu.memory_space<vmem>>, vector<1x8x1xf32>
    %145 = vector.shape_cast %144 : vector<1x8x1xf32> to vector<8x1xf32>
    %146 = vector.shape_cast %123 : vector<8x1xf32> to vector<1x8x1xf32>
    tpu.vector_store %arg18[%c3_88, %c0_89, %c0_90], %146 {strides = array<i32>} : memref<4x8x1xf32, #tpu.memory_space<vmem>>, vector<1x8x1xf32>,
    %c3_i32 = arith.constant 3 : i32
    %147 = arith.cmpi eq, %arg1, %c3_i32 : i32
    %148 = arith.extui %147 : i1 to i32
    %c0_i32_91 = arith.constant 0 : i32
    %149 = arith.cmpi ne, %148, %c0_i32_91 : i32
    scf.if %149 {
      %c0_92 = arith.constant 0 : index
      %c0_93 = arith.constant 0 : index
      %c0_94 = arith.constant 0 : index
      %150 = vector.load %arg19[%c0_92, %c0_93, %c0_94] : memref<4x8x1xf32, #tpu.memory_space<vmem>>, vector<4x8x1xf32>
      %151 = tpu.reciprocal %150 : vector<4x8x1xf32> -> vector<4x8x1xf32>
      %c0_95 = arith.constant 0 : index
      %c0_96 = arith.constant 0 : index
      %152 = vector.load %arg20[%c0_95, %c0_96] : memref<8x32xf32, #tpu.memory_space<vmem>>, vector<8x8xf32>
      %153 = vector.extract_strided_slice %151 {offsets = [0, 0, 0], sizes = [1, 8, 1], strides = [1, 1, 1]} : vector<4x8x1xf32> to vector<1x8x1xf32>
      %154 = vector.shape_cast %153 : vector<1x8x1xf32> to vector<8x1xf32>
      %155 = vector.broadcast %154 : vector<8x1xf32> to vector<8x8xf32>
      %156 = arith.mulf %152, %155 : vector<8x8xf32>
      %c0_97 = arith.constant 0 : index
      %c0_98 = arith.constant 0 : index
      %157 = vector.load %arg20[%c0_97, %c0_98] : memref<8x32xf32, #tpu.memory_space<vmem>>, vector<8x8xf32>
      tpu.vector_store %arg20[%c0_97, %c0_98], %156 {strides = array<i32>} : memref<8x32xf32, #tpu.memory_space<vmem>>, vector<8x8xf32>,
      %c0_99 = arith.constant 0 : index
      %c8_100 = arith.constant 8 : index
      %158 = vector.load %arg20[%c0_99, %c8_100] : memref<8x32xf32, #tpu.memory_space<vmem>>, vector<8x8xf32>
      %159 = vector.extract_strided_slice %151 {offsets = [1, 0, 0], sizes = [1, 8, 1], strides = [1, 1, 1]} : vector<4x8x1xf32> to vector<1x8x1xf32>
      %160 = vector.shape_cast %159 : vector<1x8x1xf32> to vector<8x1xf32>
      %161 = vector.broadcast %160 : vector<8x1xf32> to vector<8x8xf32>
      %162 = arith.mulf %158, %161 : vector<8x8xf32>
      %c0_101 = arith.constant 0 : index
      %c8_102 = arith.constant 8 : index
      %163 = vector.load %arg20[%c0_101, %c8_102] : memref<8x32xf32, #tpu.memory_space<vmem>>, vector<8x8xf32>
      tpu.vector_store %arg20[%c0_101, %c8_102], %162 {strides = array<i32>} : memref<8x32xf32, #tpu.memory_space<vmem>>, vector<8x8xf32>,
      %c0_103 = arith.constant 0 : index
      %c16_104 = arith.constant 16 : index
      %164 = vector.load %arg20[%c0_103, %c16_104] : memref<8x32xf32, #tpu.memory_space<vmem>>, vector<8x8xf32>
      %165 = vector.extract_strided_slice %151 {offsets = [2, 0, 0], sizes = [1, 8, 1], strides = [1, 1, 1]} : vector<4x8x1xf32> to vector<1x8x1xf32>
      %166 = vector.shape_cast %165 : vector<1x8x1xf32> to vector<8x1xf32>
      %167 = vector.broadcast %166 : vector<8x1xf32> to vector<8x8xf32>
      %168 = arith.mulf %164, %167 : vector<8x8xf32>
      %c0_105 = arith.constant 0 : index
      %c16_106 = arith.constant 16 : index
      %169 = vector.load %arg20[%c0_105, %c16_106] : memref<8x32xf32, #tpu.memory_space<vmem>>, vector<8x8xf32>
      tpu.vector_store %arg20[%c0_105, %c16_106], %168 {strides = array<i32>} : memref<8x32xf32, #tpu.memory_space<vmem>>, vector<8x8xf32>,
      %c0_107 = arith.constant 0 : index
      %c24_108 = arith.constant 24 : index
      %170 = vector.load %arg20[%c0_107, %c24_108] : memref<8x32xf32, #tpu.memory_space<vmem>>, vector<8x8xf32>
      %171 = vector.extract_strided_slice %151 {offsets = [3, 0, 0], sizes = [1, 8, 1], strides = [1, 1, 1]} : vector<4x8x1xf32> to vector<1x8x1xf32>
      %172 = vector.shape_cast %171 : vector<1x8x1xf32> to vector<8x1xf32>
      %173 = vector.broadcast %172 : vector<8x1xf32> to vector<8x8xf32>
      %174 = arith.mulf %170, %173 : vector<8x8xf32>
      %c0_109 = arith.constant 0 : index
      %c24_110 = arith.constant 24 : index
      %175 = vector.load %arg20[%c0_109, %c24_110] : memref<8x32xf32, #tpu.memory_space<vmem>>, vector<8x8xf32>
      tpu.vector_store %arg20[%c0_109, %c24_110], %174 {strides = array<i32>} : memref<8x32xf32, #tpu.memory_space<vmem>>, vector<8x8xf32>,
      %c0_111 = arith.constant 0 : index
      %c0_112 = arith.constant 0 : index
      %176 = vector.load %arg20[%c0_111, %c0_112] : memref<8x32xf32, #tpu.memory_space<vmem>>, vector<8x32xf32>
      %c0_113 = arith.constant 0 : index
      %c0_114 = arith.constant 0 : index
      %177 = vector.load %arg9[%c0_113, %c0_114] : memref<32x32xf32, #tpu.memory_space<vmem>>, vector<32x32xf32>
      %cst_115 = arith.constant dense<0.000000e+00> : vector<8x32xf32>
      %178 = tpu.matmul %176, %177, %cst_115 {dimension_numbers = #tpu.dot_dimension_numbers<[1], [0], [0], [1], [0, 0, 1, 1], [], []>} : vector<8x32xf32>, vector<32x32xf32>, vector<8x32xf32> -> vector<8x32xf32>
      %c0_116 = arith.constant 0 : index
      %c0_117 = arith.constant 0 : index
      %179 = vector.load %arg13[%c0_116, %c0_117] : memref<1x32xf32, #tpu.memory_space<vmem>>, vector<1x32xf32>
      %180 = vector.broadcast %179 : vector<1x32xf32> to vector<8x32xf32>
      %181 = arith.addf %178, %180 : vector<8x32xf32>
      %c0_118 = arith.constant 0 : index
      %c0_119 = arith.constant 0 : index
      %c0_120 = arith.constant 0 : index
      %182 = vector.load %arg2[%c0_118, %c0_119, %c0_120] : memref<1x8x32xf32, #tpu.memory_space<vmem>>, vector<1x8x32xf32>
      %183 = vector.shape_cast %182 : vector<1x8x32xf32> to vector<8x32xf32>
      %184 = arith.addf %183, %181 : vector<8x32xf32>
      %cst_121 = arith.constant dense<0.000000e+00> : vector<8xf32>
      %185 = vector.multi_reduction <add>, %184, %cst_121 [1] : vector<8x32xf32> to vector<8xf32>
      %186 = vector.shape_cast %185 : vector<8xf32> to vector<8x1xf32>
      %cst_122 = arith.constant 3.200000e+01 : f32
      %187 = vector.broadcast %cst_122 : f32 to vector<8x1xf32>
      %188 = arith.divf %186, %187 : vector<8x1xf32>
      %189 = vector.broadcast %188 : vector<8x1xf32> to vector<8x32xf32>
      %190 = arith.subf %184, %189 : vector<8x32xf32>
      %191 = arith.mulf %190, %190 : vector<8x32xf32>
      %cst_123 = arith.constant dense<0.000000e+00> : vector<8xf32>
      %192 = vector.multi_reduction <add>, %191, %cst_123 [1] : vector<8x32xf32> to vector<8xf32>
      %193 = vector.shape_cast %192 : vector<8xf32> to vector<8x1xf32>
      %cst_124 = arith.constant 3.200000e+01 : f32
      %194 = vector.broadcast %cst_124 : f32 to vector<8x1xf32>
      %195 = arith.divf %193, %194 : vector<8x1xf32>
      %cst_125 = arith.constant 9.99999974E-6 : f32
      %196 = vector.broadcast %cst_125 : f32 to vector<8x1xf32>
      %197 = arith.addf %195, %196 : vector<8x1xf32>
      %198 = math.rsqrt %197 : vector<8x1xf32>
      %199 = vector.broadcast %198 : vector<8x1xf32> to vector<8x32xf32>
      %200 = arith.mulf %190, %199 : vector<8x32xf32>
      %c0_126 = arith.constant 0 : index
      %c0_127 = arith.constant 0 : index
      %201 = vector.load %arg14[%c0_126, %c0_127] : memref<1x32xf32, #tpu.memory_space<vmem>>, vector<1x32xf32>
      %202 = vector.broadcast %201 : vector<1x32xf32> to vector<8x32xf32>
      %203 = arith.mulf %200, %202 : vector<8x32xf32>
      %c0_128 = arith.constant 0 : index
      %c0_129 = arith.constant 0 : index
      %204 = vector.load %arg15[%c0_128, %c0_129] : memref<1x32xf32, #tpu.memory_space<vmem>>, vector<1x32xf32>
      %205 = vector.broadcast %204 : vector<1x32xf32> to vector<8x32xf32>
      %206 = arith.addf %203, %205 : vector<8x32xf32>
      %c0_130 = arith.constant 0 : index
      %c0_131 = arith.constant 0 : index
      %c0_132 = arith.constant 0 : index
      %207 = vector.load %arg16[%c0_130, %c0_131, %c0_132] : memref<1x8x32xf32, #tpu.memory_space<vmem>>, vector<1x8x32xf32>
      %208 = vector.shape_cast %207 : vector<1x8x32xf32> to vector<8x32xf32>
      %209 = vector.shape_cast %206 : vector<8x32xf32> to vector<1x8x32xf32>
      tpu.vector_store %arg16[%c0_130, %c0_131, %c0_132], %209 {strides = array<i32>} : memref<1x8x32xf32, #tpu.memory_space<vmem>>, vector<1x8x32xf32>,
    } else {
    }
    return
  }
  func.func @transform_0(%arg0: i32, %arg1: i32) -> (i32, i32, i32) {
    %c0_i32 = arith.constant 0 : i32
    %c0_i32_0 = arith.constant 0 : i32
    %c0_i32_1 = arith.constant 0 : i32
    return %arg0, %c0_i32, %c0_i32_0 : i32, i32, i32
  }
  func.func @transform_1(%arg0: i32, %arg1: i32) -> (i32, i32, i32) {
    %c0_i32 = arith.constant 0 : i32
    %c0_i32_0 = arith.constant 0 : i32
    %c0_i32_1 = arith.constant 0 : i32
    return %arg0, %c0_i32, %c0_i32_0 : i32, i32, i32
  }
  func.func @transform_2(%arg0: i32, %arg1: i32) -> (i32, i32, i32) {
    %c0_i32 = arith.constant 0 : i32
    %c0_i32_0 = arith.constant 0 : i32
    return %arg0, %arg1, %c0_i32 : i32, i32, i32
  }
  func.func @transform_3(%arg0: i32, %arg1: i32) -> (i32, i32, i32) {
    %c0_i32 = arith.constant 0 : i32
    %c0_i32_0 = arith.constant 0 : i32
    return %arg0, %arg1, %c0_i32 : i32, i32, i32
  }
  func.func @transform_4(%arg0: i32, %arg1: i32) -> (i32, i32) {
    %c0_i32 = arith.constant 0 : i32
    %c0_i32_0 = arith.constant 0 : i32
    %c0_i32_1 = arith.constant 0 : i32
    return %c0_i32, %c0_i32_0 : i32, i32
  }
  func.func @transform_5(%arg0: i32, %arg1: i32) -> (i32, i32) {
    %c0_i32 = arith.constant 0 : i32
    %c0_i32_0 = arith.constant 0 : i32
    %c0_i32_1 = arith.constant 0 : i32
    return %c0_i32, %c0_i32_0 : i32, i32
  }
  func.func @transform_6(%arg0: i32, %arg1: i32) -> (i32, i32) {
    %c0_i32 = arith.constant 0 : i32
    %c0_i32_0 = arith.constant 0 : i32
    %c0_i32_1 = arith.constant 0 : i32
    return %c0_i32, %c0_i32_0 : i32, i32
  }
  func.func @transform_7(%arg0: i32, %arg1: i32) -> (i32, i32) {
    %c0_i32 = arith.constant 0 : i32
    %c0_i32_0 = arith.constant 0 : i32
    %c0_i32_1 = arith.constant 0 : i32
    return %c0_i32, %c0_i32_0 : i32, i32
  }
  func.func @transform_8(%arg0: i32, %arg1: i32) -> (i32, i32) {
    %c0_i32 = arith.constant 0 : i32
    %c0_i32_0 = arith.constant 0 : i32
    %c0_i32_1 = arith.constant 0 : i32
    return %c0_i32, %c0_i32_0 : i32, i32
  }
  func.func @transform_9(%arg0: i32, %arg1: i32) -> (i32, i32) {
    %c0_i32 = arith.constant 0 : i32
    %c0_i32_0 = arith.constant 0 : i32
    %c0_i32_1 = arith.constant 0 : i32
    return %c0_i32, %c0_i32_0 : i32, i32
  }
  func.func @transform_10(%arg0: i32, %arg1: i32) -> (i32, i32) {
    %c0_i32 = arith.constant 0 : i32
    %c0_i32_0 = arith.constant 0 : i32
    %c0_i32_1 = arith.constant 0 : i32
    return %c0_i32, %c0_i32_0 : i32, i32
  }
  func.func @transform_11(%arg0: i32, %arg1: i32) -> (i32, i32) {
    %c0_i32 = arith.constant 0 : i32
    %c0_i32_0 = arith.constant 0 : i32
    %c0_i32_1 = arith.constant 0 : i32
    return %c0_i32, %c0_i32_0 : i32, i32
  }
  func.func @transform_12(%arg0: i32, %arg1: i32) -> (i32, i32) {
    %c0_i32 = arith.constant 0 : i32
    %c0_i32_0 = arith.constant 0 : i32
    %c0_i32_1 = arith.constant 0 : i32
    return %c0_i32, %c0_i32_0 : i32, i32
  }
  func.func @transform_13(%arg0: i32, %arg1: i32) -> (i32, i32) {
    %c0_i32 = arith.constant 0 : i32
    %c0_i32_0 = arith.constant 0 : i32
    %c0_i32_1 = arith.constant 0 : i32
    return %c0_i32, %c0_i32_0 : i32, i32
  }
  func.func @transform_14(%arg0: i32, %arg1: i32) -> (i32, i32, i32) {
    %c0_i32 = arith.constant 0 : i32
    %c0_i32_0 = arith.constant 0 : i32
    %c0_i32_1 = arith.constant 0 : i32
    return %arg0, %c0_i32, %c0_i32_0 : i32, i32, i32
  }
}

module attributes {stable_mosaic.version = 11 : i64} {
  func.func @cross_attn_kernel(%arg0: i32, %arg1: i32, %arg2: memref<1x8x32xf32, #tpu.memory_space<vmem>>, %arg3: memref<1x8x32xf32, #tpu.memory_space<vmem>>, %arg4: memref<1x16x32xf32, #tpu.memory_space<vmem>>, %arg5: memref<1x16x32xf32, #tpu.memory_space<vmem>>, %arg6: memref<32x32xf32, #tpu.memory_space<vmem>>, %arg7: memref<32x32xf32, #tpu.memory_space<vmem>>, %arg8: memref<32x32xf32, #tpu.memory_space<vmem>>, %arg9: memref<32x32xf32, #tpu.memory_space<vmem>>, %arg10: memref<1x32xf32, #tpu.memory_space<vmem>>, %arg11: memref<1x32xf32, #tpu.memory_space<vmem>>, %arg12: memref<1x32xf32, #tpu.memory_space<vmem>>, %arg13: memref<1x32xf32, #tpu.memory_space<vmem>>, %arg14: memref<1x32xf32, #tpu.memory_space<vmem>>, %arg15: memref<1x32xf32, #tpu.memory_space<vmem>>, %arg16: memref<1x8x32xf32, #tpu.memory_space<vmem>>, %arg17: memref<8x32xf32, #tpu.memory_space<vmem>>, %arg18: memref<4x8x1xf32, #tpu.memory_space<vmem>>, %arg19: memref<4x8x1xf32, #tpu.memory_space<vmem>>, %arg20: memref<8x32xf32, #tpu.memory_space<vmem>>) attributes {dimension_semantics = [#tpu.dimension_semantics<parallel>, #tpu.dimension_semantics<arbitrary>], iteration_bounds = array<i64: 2, 4>, scalar_prefetch = 0 : i64, scratch_operands = 4 : i64, tpu.core_type = #tpu.core_type<tc>, window_params = [{transform_indices = @transform_0, window_bounds = array<i64: 1, 8, 32>}, {transform_indices = @transform_1, window_bounds = array<i64: 1, 8, 32>}, {transform_indices = @transform_2, window_bounds = array<i64: 1, 16, 32>}, {transform_indices = @transform_3, window_bounds = array<i64: 1, 16, 32>}, {pipeline_mode = #tpu.pipeline_mode<synchronous>, transform_indices = @transform_4, window_bounds = array<i64: 32, 32>}, {pipeline_mode = #tpu.pipeline_mode<synchronous>, transform_indices = @transform_5, window_bounds = array<i64: 32, 32>}, {pipeline_mode = #tpu.pipeline_mode<synchronous>, transform_indices = @transform_6, window_bounds = array<i64: 32, 32>}, {pipeline_mode = #tpu.pipeline_mode<synchronous>, transform_indices = @transform_7, window_bounds = array<i64: 32, 32>}, {pipeline_mode = #tpu.pipeline_mode<synchronous>, transform_indices = @transform_8, window_bounds = array<i64: 1, 32>}, {pipeline_mode = #tpu.pipeline_mode<synchronous>, transform_indices = @transform_9, window_bounds = array<i64: 1, 32>}, {pipeline_mode = #tpu.pipeline_mode<synchronous>, transform_indices = @transform_10, window_bounds = array<i64: 1, 32>}, {pipeline_mode = #tpu.pipeline_mode<synchronous>, transform_indices = @transform_11, window_bounds = array<i64: 1, 32>}, {pipeline_mode = #tpu.pipeline_mode<synchronous>, transform_indices = @transform_12, window_bounds = array<i64: 1, 32>}, {pipeline_mode = #tpu.pipeline_mode<synchronous>, transform_indices = @transform_13, window_bounds = array<i64: 1, 32>}, {transform_indices = @transform_14, window_bounds = array<i64: 1, 8, 32>}]} {
    %c0_i32 = arith.constant 0 : i32
    %0 = arith.cmpi eq, %arg1, %c0_i32 : i32
    %1 = arith.extui %0 : i1 to i32
    %c0_i32_0 = arith.constant 0 : i32
    %2 = arith.cmpi ne, %1, %c0_i32_0 : i32
    scf.if %2 {
      %c0_92 = arith.constant 0 : index
      %c0_93 = arith.constant 0 : index
      %c0_94 = arith.constant 0 : index
      %150 = vector.load %arg2[%c0_92, %c0_93, %c0_94] : memref<1x8x32xf32, #tpu.memory_space<vmem>>, vector<1x8x32xf32>
      %151 = vector.shape_cast %150 : vector<1x8x32xf32> to vector<8x32xf32>
      %c0_95 = arith.constant 0 : index
      %c0_96 = arith.constant 0 : index
      %c0_97 = arith.constant 0 : index
      %152 = vector.load %arg3[%c0_95, %c0_96, %c0_97] : memref<1x8x32xf32, #tpu.memory_space<vmem>>, vector<1x8x32xf32>
      %153 = vector.shape_cast %152 : vector<1x8x32xf32> to vector<8x32xf32>
      %154 = arith.addf %151, %153 : vector<8x32xf32>
      %c0_98 = arith.constant 0 : index
      %c0_99 = arith.constant 0 : index
      %155 = vector.load %arg6[%c0_98, %c0_99] : memref<32x32xf32, #tpu.memory_space<vmem>>, vector<32x32xf32>
      %cst_100 = arith.constant dense<0.000000e+00> : vector<8x32xf32>
      %156 = tpu.matmul %154, %155, %cst_100 {dimension_numbers = #tpu.dot_dimension_numbers<[1], [0], [0], [1], [0, 0, 1, 1], [], []>} : vector<8x32xf32>, vector<32x32xf32>, vector<8x32xf32> -> vector<8x32xf32>
      %c0_101 = arith.constant 0 : index
      %c0_102 = arith.constant 0 : index
      %157 = vector.load %arg10[%c0_101, %c0_102] : memref<1x32xf32, #tpu.memory_space<vmem>>, vector<1x32xf32>
      %158 = vector.broadcast %157 : vector<1x32xf32> to vector<8x32xf32>
      %159 = arith.addf %156, %158 : vector<8x32xf32>
      %c0_103 = arith.constant 0 : index
      %c0_104 = arith.constant 0 : index
      %160 = vector.load %arg17[%c0_103, %c0_104] : memref<8x32xf32, #tpu.memory_space<vmem>>, vector<8x32xf32>
      tpu.vector_store %arg17[%c0_103, %c0_104], %159 {strides = array<i32>} : memref<8x32xf32, #tpu.memory_space<vmem>>, vector<8x32xf32>,
      %cst_105 = arith.constant 0xFF800000 : f32
      %161 = vector.broadcast %cst_105 : f32 to vector<4x8x1xf32>
      %c0_106 = arith.constant 0 : index
      %c0_107 = arith.constant 0 : index
      %c0_108 = arith.constant 0 : index
      %162 = vector.load %arg18[%c0_106, %c0_107, %c0_108] : memref<4x8x1xf32, #tpu.memory_space<vmem>>, vector<4x8x1xf32>
      tpu.vector_store %arg18[%c0_106, %c0_107, %c0_108], %161 {strides = array<i32>} : memref<4x8x1xf32, #tpu.memory_space<vmem>>, vector<4x8x1xf32>,
      %cst_109 = arith.constant 0.000000e+00 : f32
      %163 = vector.broadcast %cst_109 : f32 to vector<4x8x1xf32>
      %c0_110 = arith.constant 0 : index
      %c0_111 = arith.constant 0 : index
      %c0_112 = arith.constant 0 : index
      %164 = vector.load %arg19[%c0_110, %c0_111, %c0_112] : memref<4x8x1xf32, #tpu.memory_space<vmem>>, vector<4x8x1xf32>
      tpu.vector_store %arg19[%c0_110, %c0_111, %c0_112], %163 {strides = array<i32>} : memref<4x8x1xf32, #tpu.memory_space<vmem>>, vector<4x8x1xf32>,
      %cst_113 = arith.constant 0.000000e+00 : f32
      %165 = vector.broadcast %cst_113 : f32 to vector<8x32xf32>
      %c0_114 = arith.constant 0 : index
      %c0_115 = arith.constant 0 : index
      %166 = vector.load %arg20[%c0_114, %c0_115] : memref<8x32xf32, #tpu.memory_space<vmem>>, vector<8x32xf32>
      tpu.vector_store %arg20[%c0_114, %c0_115], %165 {strides = array<i32>} : memref<8x32xf32, #tpu.memory_space<vmem>>, vector<8x32xf32>,
    } else {
    }
    %c0 = arith.constant 0 : index
    %c0_1 = arith.constant 0 : index
    %c0_2 = arith.constant 0 : index
    %3 = vector.load %arg4[%c0, %c0_1, %c0_2] : memref<1x16x32xf32, #tpu.memory_space<vmem>>, vector<1x16x32xf32>
    %4 = vector.shape_cast %3 : vector<1x16x32xf32> to vector<16x32xf32>
    %c0_3 = arith.constant 0 : index
    %c0_4 = arith.constant 0 : index
    %c0_5 = arith.constant 0 : index
    %5 = vector.load %arg5[%c0_3, %c0_4, %c0_5] : memref<1x16x32xf32, #tpu.memory_space<vmem>>, vector<1x16x32xf32>
    %6 = vector.shape_cast %5 : vector<1x16x32xf32> to vector<16x32xf32>
    %7 = arith.addf %4, %6 : vector<16x32xf32>
    %c0_6 = arith.constant 0 : index
    %c0_7 = arith.constant 0 : index
    %8 = vector.load %arg7[%c0_6, %c0_7] : memref<32x32xf32, #tpu.memory_space<vmem>>, vector<32x32xf32>
    %cst = arith.constant dense<0.000000e+00> : vector<16x32xf32>
    %9 = tpu.matmul %7, %8, %cst {dimension_numbers = #tpu.dot_dimension_numbers<[1], [0], [0], [1], [0, 0, 1, 1], [], []>} : vector<16x32xf32>, vector<32x32xf32>, vector<16x32xf32> -> vector<16x32xf32>
    %c0_8 = arith.constant 0 : index
    %c0_9 = arith.constant 0 : index
    %10 = vector.load %arg11[%c0_8, %c0_9] : memref<1x32xf32, #tpu.memory_space<vmem>>, vector<1x32xf32>
    %11 = vector.broadcast %10 : vector<1x32xf32> to vector<16x32xf32>
    %12 = arith.addf %9, %11 : vector<16x32xf32>
    %c0_10 = arith.constant 0 : index
    %c0_11 = arith.constant 0 : index
    %13 = vector.load %arg8[%c0_10, %c0_11] : memref<32x32xf32, #tpu.memory_space<vmem>>, vector<32x32xf32>
    %cst_12 = arith.constant dense<0.000000e+00> : vector<16x32xf32>
    %14 = tpu.matmul %4, %13, %cst_12 {dimension_numbers = #tpu.dot_dimension_numbers<[1], [0], [0], [1], [0, 0, 1, 1], [], []>} : vector<16x32xf32>, vector<32x32xf32>, vector<16x32xf32> -> vector<16x32xf32>
    %c0_13 = arith.constant 0 : index
    %c0_14 = arith.constant 0 : index
    %15 = vector.load %arg12[%c0_13, %c0_14] : memref<1x32xf32, #tpu.memory_space<vmem>>, vector<1x32xf32>
    %16 = vector.broadcast %15 : vector<1x32xf32> to vector<16x32xf32>
    %17 = arith.addf %14, %16 : vector<16x32xf32>
    %c0_15 = arith.constant 0 : index
    %c0_16 = arith.constant 0 : index
    %18 = vector.load %arg17[%c0_15, %c0_16] : memref<8x32xf32, #tpu.memory_space<vmem>>, vector<8x32xf32>
    %19 = vector.extract_strided_slice %18 {offsets = [0, 0], sizes = [8, 8], strides = [1, 1]} : vector<8x32xf32> to vector<8x8xf32>
    %20 = vector.extract_strided_slice %12 {offsets = [0, 0], sizes = [16, 8], strides = [1, 1]} : vector<16x32xf32> to vector<16x8xf32>
    %21 = vector.extract_strided_slice %17 {offsets = [0, 0], sizes = [16, 8], strides = [1, 1]} : vector<16x32xf32> to vector<16x8xf32>
    %cst_17 = arith.constant dense<0.000000e+00> : vector<8x16xf32>
    %22 = tpu.matmul %19, %20, %cst_17 {dimension_numbers = #tpu.dot_dimension_numbers<[1], [1], [0], [0], [0, 0, 1, 0], [], []>} : vector<8x8xf32>, vector<16x8xf32>, vector<8x16xf32> -> vector<8x16xf32>
    %c0_18 = arith.constant 0 : index
    %c0_19 = arith.constant 0 : index
    %c0_20 = arith.constant 0 : index
    %23 = vector.load %arg18[%c0_18, %c0_19, %c0_20] : memref<4x8x1xf32, #tpu.memory_space<vmem>>, vector<1x8x1xf32>
    %24 = vector.shape_cast %23 : vector<1x8x1xf32> to vector<8x1xf32>
    %cst_21 = arith.constant dense<0xFF800000> : vector<8xf32>
    %25 = vector.multi_reduction <maximumf>, %22, %cst_21 [1] : vector<8x16xf32> to vector<8xf32>
    %26 = vector.shape_cast %25 : vector<8xf32> to vector<8x1xf32>
    %27 = arith.maximumf %24, %26 : vector<8x1xf32>
    %28 = arith.subf %24, %27 : vector<8x1xf32>
    %29 = math.exp %28 : vector<8x1xf32>
    %30 = vector.broadcast %27 : vector<8x1xf32> to vector<8x16xf32>
    %31 = arith.subf %22, %30 : vector<8x16xf32>
    %32 = math.exp %31 : vector<8x16xf32>
    %c0_22 = arith.constant 0 : index
    %c0_23 = arith.constant 0 : index
    %c0_24 = arith.constant 0 : index
    %33 = vector.load %arg19[%c0_22, %c0_23, %c0_24] : memref<4x8x1xf32, #tpu.memory_space<vmem>>, vector<1x8x1xf32>
    %34 = vector.shape_cast %33 : vector<1x8x1xf32> to vector<8x1xf32>
    %35 = arith.mulf %29, %34 : vector<8x1xf32>
    %cst_25 = arith.constant dense<0.000000e+00> : vector<8xf32>
    %36 = vector.multi_reduction <add>, %32, %cst_25 [1] : vector<8x16xf32> to vector<8xf32>
    %37 = vector.shape_cast %36 : vector<8xf32> to vector<8x1xf32>
    %38 = arith.addf %35, %37 : vector<8x1xf32>
    %c0_26 = arith.constant 0 : index
    %c0_27 = arith.constant 0 : index
    %c0_28 = arith.constant 0 : index
    %39 = vector.load %arg19[%c0_26, %c0_27, %c0_28] : memref<4x8x1xf32, #tpu.memory_space<vmem>>, vector<1x8x1xf32>
    %40 = vector.shape_cast %39 : vector<1x8x1xf32> to vector<8x1xf32>
    %41 = vector.shape_cast %38 : vector<8x1xf32> to vector<1x8x1xf32>
    tpu.vector_store %arg19[%c0_26, %c0_27, %c0_28], %41 {strides = array<i32>} : memref<4x8x1xf32, #tpu.memory_space<vmem>>, vector<1x8x1xf32>,
    %cst_29 = arith.constant dense<0.000000e+00> : vector<8x8xf32>
    %42 = tpu.matmul %32, %21, %cst_29 {dimension_numbers = #tpu.dot_dimension_numbers<[1], [0], [0], [1], [0, 0, 1, 1], [], []>} : vector<8x16xf32>, vector<16x8xf32>, vector<8x8xf32> -> vector<8x8xf32>
    %c0_30 = arith.constant 0 : index
    %c0_31 = arith.constant 0 : index
    %43 = vector.load %arg20[%c0_30, %c0_31] : memref<8x32xf32, #tpu.memory_space<vmem>>, vector<8x8xf32>
    %44 = vector.broadcast %29 : vector<8x1xf32> to vector<8x8xf32>
    %45 = arith.mulf %44, %43 : vector<8x8xf32>
    %46 = arith.addf %45, %42 : vector<8x8xf32>
    %c0_32 = arith.constant 0 : index
    %c0_33 = arith.constant 0 : index
    %47 = vector.load %arg20[%c0_32, %c0_33] : memref<8x32xf32, #tpu.memory_space<vmem>>, vector<8x8xf32>
    tpu.vector_store %arg20[%c0_32, %c0_33], %46 {strides = array<i32>} : memref<8x32xf32, #tpu.memory_space<vmem>>, vector<8x8xf32>,
    %c0_34 = arith.constant 0 : index
    %c0_35 = arith.constant 0 : index
    %c0_36 = arith.constant 0 : index
    %48 = vector.load %arg18[%c0_34, %c0_35, %c0_36] : memref<4x8x1xf32, #tpu.memory_space<vmem>>, vector<1x8x1xf32>
    %49 = vector.shape_cast %48 : vector<1x8x1xf32> to vector<8x1xf32>
    %50 = vector.shape_cast %27 : vector<8x1xf32> to vector<1x8x1xf32>
    tpu.vector_store %arg18[%c0_34, %c0_35, %c0_36], %50 {strides = array<i32>} : memref<4x8x1xf32, #tpu.memory_space<vmem>>, vector<1x8x1xf32>,
    %51 = vector.extract_strided_slice %18 {offsets = [0, 8], sizes = [8, 8], strides = [1, 1]} : vector<8x32xf32> to vector<8x8xf32>
    %52 = vector.extract_strided_slice %12 {offsets = [0, 8], sizes = [16, 8], strides = [1, 1]} : vector<16x32xf32> to vector<16x8xf32>
    %53 = vector.extract_strided_slice %17 {offsets = [0, 8], sizes = [16, 8], strides = [1, 1]} : vector<16x32xf32> to vector<16x8xf32>
    %cst_37 = arith.constant dense<0.000000e+00> : vector<8x16xf32>
    %54 = tpu.matmul %51, %52, %cst_37 {dimension_numbers = #tpu.dot_dimension_numbers<[1], [1], [0], [0], [0, 0, 1, 0], [], []>} : vector<8x8xf32>, vector<16x8xf32>, vector<8x16xf32> -> vector<8x16xf32>
    %c1 = arith.constant 1 : index
    %c0_38 = arith.constant 0 : index
    %c0_39 = arith.constant 0 : index
    %55 = vector.load %arg18[%c1, %c0_38, %c0_39] : memref<4x8x1xf32, #tpu.memory_space<vmem>>, vector<1x8x1xf32>
    %56 = vector.shape_cast %55 : vector<1x8x1xf32> to vector<8x1xf32>
    %cst_40 = arith.constant dense<0xFF800000> : vector<8xf32>
    %57 = vector.multi_reduction <maximumf>, %54, %cst_40 [1] : vector<8x16xf32> to vector<8xf32>
    %58 = vector.shape_cast %57 : vector<8xf32> to vector<8x1xf32>
    %59 = arith.maximumf %56, %58 : vector<8x1xf32>
    %60 = arith.subf %56, %59 : vector<8x1xf32>
    %61 = math.exp %60 : vector<8x1xf32>
    %62 = vector.broadcast %59 : vector<8x1xf32> to vector<8x16xf32>
    %63 = arith.subf %54, %62 : vector<8x16xf32>
    %64 = math.exp %63 : vector<8x16xf32>
    %c1_41 = arith.constant 1 : index
    %c0_42 = arith.constant 0 : index
    %c0_43 = arith.constant 0 : index
    %65 = vector.load %arg19[%c1_41, %c0_42, %c0_43] : memref<4x8x1xf32, #tpu.memory_space<vmem>>, vector<1x8x1xf32>
    %66 = vector.shape_cast %65 : vector<1x8x1xf32> to vector<8x1xf32>
    %67 = arith.mulf %61, %66 : vector<8x1xf32>
    %cst_44 = arith.constant dense<0.000000e+00> : vector<8xf32>
    %68 = vector.multi_reduction <add>, %64, %cst_44 [1] : vector<8x16xf32> to vector<8xf32>
    %69 = vector.shape_cast %68 : vector<8xf32> to vector<8x1xf32>
    %70 = arith.addf %67, %69 : vector<8x1xf32>
    %c1_45 = arith.constant 1 : index
    %c0_46 = arith.constant 0 : index
    %c0_47 = arith.constant 0 : index
    %71 = vector.load %arg19[%c1_45, %c0_46, %c0_47] : memref<4x8x1xf32, #tpu.memory_space<vmem>>, vector<1x8x1xf32>
    %72 = vector.shape_cast %71 : vector<1x8x1xf32> to vector<8x1xf32>
    %73 = vector.shape_cast %70 : vector<8x1xf32> to vector<1x8x1xf32>
    tpu.vector_store %arg19[%c1_45, %c0_46, %c0_47], %73 {strides = array<i32>} : memref<4x8x1xf32, #tpu.memory_space<vmem>>, vector<1x8x1xf32>,
    %cst_48 = arith.constant dense<0.000000e+00> : vector<8x8xf32>
    %74 = tpu.matmul %64, %53, %cst_48 {dimension_numbers = #tpu.dot_dimension_numbers<[1], [0], [0], [1], [0, 0, 1, 1], [], []>} : vector<8x16xf32>, vector<16x8xf32>, vector<8x8xf32> -> vector<8x8xf32>
    %c0_49 = arith.constant 0 : index
    %c8 = arith.constant 8 : index
    %75 = vector.load %arg20[%c0_49, %c8] : memref<8x32xf32, #tpu.memory_space<vmem>>, vector<8x8xf32>
    %76 = vector.broadcast %61 : vector<8x1xf32> to vector<8x8xf32>
    %77 = arith.mulf %76, %75 : vector<8x8xf32>
    %78 = arith.addf %77, %74 : vector<8x8xf32>
    %c0_50 = arith.constant 0 : index
    %c8_51 = arith.constant 8 : index
    %79 = vector.load %arg20[%c0_50, %c8_51] : memref<8x32xf32, #tpu.memory_space<vmem>>, vector<8x8xf32>
    tpu.vector_store %arg20[%c0_50, %c8_51], %78 {strides = array<i32>} : memref<8x32xf32, #tpu.memory_space<vmem>>, vector<8x8xf32>,
    %c1_52 = arith.constant 1 : index
    %c0_53 = arith.constant 0 : index
    %c0_54 = arith.constant 0 : index
    %80 = vector.load %arg18[%c1_52, %c0_53, %c0_54] : memref<4x8x1xf32, #tpu.memory_space<vmem>>, vector<1x8x1xf32>
    %81 = vector.shape_cast %80 : vector<1x8x1xf32> to vector<8x1xf32>
    %82 = vector.shape_cast %59 : vector<8x1xf32> to vector<1x8x1xf32>
    tpu.vector_store %arg18[%c1_52, %c0_53, %c0_54], %82 {strides = array<i32>} : memref<4x8x1xf32, #tpu.memory_space<vmem>>, vector<1x8x1xf32>,
    %83 = vector.extract_strided_slice %18 {offsets = [0, 16], sizes = [8, 8], strides = [1, 1]} : vector<8x32xf32> to vector<8x8xf32>
    %84 = vector.extract_strided_slice %12 {offsets = [0, 16], sizes = [16, 8], strides = [1, 1]} : vector<16x32xf32> to vector<16x8xf32>
    %85 = vector.extract_strided_slice %17 {offsets = [0, 16], sizes = [16, 8], strides = [1, 1]} : vector<16x32xf32> to vector<16x8xf32>
    %cst_55 = arith.constant dense<0.000000e+00> : vector<8x16xf32>
    %86 = tpu.matmul %83, %84, %cst_55 {dimension_numbers = #tpu.dot_dimension_numbers<[1], [1], [0], [0], [0, 0, 1, 0], [], []>} : vector<8x8xf32>, vector<16x8xf32>, vector<8x16xf32> -> vector<8x16xf32>
    %c2 = arith.constant 2 : index
    %c0_56 = arith.constant 0 : index
    %c0_57 = arith.constant 0 : index
    %87 = vector.load %arg18[%c2, %c0_56, %c0_57] : memref<4x8x1xf32, #tpu.memory_space<vmem>>, vector<1x8x1xf32>
    %88 = vector.shape_cast %87 : vector<1x8x1xf32> to vector<8x1xf32>
    %cst_58 = arith.constant dense<0xFF800000> : vector<8xf32>
    %89 = vector.multi_reduction <maximumf>, %86, %cst_58 [1] : vector<8x16xf32> to vector<8xf32>
    %90 = vector.shape_cast %89 : vector<8xf32> to vector<8x1xf32>
    %91 = arith.maximumf %88, %90 : vector<8x1xf32>
    %92 = arith.subf %88, %91 : vector<8x1xf32>
    %93 = math.exp %92 : vector<8x1xf32>
    %94 = vector.broadcast %91 : vector<8x1xf32> to vector<8x16xf32>
    %95 = arith.subf %86, %94 : vector<8x16xf32>
    %96 = math.exp %95 : vector<8x16xf32>
    %c2_59 = arith.constant 2 : index
    %c0_60 = arith.constant 0 : index
    %c0_61 = arith.constant 0 : index
    %97 = vector.load %arg19[%c2_59, %c0_60, %c0_61] : memref<4x8x1xf32, #tpu.memory_space<vmem>>, vector<1x8x1xf32>
    %98 = vector.shape_cast %97 : vector<1x8x1xf32> to vector<8x1xf32>
    %99 = arith.mulf %93, %98 : vector<8x1xf32>
    %cst_62 = arith.constant dense<0.000000e+00> : vector<8xf32>
    %100 = vector.multi_reduction <add>, %96, %cst_62 [1] : vector<8x16xf32> to vector<8xf32>
    %101 = vector.shape_cast %100 : vector<8xf32> to vector<8x1xf32>
    %102 = arith.addf %99, %101 : vector<8x1xf32>
    %c2_63 = arith.constant 2 : index
    %c0_64 = arith.constant 0 : index
    %c0_65 = arith.constant 0 : index
    %103 = vector.load %arg19[%c2_63, %c0_64, %c0_65] : memref<4x8x1xf32, #tpu.memory_space<vmem>>, vector<1x8x1xf32>
    %104 = vector.shape_cast %103 : vector<1x8x1xf32> to vector<8x1xf32>
    %105 = vector.shape_cast %102 : vector<8x1xf32> to vector<1x8x1xf32>
    tpu.vector_store %arg19[%c2_63, %c0_64, %c0_65], %105 {strides = array<i32>} : memref<4x8x1xf32, #tpu.memory_space<vmem>>, vector<1x8x1xf32>,
    %cst_66 = arith.constant dense<0.000000e+00> : vector<8x8xf32>
    %106 = tpu.matmul %96, %85, %cst_66 {dimension_numbers = #tpu.dot_dimension_numbers<[1], [0], [0], [1], [0, 0, 1, 1], [], []>} : vector<8x16xf32>, vector<16x8xf32>, vector<8x8xf32> -> vector<8x8xf32>
    %c0_67 = arith.constant 0 : index
    %c16 = arith.constant 16 : index
    %107 = vector.load %arg20[%c0_67, %c16] : memref<8x32xf32, #tpu.memory_space<vmem>>, vector<8x8xf32>
    %108 = vector.broadcast %93 : vector<8x1xf32> to vector<8x8xf32>
    %109 = arith.mulf %108, %107 : vector<8x8xf32>
    %110 = arith.addf %109, %106 : vector<8x8xf32>
    %c0_68 = arith.constant 0 : index
    %c16_69 = arith.constant 16 : index
    %111 = vector.load %arg20[%c0_68, %c16_69] : memref<8x32xf32, #tpu.memory_space<vmem>>, vector<8x8xf32>
    tpu.vector_store %arg20[%c0_68, %c16_69], %110 {strides = array<i32>} : memref<8x32xf32, #tpu.memory_space<vmem>>, vector<8x8xf32>,
    %c2_70 = arith.constant 2 : index
    %c0_71 = arith.constant 0 : index
    %c0_72 = arith.constant 0 : index
    %112 = vector.load %arg18[%c2_70, %c0_71, %c0_72] : memref<4x8x1xf32, #tpu.memory_space<vmem>>, vector<1x8x1xf32>
    %113 = vector.shape_cast %112 : vector<1x8x1xf32> to vector<8x1xf32>
    %114 = vector.shape_cast %91 : vector<8x1xf32> to vector<1x8x1xf32>
    tpu.vector_store %arg18[%c2_70, %c0_71, %c0_72], %114 {strides = array<i32>} : memref<4x8x1xf32, #tpu.memory_space<vmem>>, vector<1x8x1xf32>,
    %115 = vector.extract_strided_slice %18 {offsets = [0, 24], sizes = [8, 8], strides = [1, 1]} : vector<8x32xf32> to vector<8x8xf32>
    %116 = vector.extract_strided_slice %12 {offsets = [0, 24], sizes = [16, 8], strides = [1, 1]} : vector<16x32xf32> to vector<16x8xf32>
    %117 = vector.extract_strided_slice %17 {offsets = [0, 24], sizes = [16, 8], strides = [1, 1]} : vector<16x32xf32> to vector<16x8xf32>
    %cst_73 = arith.constant dense<0.000000e+00> : vector<8x16xf32>
    %118 = tpu.matmul %115, %116, %cst_73 {dimension_numbers = #tpu.dot_dimension_numbers<[1], [1], [0], [0], [0, 0, 1, 0], [], []>} : vector<8x8xf32>, vector<16x8xf32>, vector<8x16xf32> -> vector<8x16xf32>
    %c3 = arith.constant 3 : index
    %c0_74 = arith.constant 0 : index
    %c0_75 = arith.constant 0 : index
    %119 = vector.load %arg18[%c3, %c0_74, %c0_75] : memref<4x8x1xf32, #tpu.memory_space<vmem>>, vector<1x8x1xf32>
    %120 = vector.shape_cast %119 : vector<1x8x1xf32> to vector<8x1xf32>
    %cst_76 = arith.constant dense<0xFF800000> : vector<8xf32>
    %121 = vector.multi_reduction <maximumf>, %118, %cst_76 [1] : vector<8x16xf32> to vector<8xf32>
    %122 = vector.shape_cast %121 : vector<8xf32> to vector<8x1xf32>
    %123 = arith.maximumf %120, %122 : vector<8x1xf32>
    %124 = arith.subf %120, %123 : vector<8x1xf32>
    %125 = math.exp %124 : vector<8x1xf32>
    %126 = vector.broadcast %123 : vector<8x1xf32> to vector<8x16xf32>
    %127 = arith.subf %118, %126 : vector<8x16xf32>
    %128 = math.exp %127 : vector<8x16xf32>
    %c3_77 = arith.constant 3 : index
    %c0_78 = arith.constant 0 : index
    %c0_79 = arith.constant 0 : index
    %129 = vector.load %arg19[%c3_77, %c0_78, %c0_79] : memref<4x8x1xf32, #tpu.memory_space<vmem>>, vector<1x8x1xf32>
    %130 = vector.shape_cast %129 : vector<1x8x1xf32> to vector<8x1xf32>
    %131 = arith.mulf %125, %130 : vector<8x1xf32>
    %cst_80 = arith.constant dense<0.000000e+00> : vector<8xf32>
    %132 = vector.multi_reduction <add>, %128, %cst_80 [1] : vector<8x16xf32> to vector<8xf32>
    %133 = vector.shape_cast %132 : vector<8xf32> to vector<8x1xf32>
    %134 = arith.addf %131, %133 : vector<8x1xf32>
    %c3_81 = arith.constant 3 : index
    %c0_82 = arith.constant 0 : index
    %c0_83 = arith.constant 0 : index
    %135 = vector.load %arg19[%c3_81, %c0_82, %c0_83] : memref<4x8x1xf32, #tpu.memory_space<vmem>>, vector<1x8x1xf32>
    %136 = vector.shape_cast %135 : vector<1x8x1xf32> to vector<8x1xf32>
    %137 = vector.shape_cast %134 : vector<8x1xf32> to vector<1x8x1xf32>
    tpu.vector_store %arg19[%c3_81, %c0_82, %c0_83], %137 {strides = array<i32>} : memref<4x8x1xf32, #tpu.memory_space<vmem>>, vector<1x8x1xf32>,
    %cst_84 = arith.constant dense<0.000000e+00> : vector<8x8xf32>
    %138 = tpu.matmul %128, %117, %cst_84 {dimension_numbers = #tpu.dot_dimension_numbers<[1], [0], [0], [1], [0, 0, 1, 1], [], []>} : vector<8x16xf32>, vector<16x8xf32>, vector<8x8xf32> -> vector<8x8xf32>
    %c0_85 = arith.constant 0 : index
    %c24 = arith.constant 24 : index
    %139 = vector.load %arg20[%c0_85, %c24] : memref<8x32xf32, #tpu.memory_space<vmem>>, vector<8x8xf32>
    %140 = vector.broadcast %125 : vector<8x1xf32> to vector<8x8xf32>
    %141 = arith.mulf %140, %139 : vector<8x8xf32>
    %142 = arith.addf %141, %138 : vector<8x8xf32>
    %c0_86 = arith.constant 0 : index
    %c24_87 = arith.constant 24 : index
    %143 = vector.load %arg20[%c0_86, %c24_87] : memref<8x32xf32, #tpu.memory_space<vmem>>, vector<8x8xf32>
    tpu.vector_store %arg20[%c0_86, %c24_87], %142 {strides = array<i32>} : memref<8x32xf32, #tpu.memory_space<vmem>>, vector<8x8xf32>,
    %c3_88 = arith.constant 3 : index
    %c0_89 = arith.constant 0 : index
    %c0_90 = arith.constant 0 : index
    %144 = vector.load %arg18[%c3_88, %c0_89, %c0_90] : memref<4x8x1xf32, #tpu.memory_space<vmem>>, vector<1x8x1xf32>
    %145 = vector.shape_cast %144 : vector<1x8x1xf32> to vector<8x1xf32>
    %146 = vector.shape_cast %123 : vector<8x1xf32> to vector<1x8x1xf32>
    tpu.vector_store %arg18[%c3_88, %c0_89, %c0_90], %146 {strides = array<i32>} : memref<4x8x1xf32, #tpu.memory_space<vmem>>, vector<1x8x1xf32>,
    %c3_i32 = arith.constant 3 : i32
    %147 = arith.cmpi eq, %arg1, %c3_i32 : i32
    %148 = arith.extui %147 : i1 to i32
    %c0_i32_91 = arith.constant 0 : i32
    %149 = arith.cmpi ne, %148, %c0_i32_91 : i32
    scf.if %149 {
      %c0_92 = arith.constant 0 : index
      %c0_93 = arith.constant 0 : index
      %c0_94 = arith.constant 0 : index
      %150 = vector.load %arg19[%c0_92, %c0_93, %c0_94] : memref<4x8x1xf32, #tpu.memory_space<vmem>>, vector<4x8x1xf32>
      %151 = tpu.reciprocal %150 : vector<4x8x1xf32> -> vector<4x8x1xf32>
      %c0_95 = arith.constant 0 : index
      %c0_96 = arith.constant 0 : index
      %152 = vector.load %arg20[%c0_95, %c0_96] : memref<8x32xf32, #tpu.memory_space<vmem>>, vector<8x8xf32>
      %153 = vector.extract_strided_slice %151 {offsets = [0, 0, 0], sizes = [1, 8, 1], strides = [1, 1, 1]} : vector<4x8x1xf32> to vector<1x8x1xf32>
      %154 = vector.shape_cast %153 : vector<1x8x1xf32> to vector<8x1xf32>
      %155 = vector.broadcast %154 : vector<8x1xf32> to vector<8x8xf32>
      %156 = arith.mulf %152, %155 : vector<8x8xf32>
      %c0_97 = arith.constant 0 : index
      %c0_98 = arith.constant 0 : index
      %157 = vector.load %arg20[%c0_97, %c0_98] : memref<8x32xf32, #tpu.memory_space<vmem>>, vector<8x8xf32>
      tpu.vector_store %arg20[%c0_97, %c0_98], %156 {strides = array<i32>} : memref<8x32xf32, #tpu.memory_space<vmem>>, vector<8x8xf32>,
      %c0_99 = arith.constant 0 : index
      %c8_100 = arith.constant 8 : index
      %158 = vector.load %arg20[%c0_99, %c8_100] : memref<8x32xf32, #tpu.memory_space<vmem>>, vector<8x8xf32>
      %159 = vector.extract_strided_slice %151 {offsets = [1, 0, 0], sizes = [1, 8, 1], strides = [1, 1, 1]} : vector<4x8x1xf32> to vector<1x8x1xf32>
      %160 = vector.shape_cast %159 : vector<1x8x1xf32> to vector<8x1xf32>
      %161 = vector.broadcast %160 : vector<8x1xf32> to vector<8x8xf32>
      %162 = arith.mulf %158, %161 : vector<8x8xf32>
      %c0_101 = arith.constant 0 : index
      %c8_102 = arith.constant 8 : index
      %163 = vector.load %arg20[%c0_101, %c8_102] : memref<8x32xf32, #tpu.memory_space<vmem>>, vector<8x8xf32>
      tpu.vector_store %arg20[%c0_101, %c8_102], %162 {strides = array<i32>} : memref<8x32xf32, #tpu.memory_space<vmem>>, vector<8x8xf32>,
      %c0_103 = arith.constant 0 : index
      %c16_104 = arith.constant 16 : index
      %164 = vector.load %arg20[%c0_103, %c16_104] : memref<8x32xf32, #tpu.memory_space<vmem>>, vector<8x8xf32>
      %165 = vector.extract_strided_slice %151 {offsets = [2, 0, 0], sizes = [1, 8, 1], strides = [1, 1, 1]} : vector<4x8x1xf32> to vector<1x8x1xf32>
      %166 = vector.shape_cast %165 : vector<1x8x1xf32> to vector<8x1xf32>
      %167 = vector.broadcast %166 : vector<8x1xf32> to vector<8x8xf32>
      %168 = arith.mulf %164, %167 : vector<8x8xf32>
      %c0_105 = arith.constant 0 : index
      %c16_106 = arith.constant 16 : index
      %169 = vector.load %arg20[%c0_105, %c16_106] : memref<8x32xf32, #tpu.memory_space<vmem>>, vector<8x8xf32>
      tpu.vector_store %arg20[%c0_105, %c16_106], %168 {strides = array<i32>} : memref<8x32xf32, #tpu.memory_space<vmem>>, vector<8x8xf32>,
      %c0_107 = arith.constant 0 : index
      %c24_108 = arith.constant 24 : index
      %170 = vector.load %arg20[%c0_107, %c24_108] : memref<8x32xf32, #tpu.memory_space<vmem>>, vector<8x8xf32>
      %171 = vector.extract_strided_slice %151 {offsets = [3, 0, 0], sizes = [1, 8, 1], strides = [1, 1, 1]} : vector<4x8x1xf32> to vector<1x8x1xf32>
      %172 = vector.shape_cast %171 : vector<1x8x1xf32> to vector<8x1xf32>
      %173 = vector.broadcast %172 : vector<8x1xf32> to vector<8x8xf32>
      %174 = arith.mulf %170, %173 : vector<8x8xf32>
      %c0_109 = arith.constant 0 : index
      %c24_110 = arith.constant 24 : index
      %175 = vector.load %arg20[%c0_109, %c24_110] : memref<8x32xf32, #tpu.memory_space<vmem>>, vector<8x8xf32>
      tpu.vector_store %arg20[%c0_109, %c24_110], %174 {strides = array<i32>} : memref<8x32xf32, #tpu.memory_space<vmem>>, vector<8x8xf32>,
      %c0_111 = arith.constant 0 : index
      %c0_112 = arith.constant 0 : index
      %176 = vector.load %arg20[%c0_111, %c0_112] : memref<8x32xf32, #tpu.memory_space<vmem>>, vector<8x32xf32>
      %c0_113 = arith.constant 0 : index
      %c0_114 = arith.constant 0 : index
      %177 = vector.load %arg9[%c0_113, %c0_114] : memref<32x32xf32, #tpu.memory_space<vmem>>, vector<32x32xf32>
      %cst_115 = arith.constant dense<0.000000e+00> : vector<8x32xf32>
      %178 = tpu.matmul %176, %177, %cst_115 {dimension_numbers = #tpu.dot_dimension_numbers<[1], [0], [0], [1], [0, 0, 1, 1], [], []>} : vector<8x32xf32>, vector<32x32xf32>, vector<8x32xf32> -> vector<8x32xf32>
      %c0_116 = arith.constant 0 : index
      %c0_117 = arith.constant 0 : index
      %179 = vector.load %arg13[%c0_116, %c0_117] : memref<1x32xf32, #tpu.memory_space<vmem>>, vector<1x32xf32>
      %180 = vector.broadcast %179 : vector<1x32xf32> to vector<8x32xf32>
      %181 = arith.addf %178, %180 : vector<8x32xf32>
      %c0_118 = arith.constant 0 : index
      %c0_119 = arith.constant 0 : index
      %c0_120 = arith.constant 0 : index
      %182 = vector.load %arg2[%c0_118, %c0_119, %c0_120] : memref<1x8x32xf32, #tpu.memory_space<vmem>>, vector<1x8x32xf32>
      %183 = vector.shape_cast %182 : vector<1x8x32xf32> to vector<8x32xf32>
      %184 = arith.addf %183, %181 : vector<8x32xf32>
      %cst_121 = arith.constant dense<0.000000e+00> : vector<8xf32>
      %185 = vector.multi_reduction <add>, %184, %cst_121 [1] : vector<8x32xf32> to vector<8xf32>
      %186 = vector.shape_cast %185 : vector<8xf32> to vector<8x1xf32>
      %cst_122 = arith.constant 3.200000e+01 : f32
      %187 = vector.broadcast %cst_122 : f32 to vector<8x1xf32>
      %188 = arith.divf %186, %187 : vector<8x1xf32>
      %189 = vector.broadcast %188 : vector<8x1xf32> to vector<8x32xf32>
      %190 = arith.subf %184, %189 : vector<8x32xf32>
      %191 = arith.mulf %190, %190 : vector<8x32xf32>
      %cst_123 = arith.constant dense<0.000000e+00> : vector<8xf32>
      %192 = vector.multi_reduction <add>, %191, %cst_123 [1] : vector<8x32xf32> to vector<8xf32>
      %193 = vector.shape_cast %192 : vector<8xf32> to vector<8x1xf32>
      %cst_124 = arith.constant 3.200000e+01 : f32
      %194 = vector.broadcast %cst_124 : f32 to vector<8x1xf32>
      %195 = arith.divf %193, %194 : vector<8x1xf32>
      %cst_125 = arith.constant 9.99999974E-6 : f32
      %196 = vector.broadcast %cst_125 : f32 to vector<8x1xf32>
      %197 = arith.addf %195, %196 : vector<8x1xf32>
      %198 = math.rsqrt %197 : vector<8x1xf32>
      %199 = vector.broadcast %198 : vector<8x1xf32> to vector<8x32xf32>
      %200 = arith.mulf %190, %199 : vector<8x32xf32>
      %c0_126 = arith.constant 0 : index
      %c0_127 = arith.constant 0 : index
      %201 = vector.load %arg14[%c0_126, %c0_127] : memref<1x32xf32, #tpu.memory_space<vmem>>, vector<1x32xf32>
      %202 = vector.broadcast %201 : vector<1x32xf32> to vector<8x32xf32>
      %203 = arith.mulf %200, %202 : vector<8x32xf32>
      %c0_128 = arith.constant 0 : index
      %c0_129 = arith.constant 0 : index
      %204 = vector.load %arg15[%c0_128, %c0_129] : memref<1x32xf32, #tpu.memory_space<vmem>>, vector<1x32xf32>
      %205 = vector.broadcast %204 : vector<1x32xf32> to vector<8x32xf32>
      %206 = arith.addf %203, %205 : vector<8x32xf32>
      %c0_130 = arith.constant 0 : index
      %c0_131 = arith.constant 0 : index
      %c0_132 = arith.constant 0 : index
      %207 = vector.load %arg16[%c0_130, %c0_131, %c0_132] : memref<1x8x32xf32, #tpu.memory_space<vmem>>, vector<1x8x32xf32>
      %208 = vector.shape_cast %207 : vector<1x8x32xf32> to vector<8x32xf32>
      %209 = vector.shape_cast %206 : vector<8x32xf32> to vector<1x8x32xf32>
      tpu.vector_store %arg16[%c0_130, %c0_131, %c0_132], %209 {strides = array<i32>} : memref<1x8x32xf32, #tpu.memory_space<vmem>>, vector<1x8x32xf32>,
    } else {
    }
    return
  }
  func.func @transform_0(%arg0: i32, %arg1: i32) -> (i32, i32, i32) {
    %c0_i32 = arith.constant 0 : i32
    %c0_i32_0 = arith.constant 0 : i32
    %c0_i32_1 = arith.constant 0 : i32
    return %arg0, %c0_i32, %c0_i32_0 : i32, i32, i32
  }
  func.func @transform_1(%arg0: i32, %arg1: i32) -> (i32, i32, i32) {
    %c0_i32 = arith.constant 0 : i32
    %c0_i32_0 = arith.constant 0 : i32
    %c0_i32_1 = arith.constant 0 : i32
    return %arg0, %c0_i32, %c0_i32_0 : i32, i32, i32
  }
  func.func @transform_2(%arg0: i32, %arg1: i32) -> (i32, i32, i32) {
    %c0_i32 = arith.constant 0 : i32
    %c0_i32_0 = arith.constant 0 : i32
    return %arg0, %arg1, %c0_i32 : i32, i32, i32
  }
  func.func @transform_3(%arg0: i32, %arg1: i32) -> (i32, i32, i32) {
    %c0_i32 = arith.constant 0 : i32
    %c0_i32_0 = arith.constant 0 : i32
    return %arg0, %arg1, %c0_i32 : i32, i32, i32
  }
  func.func @transform_4(%arg0: i32, %arg1: i32) -> (i32, i32) {
    %c0_i32 = arith.constant 0 : i32
    %c0_i32_0 = arith.constant 0 : i32
    %c0_i32_1 = arith.constant 0 : i32
    return %c0_i32, %c0_i32_0 : i32, i32
  }
  func.func @transform_5(%arg0: i32, %arg1: i32) -> (i32, i32) {
    %c0_i32 = arith.constant 0 : i32
    %c0_i32_0 = arith.constant 0 : i32
    %c0_i32_1 = arith.constant 0 : i32
    return %c0_i32, %c0_i32_0 : i32, i32
  }
  func.func @transform_6(%arg0: i32, %arg1: i32) -> (i32, i32) {
    %c0_i32 = arith.constant 0 : i32
    %c0_i32_0 = arith.constant 0 : i32
    %c0_i32_1 = arith.constant 0 : i32
    return %c0_i32, %c0_i32_0 : i32, i32
  }
  func.func @transform_7(%arg0: i32, %arg1: i32) -> (i32, i32) {
    %c0_i32 = arith.constant 0 : i32
    %c0_i32_0 = arith.constant 0 : i32
    %c0_i32_1 = arith.constant 0 : i32
    return %c0_i32, %c0_i32_0 : i32, i32
  }
  func.func @transform_8(%arg0: i32, %arg1: i32) -> (i32, i32) {
    %c0_i32 = arith.constant 0 : i32
    %c0_i32_0 = arith.constant 0 : i32
    %c0_i32_1 = arith.constant 0 : i32
    return %c0_i32, %c0_i32_0 : i32, i32
  }
  func.func @transform_9(%arg0: i32, %arg1: i32) -> (i32, i32) {
    %c0_i32 = arith.constant 0 : i32
    %c0_i32_0 = arith.constant 0 : i32
    %c0_i32_1 = arith.constant 0 : i32
    return %c0_i32, %c0_i32_0 : i32, i32
  }
  func.func @transform_10(%arg0: i32, %arg1: i32) -> (i32, i32) {
    %c0_i32 = arith.constant 0 : i32
    %c0_i32_0 = arith.constant 0 : i32
    %c0_i32_1 = arith.constant 0 : i32
    return %c0_i32, %c0_i32_0 : i32, i32
  }
  func.func @transform_11(%arg0: i32, %arg1: i32) -> (i32, i32) {
    %c0_i32 = arith.constant 0 : i32
    %c0_i32_0 = arith.constant 0 : i32
    %c0_i32_1 = arith.constant 0 : i32
    return %c0_i32, %c0_i32_0 : i32, i32
  }
  func.func @transform_12(%arg0: i32, %arg1: i32) -> (i32, i32) {
    %c0_i32 = arith.constant 0 : i32
    %c0_i32_0 = arith.constant 0 : i32
    %c0_i32_1 = arith.constant 0 : i32
    return %c0_i32, %c0_i32_0 : i32, i32
  }
  func.func @transform_13(%arg0: i32, %arg1: i32) -> (i32, i32) {
    %c0_i32 = arith.constant 0 : i32
    %c0_i32_0 = arith.constant 0 : i32
    %c0_i32_1 = arith.constant 0 : i32
    return %c0_i32, %c0_i32_0 : i32, i32
  }
  func.func @transform_14(%arg0: i32, %arg1: i32) -> (i32, i32, i32) {
    %c0_i32 = arith.constant 0 : i32
    %c0_i32_0 = arith.constant 0 : i32
    %c0_i32_1 = arith.constant 0 : i32
    return %arg0, %c0_i32, %c0_i32_0 : i32, i32, i32
  }
}

</mosaic_0001>

<llo_original>
// kernel: tpu_custom_call.1
$region0: #{tpu_custom_call.1}
  #allocation0 [shape = 'u32[]', space=smem, size = 0x4, offset = 0x4, fixed_abs, tag = 'smem constant byte address 0x4 - core index']
  #allocation1 [shape = 'u32[144,128]{1,0:T(1,128)}', space=vmem, size = 0x12000, scoped, tag = 'internal scratch']
  #allocation2 [shape = 'f32[8,32]{1,0:T(8,128)}', space=vmem, size = 0x1000, scoped, tag = 'scratch operand']
  #allocation3 [shape = 'f32[4,8,1]{2,1,0:T(8,128)}', space=vmem, size = 0x4000, scoped, tag = 'scratch operand']
  #allocation4 [shape = 'f32[4,8,1]{2,1,0:T(8,128)}', space=vmem, size = 0x4000, scoped, tag = 'scratch operand']
  #allocation5 [shape = 'f32[8,32]{1,0:T(8,128)}', space=vmem, size = 0x1000, scoped, tag = 'scratch operand']
  %s0 = inlined_call_operand.vmem [shape: f32[2,8,32], index: 0, kind: input, shape index: {}]
  %s1 = inlined_call_operand.vmem [shape: f32[2,8,32], index: 1, kind: input, shape index: {}]
  %s2 = inlined_call_operand.vmem [shape: f32[2,64,32], index: 2, kind: input, shape index: {}]
  %s3 = inlined_call_operand.vmem [shape: f32[2,64,32], index: 3, kind: input, shape index: {}]
  %s4 = inlined_call_operand.vmem [shape: f32[32,32], index: 4, kind: input, shape index: {}]
  %s5 = inlined_call_operand.vmem [shape: f32[32,32], index: 5, kind: input, shape index: {}]
  %s6 = inlined_call_operand.vmem [shape: f32[32,32], index: 6, kind: input, shape index: {}]
  %s7 = inlined_call_operand.vmem [shape: f32[32,32], index: 7, kind: input, shape index: {}]
  %s8 = inlined_call_operand.vmem [shape: f32[1,32], index: 8, kind: input, shape index: {}]
  %s9 = inlined_call_operand.vmem [shape: f32[1,32], index: 9, kind: input, shape index: {}]
  %s10 = inlined_call_operand.vmem [shape: f32[1,32], index: 10, kind: input, shape index: {}]
  %s11 = inlined_call_operand.vmem [shape: f32[1,32], index: 11, kind: input, shape index: {}]
  %s12 = inlined_call_operand.vmem [shape: f32[1,32], index: 12, kind: input, shape index: {}]
  %s13 = inlined_call_operand.vmem [shape: f32[1,32], index: 13, kind: input, shape index: {}]
  %s14 = inlined_call_operand.hbm [shape: f32[2,8,32], index: 14, kind: output, shape index: {}]
  %s15 = sld [smem:[#allocation0]]
  $region97: #{tpu_custom_call.1} parent=0
    _
  %s17 = ssub.s32 1, %s15
  %s18 = scalar_select 0, %s17, %s15
  $region1: #{tpu_custom_call.1} parent=0
    #allocation6 [shape = 'u8[8192]{0}', space=vmem, size = 0x2000, scoped, tag = 'output window, operand 0']
    #allocation7 [shape = 's32[2]{0}', space=sflag, size = 0x8, scoped, tag = 'scoped memory for tpu_custom_call.1']
    %19 = vsyncpa [#allocation7], 0
    %s20 = scalar_lea.sflag [#allocation7], 1
    %21 = vsyncpa %s20, 0
    loop: start=0, step=1, limit=10
    $region2: #{tpu_custom_call.1} parent=1 // loop_pre_header
      _
    $region3: #{tpu_custom_call.1} parent=1 // loop_header
      %s23 = sphi 0, %s27
      %p24 = scmp.ge.s32.totalorder %s23, 10
      %s30 = sphi 0, %s42
      %s31 = sphi 0, %s38
      %s32 = sphi 0, %s30
      %s33 = sphi 0, %s31
      %s34 = sphi 0, %s32
      %s35 = sphi 0, %s33
      %s45 = sphi 0, %s47
      %s48 = sphi 0, %s45
      %s49 = sphi 0, %s48
      %s65 = sphi 0, %s49
      %s71 = sphi 0, %s73
      %s74 = sphi 0, %s71
      %s75 = sphi 0, %s74
      %s91 = sphi 0, %s75
      %s99 = sphi 0, %s101
      %s102 = sphi 0, %s99
      %s103 = sphi 0, %s102
      %s119 = sphi 0, %s103
      %s127 = sphi 0, %s129
      %s130 = sphi 0, %s127
      %s131 = sphi 0, %s130
      %s147 = sphi 0, %s131
      %s151 = sphi 0, %s151
      %s153 = sphi 0, %s151
      %s154 = sphi 0, %s153
      %s168 = sphi 0, %s154
      %s172 = sphi 0, %s172
      %s174 = sphi 0, %s172
      %s175 = sphi 0, %s174
      %s189 = sphi 0, %s175
      %s193 = sphi 0, %s193
      %s195 = sphi 0, %s193
      %s196 = sphi 0, %s195
      %s210 = sphi 0, %s196
      %s214 = sphi 0, %s214
      %s216 = sphi 0, %s214
      %s217 = sphi 0, %s216
      %s231 = sphi 0, %s217
      %s235 = sphi 0, %s235
      %s237 = sphi 0, %s235
      %s238 = sphi 0, %s237
      %s252 = sphi 0, %s238
      %s256 = sphi 0, %s256
      %s258 = sphi 0, %s256
      %s259 = sphi 0, %s258
      %s273 = sphi 0, %s259
      %s277 = sphi 0, %s277
      %s279 = sphi 0, %s277
      %s280 = sphi 0, %s279
      %s294 = sphi 0, %s280
      %s298 = sphi 0, %s298
      %s300 = sphi 0, %s298
      %s301 = sphi 0, %s300
      %s315 = sphi 0, %s301
      %s319 = sphi 0, %s319
      %s321 = sphi 0, %s319
      %s322 = sphi 0, %s321
      %s336 = sphi 0, %s322
      %s340 = sphi 0, %s340
      %s342 = sphi 0, %s340
      %s343 = sphi 0, %s342
      %s357 = sphi 0, %s343
      %s363 = sphi 0, %s365
      %s366 = sphi 0, %s363
      %s367 = sphi 0, %s366
      %s383 = sphi 0, %s367
    $region4: #{tpu_custom_call.1} parent=1 // loop_header_branch
      %26 = sbr.rel (%p24) target = $region8
    $region5: #{tpu_custom_call.1} parent=1 // loop_body
      %s28 = ssub.s32 %s23, 1
      %s29 = ssub.s32 %s23, 2
      %s36 = sadd.s32 1, %s31
      %p37 = scmp.ge.s32.totalorder %s36, 4
      %s38 = scalar_select %p37, 0, %s36
      %s39 = sadd.s32 1, %s30
      %s40 = scalar_select %p37, %s39, %s30
      %p41 = scmp.ge.s32.totalorder %s40, 2
      %s42 = scalar_select %p41, 0, %s40
      %s43 = ssub.s32 %s30, %s42
      %p44 = scmp.eq.s32.totalorder %s43, 0
      %s46 = sadd.s32 %s45, 1
      %s47 = scalar_select %p44, %s45, %s46
      %p50 = pneg %p44
      %p51 = scmp.eq.s32.totalorder %s23, 7
      %p52 = por %p50, %p51
      %p53 = scmp.ne.s32.totalorder %s45, %s48
      %p54 = scmp.eq.s32.totalorder %s23, 0
      %p55 = por %p53, %p54
      %p56 = scmp.ne.s32.totalorder %s45, %s48
      %p57 = scmp.eq.s32.totalorder %s28, 7
      %p58 = por %p56, %p57
      %p59 = scmp.ne.s32.totalorder %s48, %s49
      %p60 = scmp.eq.s32.totalorder %s28, 0
      %p61 = por %p59, %p60
      %p62 = scmp.ne.s32.totalorder %s48, %s49
      %p63 = scmp.eq.s32.totalorder %s29, 7
      %p64 = por %p62, %p63
      %p66 = scmp.ne.s32.totalorder %s49, %s65
      %p67 = scmp.eq.s32.totalorder %s29, 0
      %p68 = por %p66, %p67
      %s69 = ssub.s32 %s30, %s42
      %p70 = scmp.eq.s32.totalorder %s69, 0
      %s72 = sadd.s32 %s71, 1
      %s73 = scalar_select %p70, %s71, %s72
      %p76 = pneg %p70
      %p77 = scmp.eq.s32.totalorder %s23, 7
      %p78 = por %p76, %p77
      %p79 = scmp.ne.s32.totalorder %s71, %s74
      %p80 = scmp.eq.s32.totalorder %s23, 0
      %p81 = por %p79, %p80
      %p82 = scmp.ne.s32.totalorder %s71, %s74
      %p83 = scmp.eq.s32.totalorder %s28, 7
      %p84 = por %p82, %p83
      %p85 = scmp.ne.s32.totalorder %s74, %s75
      %p86 = scmp.eq.s32.totalorder %s28, 0
      %p87 = por %p85, %p86
      %p88 = scmp.ne.s32.totalorder %s74, %s75
      %p89 = scmp.eq.s32.totalorder %s29, 7
      %p90 = por %p88, %p89
      %p92 = scmp.ne.s32.totalorder %s75, %s91
      %p93 = scmp.eq.s32.totalorder %s29, 0
      %p94 = por %p92, %p93
      %s95 = ssub.s32 %s30, %s42
      %s96 = ssub.s32 %s31, %s38
      %s97 = sor.u32 %s95, %s96
      %p98 = scmp.eq.s32.totalorder %s97, 0
      %s100 = sadd.s32 %s99, 1
      %s101 = scalar_select %p98, %s99, %s100
      %p104 = pneg %p98
      %p105 = scmp.eq.s32.totalorder %s23, 7
      %p106 = por %p104, %p105
      %p107 = scmp.ne.s32.totalorder %s99, %s102
      %p108 = scmp.eq.s32.totalorder %s23, 0
      %p109 = por %p107, %p108
      %p110 = scmp.ne.s32.totalorder %s99, %s102
      %p111 = scmp.eq.s32.totalorder %s28, 7
      %p112 = por %p110, %p111
      %p113 = scmp.ne.s32.totalorder %s102, %s103
      %p114 = scmp.eq.s32.totalorder %s28, 0
      %p115 = por %p113, %p114
      %p116 = scmp.ne.s32.totalorder %s102, %s103
      %p117 = scmp.eq.s32.totalorder %s29, 7
      %p118 = por %p116, %p117
      %p120 = scmp.ne.s32.totalorder %s103, %s119
      %p121 = scmp.eq.s32.totalorder %s29, 0
      %p122 = por %p120, %p121
      %s123 = ssub.s32 %s30, %s42
      %s124 = ssub.s32 %s31, %s38
      %s125 = sor.u32 %s123, %s124
      %p126 = scmp.eq.s32.totalorder %s125, 0
      %s128 = sadd.s32 %s127, 1
      %s129 = scalar_select %p126, %s127, %s128
      %p132 = pneg %p126
      %p133 = scmp.eq.s32.totalorder %s23, 7
      %p134 = por %p132, %p133
      %p135 = scmp.ne.s32.totalorder %s127, %s130
      %p136 = scmp.eq.s32.totalorder %s23, 0
      %p137 = por %p135, %p136
      %p138 = scmp.ne.s32.totalorder %s127, %s130
      %p139 = scmp.eq.s32.totalorder %s28, 7
      %p140 = por %p138, %p139
      %p141 = scmp.ne.s32.totalorder %s130, %s131
      %p142 = scmp.eq.s32.totalorder %s28, 0
      %p143 = por %p141, %p142
      %p144 = scmp.ne.s32.totalorder %s130, %s131
      %p145 = scmp.eq.s32.totalorder %s29, 7
      %p146 = por %p144, %p145
      %p148 = scmp.ne.s32.totalorder %s131, %s147
      %p149 = scmp.eq.s32.totalorder %s29, 0
      %p150 = por %p148, %p149
      %s152 = sadd.s32 %s151, 1
      %p155 = scmp.eq.s32.totalorder %s23, 7
      %p156 = scmp.ne.s32.totalorder %s151, %s153
      %p157 = scmp.eq.s32.totalorder %s23, 0
      %p158 = por %p156, %p157
      %p159 = scmp.ne.s32.totalorder %s151, %s153
      %p160 = scmp.eq.s32.totalorder %s28, 7
      %p161 = por %p159, %p160
      %p162 = scmp.ne.s32.totalorder %s153, %s154
      %p163 = scmp.eq.s32.totalorder %s28, 0
      %p164 = por %p162, %p163
      %p165 = scmp.ne.s32.totalorder %s153, %s154
      %p166 = scmp.eq.s32.totalorder %s29, 7
      %p167 = por %p165, %p166
      %p169 = scmp.ne.s32.totalorder %s154, %s168
      %p170 = scmp.eq.s32.totalorder %s29, 0
      %p171 = por %p169, %p170
      %s173 = sadd.s32 %s172, 1
      %p176 = scmp.eq.s32.totalorder %s23, 7
      %p177 = scmp.ne.s32.totalorder %s172, %s174
      %p178 = scmp.eq.s32.totalorder %s23, 0
      %p179 = por %p177, %p178
      %p180 = scmp.ne.s32.totalorder %s172, %s174
      %p181 = scmp.eq.s32.totalorder %s28, 7
      %p182 = por %p180, %p181
      %p183 = scmp.ne.s32.totalorder %s174, %s175
      %p184 = scmp.eq.s32.totalorder %s28, 0
      %p185 = por %p183, %p184
      %p186 = scmp.ne.s32.totalorder %s174, %s175
      %p187 = scmp.eq.s32.totalorder %s29, 7
      %p188 = por %p186, %p187
      %p190 = scmp.ne.s32.totalorder %s175, %s189
      %p191 = scmp.eq.s32.totalorder %s29, 0
      %p192 = por %p190, %p191
      %s194 = sadd.s32 %s193, 1
      %p197 = scmp.eq.s32.totalorder %s23, 7
      %p198 = scmp.ne.s32.totalorder %s193, %s195
      %p199 = scmp.eq.s32.totalorder %s23, 0
      %p200 = por %p198, %p199
      %p201 = scmp.ne.s32.totalorder %s193, %s195
      %p202 = scmp.eq.s32.totalorder %s28, 7
      %p203 = por %p201, %p202
      %p204 = scmp.ne.s32.totalorder %s195, %s196
      %p205 = scmp.eq.s32.totalorder %s28, 0
      %p206 = por %p204, %p205
      %p207 = scmp.ne.s32.totalorder %s195, %s196
      %p208 = scmp.eq.s32.totalorder %s29, 7
      %p209 = por %p207, %p208
      %p211 = scmp.ne.s32.totalorder %s196, %s210
      %p212 = scmp.eq.s32.totalorder %s29, 0
      %p213 = por %p211, %p212
      %s215 = sadd.s32 %s214, 1
      %p218 = scmp.eq.s32.totalorder %s23, 7
      %p219 = scmp.ne.s32.totalorder %s214, %s216
      %p220 = scmp.eq.s32.totalorder %s23, 0
      %p221 = por %p219, %p220
      %p222 = scmp.ne.s32.totalorder %s214, %s216
      %p223 = scmp.eq.s32.totalorder %s28, 7
      %p224 = por %p222, %p223
      %p225 = scmp.ne.s32.totalorder %s216, %s217
      %p226 = scmp.eq.s32.totalorder %s28, 0
      %p227 = por %p225, %p226
      %p228 = scmp.ne.s32.totalorder %s216, %s217
      %p229 = scmp.eq.s32.totalorder %s29, 7
      %p230 = por %p228, %p229
      %p232 = scmp.ne.s32.totalorder %s217, %s231
      %p233 = scmp.eq.s32.totalorder %s29, 0
      %p234 = por %p232, %p233
      %s236 = sadd.s32 %s235, 1
      %p239 = scmp.eq.s32.totalorder %s23, 7
      %p240 = scmp.ne.s32.totalorder %s235, %s237
      %p241 = scmp.eq.s32.totalorder %s23, 0
      %p242 = por %p240, %p241
      %p243 = scmp.ne.s32.totalorder %s235, %s237
      %p244 = scmp.eq.s32.totalorder %s28, 7
      %p245 = por %p243, %p244
      %p246 = scmp.ne.s32.totalorder %s237, %s238
      %p247 = scmp.eq.s32.totalorder %s28, 0
      %p248 = por %p246, %p247
      %p249 = scmp.ne.s32.totalorder %s237, %s238
      %p250 = scmp.eq.s32.totalorder %s29, 7
      %p251 = por %p249, %p250
      %p253 = scmp.ne.s32.totalorder %s238, %s252
      %p254 = scmp.eq.s32.totalorder %s29, 0
      %p255 = por %p253, %p254
      %s257 = sadd.s32 %s256, 1
      %p260 = scmp.eq.s32.totalorder %s23, 7
      %p261 = scmp.ne.s32.totalorder %s256, %s258
      %p262 = scmp.eq.s32.totalorder %s23, 0
      %p263 = por %p261, %p262
      %p264 = scmp.ne.s32.totalorder %s256, %s258
      %p265 = scmp.eq.s32.totalorder %s28, 7
      %p266 = por %p264, %p265
      %p267 = scmp.ne.s32.totalorder %s258, %s259
      %p268 = scmp.eq.s32.totalorder %s28, 0
      %p269 = por %p267, %p268
      %p270 = scmp.ne.s32.totalorder %s258, %s259
      %p271 = scmp.eq.s32.totalorder %s29, 7
      %p272 = por %p270, %p271
      %p274 = scmp.ne.s32.totalorder %s259, %s273
      %p275 = scmp.eq.s32.totalorder %s29, 0
      %p276 = por %p274, %p275
      %s278 = sadd.s32 %s277, 1
      %p281 = scmp.eq.s32.totalorder %s23, 7
      %p282 = scmp.ne.s32.totalorder %s277, %s279
      %p283 = scmp.eq.s32.totalorder %s23, 0
      %p284 = por %p282, %p283
      %p285 = scmp.ne.s32.totalorder %s277, %s279
      %p286 = scmp.eq.s32.totalorder %s28, 7
      %p287 = por %p285, %p286
      %p288 = scmp.ne.s32.totalorder %s279, %s280
      %p289 = scmp.eq.s32.totalorder %s28, 0
      %p290 = por %p288, %p289
      %p291 = scmp.ne.s32.totalorder %s279, %s280
      %p292 = scmp.eq.s32.totalorder %s29, 7
      %p293 = por %p291, %p292
      %p295 = scmp.ne.s32.totalorder %s280, %s294
      %p296 = scmp.eq.s32.totalorder %s29, 0
      %p297 = por %p295, %p296
      %s299 = sadd.s32 %s298, 1
      %p302 = scmp.eq.s32.totalorder %s23, 7
      %p303 = scmp.ne.s32.totalorder %s298, %s300
      %p304 = scmp.eq.s32.totalorder %s23, 0
      %p305 = por %p303, %p304
      %p306 = scmp.ne.s32.totalorder %s298, %s300
      %p307 = scmp.eq.s32.totalorder %s28, 7
      %p308 = por %p306, %p307
      %p309 = scmp.ne.s32.totalorder %s300, %s301
      %p310 = scmp.eq.s32.totalorder %s28, 0
      %p311 = por %p309, %p310
      %p312 = scmp.ne.s32.totalorder %s300, %s301
      %p313 = scmp.eq.s32.totalorder %s29, 7
      %p314 = por %p312, %p313
      %p316 = scmp.ne.s32.totalorder %s301, %s315
      %p317 = scmp.eq.s32.totalorder %s29, 0
      %p318 = por %p316, %p317
      %s320 = sadd.s32 %s319, 1
      %p323 = scmp.eq.s32.totalorder %s23, 7
      %p324 = scmp.ne.s32.totalorder %s319, %s321
      %p325 = scmp.eq.s32.totalorder %s23, 0
      %p326 = por %p324, %p325
      %p327 = scmp.ne.s32.totalorder %s319, %s321
      %p328 = scmp.eq.s32.totalorder %s28, 7
      %p329 = por %p327, %p328
      %p330 = scmp.ne.s32.totalorder %s321, %s322
      %p331 = scmp.eq.s32.totalorder %s28, 0
      %p332 = por %p330, %p331
      %p333 = scmp.ne.s32.totalorder %s321, %s322
      %p334 = scmp.eq.s32.totalorder %s29, 7
      %p335 = por %p333, %p334
      %p337 = scmp.ne.s32.totalorder %s322, %s336
      %p338 = scmp.eq.s32.totalorder %s29, 0
      %p339 = por %p337, %p338
      %s341 = sadd.s32 %s340, 1
      %p344 = scmp.eq.s32.totalorder %s23, 7
      %p345 = scmp.ne.s32.totalorder %s340, %s342
      %p346 = scmp.eq.s32.totalorder %s23, 0
      %p347 = por %p345, %p346
      %p348 = scmp.ne.s32.totalorder %s340, %s342
      %p349 = scmp.eq.s32.totalorder %s28, 7
      %p350 = por %p348, %p349
      %p351 = scmp.ne.s32.totalorder %s342, %s343
      %p352 = scmp.eq.s32.totalorder %s28, 0
      %p353 = por %p351, %p352
      %p354 = scmp.ne.s32.totalorder %s342, %s343
      %p355 = scmp.eq.s32.totalorder %s29, 7
      %p356 = por %p354, %p355
      %p358 = scmp.ne.s32.totalorder %s343, %s357
      %p359 = scmp.eq.s32.totalorder %s29, 0
      %p360 = por %p358, %p359
      %s361 = ssub.s32 %s30, %s42
      %p362 = scmp.eq.s32.totalorder %s361, 0
      %s364 = sadd.s32 %s363, 1
      %s365 = scalar_select %p362, %s363, %s364
      %p368 = pneg %p362
      %p369 = scmp.eq.s32.totalorder %s23, 7
      %p370 = por %p368, %p369
      %p371 = scmp.ne.s32.totalorder %s363, %s366
      %p372 = scmp.eq.s32.totalorder %s23, 0
      %p373 = por %p371, %p372
      %p374 = scmp.ne.s32.totalorder %s363, %s366
      %p375 = scmp.eq.s32.totalorder %s28, 7
      %p376 = por %p374, %p375
      %p377 = scmp.ne.s32.totalorder %s366, %s367
      %p378 = scmp.eq.s32.totalorder %s28, 0
      %p379 = por %p377, %p378
      %p380 = scmp.ne.s32.totalorder %s366, %s367
      %p381 = scmp.eq.s32.totalorder %s29, 7
      %p382 = por %p380, %p381
      %p384 = scmp.ne.s32.totalorder %s367, %s383
      %p385 = scmp.eq.s32.totalorder %s29, 0
      %p386 = por %p384, %p385
      %p387 = scmp.le.s32.totalorder 1, %s23
      %p388 = scmp.lt.s32.totalorder %s23, 9
      %p389 = pnand %p387, %p388
      %p390 = pneg %p389
      // Predicated region
      $region9: #{tpu_custom_call.1} parent=5 // pred_check
        _
      $region10: #{tpu_custom_call.1} parent=5 // pred_check_branch
        %392 = sbr.rel (%p389) target = $region12
      $region11: #{tpu_custom_call.1} parent=5 // pred_region
        %s393 = ssub.s32 %s23, 1
        // Predicated region
        $region13: #{tpu_custom_call.1} parent=11 // pred_check
          %p394 = pneg %p164
        $region14: #{tpu_custom_call.1} parent=11 // pred_check_branch
          %396 = sbr.rel (%p394) target = $region16
        $region15: #{tpu_custom_call.1} parent=11 // pred_region
          _
        $region16: #{tpu_custom_call.1} parent=11 // pred_fallthru
          _
        // Predicated region
        $region17: #{tpu_custom_call.1} parent=11 // pred_check
          %p397 = pneg %p185
        $region18: #{tpu_custom_call.1} parent=11 // pred_check_branch
          %399 = sbr.rel (%p397) target = $region20
        $region19: #{tpu_custom_call.1} parent=11 // pred_region
          _
        $region20: #{tpu_custom_call.1} parent=11 // pred_fallthru
          _
        // Predicated region
        $region21: #{tpu_custom_call.1} parent=11 // pred_check
          %p400 = pneg %p206
        $region22: #{tpu_custom_call.1} parent=11 // pred_check_branch
          %402 = sbr.rel (%p400) target = $region24
        $region23: #{tpu_custom_call.1} parent=11 // pred_region
          _
        $region24: #{tpu_custom_call.1} parent=11 // pred_fallthru
          _
        // Predicated region
        $region25: #{tpu_custom_call.1} parent=11 // pred_check
          %p403 = pneg %p227
        $region26: #{tpu_custom_call.1} parent=11 // pred_check_branch
          %405 = sbr.rel (%p403) target = $region28
        $region27: #{tpu_custom_call.1} parent=11 // pred_region
          _
        $region28: #{tpu_custom_call.1} parent=11 // pred_fallthru
          _
        // Predicated region
        $region29: #{tpu_custom_call.1} parent=11 // pred_check
          %p406 = pneg %p248
        $region30: #{tpu_custom_call.1} parent=11 // pred_check_branch
          %408 = sbr.rel (%p406) target = $region32
        $region31: #{tpu_custom_call.1} parent=11 // pred_region
          _
        $region32: #{tpu_custom_call.1} parent=11 // pred_fallthru
          _
        // Predicated region
        $region33: #{tpu_custom_call.1} parent=11 // pred_check
          %p409 = pneg %p269
        $region34: #{tpu_custom_call.1} parent=11 // pred_check_branch
          %411 = sbr.rel (%p409) target = $region36
        $region35: #{tpu_custom_call.1} parent=11 // pred_region
          _
        $region36: #{tpu_custom_call.1} parent=11 // pred_fallthru
          _
        // Predicated region
        $region37: #{tpu_custom_call.1} parent=11 // pred_check
          %p412 = pneg %p290
        $region38: #{tpu_custom_call.1} parent=11 // pred_check_branch
          %414 = sbr.rel (%p412) target = $region40
        $region39: #{tpu_custom_call.1} parent=11 // pred_region
          _
        $region40: #{tpu_custom_call.1} parent=11 // pred_fallthru
          _
        // Predicated region
        $region41: #{tpu_custom_call.1} parent=11 // pred_check
          %p415 = pneg %p311
        $region42: #{tpu_custom_call.1} parent=11 // pred_check_branch
          %417 = sbr.rel (%p415) target = $region44
        $region43: #{tpu_custom_call.1} parent=11 // pred_region
          _
        $region44: #{tpu_custom_call.1} parent=11 // pred_fallthru
          _
        // Predicated region
        $region45: #{tpu_custom_call.1} parent=11 // pred_check
          %p418 = pneg %p332
        $region46: #{tpu_custom_call.1} parent=11 // pred_check_branch
          %420 = sbr.rel (%p418) target = $region48
        $region47: #{tpu_custom_call.1} parent=11 // pred_region
          _
        $region48: #{tpu_custom_call.1} parent=11 // pred_fallthru
          _
        // Predicated region
        $region49: #{tpu_custom_call.1} parent=11 // pred_check
          %p421 = pneg %p353
        $region50: #{tpu_custom_call.1} parent=11 // pred_check_branch
          %423 = sbr.rel (%p421) target = $region52
        $region51: #{tpu_custom_call.1} parent=11 // pred_region
          _
        $region52: #{tpu_custom_call.1} parent=11 // pred_fallthru
          _
      $region12: #{tpu_custom_call.1} parent=5 // pred_fallthru
        _
      %p424 = scmp.lt.s32.totalorder %s23, 8
      // Predicated region
      $region53: #{tpu_custom_call.1} parent=5 // pred_check
        %p425 = pneg %p424
      $region54: #{tpu_custom_call.1} parent=5 // pred_check_branch
        %427 = sbr.rel (%p425) target = $region56
      $region55: #{tpu_custom_call.1} parent=5 // pred_region
        // Predicated region
        $region57: #{tpu_custom_call.1} parent=55 // pred_check
          %p428 = pneg %p55
        $region58: #{tpu_custom_call.1} parent=55 // pred_check_branch
          %430 = sbr.rel (%p428) target = $region60
        $region59: #{tpu_custom_call.1} parent=55 // pred_region
          %p431 = scmp.lt.s32.totalorder %s30, 1
          %s432 = scalar_select %p431, %s30, 1
          %s433 = smul.addr %s432, 8
          %s434 = scalar_lea.vmem %s0, %s433
        $region60: #{tpu_custom_call.1} parent=55 // pred_fallthru
          _
        // Predicated region
        $region61: #{tpu_custom_call.1} parent=55 // pred_check
          %p435 = pneg %p81
        $region62: #{tpu_custom_call.1} parent=55 // pred_check_branch
          %437 = sbr.rel (%p435) target = $region64
        $region63: #{tpu_custom_call.1} parent=55 // pred_region
          %p438 = scmp.lt.s32.totalorder %s30, 1
          %s439 = scalar_select %p438, %s30, 1
          %s440 = smul.addr %s439, 8
          %s441 = scalar_lea.vmem %s1, %s440
        $region64: #{tpu_custom_call.1} parent=55 // pred_fallthru
          _
        // Predicated region
        $region65: #{tpu_custom_call.1} parent=55 // pred_check
          %p442 = pneg %p109
        $region66: #{tpu_custom_call.1} parent=55 // pred_check_branch
          %444 = sbr.rel (%p442) target = $region68
        $region67: #{tpu_custom_call.1} parent=55 // pred_region
          %s445 = smul.u32 2, %s31
          %p446 = scmp.lt.s32.totalorder %s30, 1
          %s447 = scalar_select %p446, %s30, 1
          %p448 = scmp.lt.s32.totalorder %s445, 7
          %s449 = scalar_select %p448, %s445, 7
          %s450 = smul.addr %s447, 8
          %s451 = sadd.s32 %s449, %s450
          %s452 = smul.addr %s451, 8
          %s453 = scalar_lea.vmem %s2, %s452
          %s454 = smul.u32 2, %s31
        $region68: #{tpu_custom_call.1} parent=55 // pred_fallthru
          _
        // Predicated region
        $region69: #{tpu_custom_call.1} parent=55 // pred_check
          %p455 = pneg %p137
        $region70: #{tpu_custom_call.1} parent=55 // pred_check_branch
          %457 = sbr.rel (%p455) target = $region72
        $region71: #{tpu_custom_call.1} parent=55 // pred_region
          %s458 = smul.u32 2, %s31
          %p459 = scmp.lt.s32.totalorder %s30, 1
          %s460 = scalar_select %p459, %s30, 1
          %p461 = scmp.lt.s32.totalorder %s458, 7
          %s462 = scalar_select %p461, %s458, 7
          %s463 = smul.addr %s460, 8
          %s464 = sadd.s32 %s462, %s463
          %s465 = smul.addr %s464, 8
          %s466 = scalar_lea.vmem %s3, %s465
          %s467 = smul.u32 2, %s31
        $region72: #{tpu_custom_call.1} parent=55 // pred_fallthru
          _
      $region56: #{tpu_custom_call.1} parent=5 // pred_fallthru
        _
      %p468 = scmp.le.s32.totalorder 1, %s23
      %p469 = scmp.lt.s32.totalorder %s23, 9
      %p470 = pnand %p468, %p469
      %p471 = pneg %p470
      // Predicated region
      $region73: #{tpu_custom_call.1} parent=5 // pred_check
        _
      $region74: #{tpu_custom_call.1} parent=5 // pred_check_branch
        %473 = sbr.rel (%p470) target = $region76
      $region75: #{tpu_custom_call.1} parent=5 // pred_region
        %s474 = ssub.s32 %s23, 1
        %p475 = scmp.lt.s32.totalorder %s32, 1
        %s476 = scalar_select %p475, %s32, 1
        %s477 = smul.addr %s476, 8
        %s478 = scalar_lea.vmem %s0, %s477
        %p479 = pneg %p61
        %p480 = pneg %p58
        %p481 = scmp.lt.s32.totalorder %s32, 1
        %s482 = scalar_select %p481, %s32, 1
        %s483 = smul.addr %s482, 8
        %s484 = scalar_lea.vmem %s1, %s483
        %p485 = pneg %p87
        %p486 = pneg %p84
        %s487 = smul.u32 2, %s33
        %p488 = scmp.lt.s32.totalorder %s32, 1
        %s489 = scalar_select %p488, %s32, 1
        %p490 = scmp.lt.s32.totalorder %s487, 7
        %s491 = scalar_select %p490, %s487, 7
        %s492 = smul.addr %s489, 8
        %s493 = sadd.s32 %s491, %s492
        %s494 = smul.addr %s493, 8
        %s495 = scalar_lea.vmem %s2, %s494
        %p496 = pneg %p115
        %p497 = pneg %p112
        %s498 = smul.u32 2, %s33
        %p499 = scmp.lt.s32.totalorder %s32, 1
        %s500 = scalar_select %p499, %s32, 1
        %p501 = scmp.lt.s32.totalorder %s498, 7
        %s502 = scalar_select %p501, %s498, 7
        %s503 = smul.addr %s500, 8
        %s504 = sadd.s32 %s502, %s503
        %s505 = smul.addr %s504, 8
        %s506 = scalar_lea.vmem %s3, %s505
        %p507 = pneg %p143
        %p508 = pneg %p140
        %p509 = pneg %p164
        %p510 = pneg %p161
        %p511 = pneg %p185
        %p512 = pneg %p182
        %p513 = pneg %p206
        %p514 = pneg %p203
        %p515 = pneg %p227
        %p516 = pneg %p224
        %p517 = pneg %p248
        %p518 = pneg %p245
        %p519 = pneg %p269
        %p520 = pneg %p266
        %p521 = pneg %p290
        %p522 = pneg %p287
        %p523 = pneg %p311
        %p524 = pneg %p308
        %p525 = pneg %p332
        %p526 = pneg %p329
        %p527 = pneg %p353
        %p528 = pneg %p350
        %p529 = pneg %p379
        %p530 = pneg %p376
        %s531 = sand.u32 %s366, 1
        %s532 = scalar_lea.sflag [#allocation7], %s531
        %s533 = sand.u32 %s366, 1
        %s534 = smul.addr %s533, 8
        %s535 = scalar_lea.vmem [#allocation6], %s534
        %p536 = scmp.lt.s32.totalorder %s32, 1
        %s537 = scalar_select %p536, %s32, 1
        %s538 = smul.addr %s537, 8
        %s539 = scalar_lea.vmem %s0, %s538
        %p540 = scmp.lt.s32.totalorder %s32, 1
        %s541 = scalar_select %p540, %s32, 1
        %s542 = smul.addr %s541, 8
        %s543 = scalar_lea.vmem %s1, %s542
        %s544 = smul.u32 2, %s33
        %p545 = scmp.lt.s32.totalorder %s32, 1
        %s546 = scalar_select %p545, %s32, 1
        %p547 = scmp.lt.s32.totalorder %s544, 7
        %s548 = scalar_select %p547, %s544, 7
        %s549 = smul.addr %s546, 8
        %s550 = sadd.s32 %s548, %s549
        %s551 = smul.addr %s550, 8
        %s552 = scalar_lea.vmem %s2, %s551
        %s553 = smul.u32 2, %s33
        %s554 = smul.u32 2, %s33
        %p555 = scmp.lt.s32.totalorder %s32, 1
        %s556 = scalar_select %p555, %s32, 1
        %p557 = scmp.lt.s32.totalorder %s554, 7
        %s558 = scalar_select %p557, %s554, 7
        %s559 = smul.addr %s556, 8
        %s560 = sadd.s32 %s558, %s559
        %s561 = smul.addr %s560, 8
        %s562 = scalar_lea.vmem %s3, %s561
        %s563 = smul.u32 2, %s33
        %p564 = scmp.eq.s32.totalorder %s33, 0
        // Predicated region
        $region77: #{tpu_custom_call.1} parent=75 // pred_check
          %p565 = pneg %p564
        $region78: #{tpu_custom_call.1} parent=75 // pred_check_branch
          %567 = sbr.rel (%p565) target = $region80
        $region79: #{tpu_custom_call.1} parent=75 // pred_region
          %v568 = vld [vmem:[%s539] sm:$0xff]
          %v569 = vld [vmem:[%s543] sm:$0xff]
          %v570 = vadd.f32 %v568, %v569
          %v571 = vld [vmem:[%s4] sm:$0xff]
          %v572 = vld [vmem:[%s4 + $0x8] sm:$0xff]
          %v573 = vld [vmem:[%s4 + $0x10] sm:$0xff]
          %v574 = vld [vmem:[%s4 + $0x18] sm:$0xff]
          %v575 = vld [vmem:[%s8] sm:$0x1]
          %v577 = vlaneseq
          %v578 = vshrl.u32 %v577, 7
          %v579 = vsub.s32 0, %v578
          %v580 = vrot.slane %v575, %v579
          %vm582 = vcmask 261120
          %v584 = vsel %vm582, %v570, 0
          %586 = vmatprep.subr.mxu0 0.0
          %587 = vmatpush1.msra.mxu0 0.0
          %588 = vmatprep.subr.mxu0 0.0
          %589 = vmatpush1.msra.mxu0 0.0
          %590 = vmatprep.subr.mxu0 0.0
          %591 = vmatpush1.msra.mxu0 0.0
          %592 = vmatprep.subr.mxu0 0.0
          %593 = vmatpush1.msra.mxu0 0.0
          %594 = vmatprep.subr.mxu0 0.0
          %595 = vmatpush1.msra.mxu0 0.0
          %596 = vmatprep.subr.mxu0 0.0
          %597 = vmatpush1.msra.mxu0 0.0
          %598 = vmatprep.subr.mxu0 0.0
          %599 = vmatpush1.msra.mxu0 0.0
          %600 = vmatprep.subr.mxu0 0.0
          %601 = vmatpush1.msra.mxu0 0.0
          %602 = vmatprep.subr.mxu0 0.0
          %603 = vmatpush1.msra.mxu0 0.0
          %604 = vmatprep.subr.mxu0 0.0
          %605 = vmatpush1.msra.mxu0 0.0
          %606 = vmatprep.subr.mxu0 0.0
          %607 = vmatpush1.msra.mxu0 0.0
          %608 = vmatprep.subr.mxu0 0.0
          %609 = vmatpush1.msra.mxu0 0.0
          %610 = vmatprep.subr.mxu0 0.0
          %611 = vmatpush1.msra.mxu0 %v574
          %612 = vmatprep.subr.mxu0 0.0
          %613 = vmatpush1.msra.mxu0 %v573
          %614 = vmatprep.subr.mxu0 0.0
          %615 = vmatpush1.msra.mxu0 %v572
          %616 = vmatprep.subr.mxu0 0.0
          %617 = vmatpush1.msra.mxu0 %v571
          %618 = vmatprep.subr.mxu0 0.0
          %619 = vmatpush2.msra.mxu0 0.0
          %620 = vmatprep.subr.mxu0 0.0
          %621 = vmatpush2.msra.mxu0 0.0
          %622 = vmatprep.subr.mxu0 0.0
          %623 = vmatpush2.msra.mxu0 0.0
          %624 = vmatprep.subr.mxu0 0.0
          %625 = vmatpush2.msra.mxu0 0.0
          %626 = vmatprep.subr.mxu0 0.0
          %627 = vmatpush2.msra.mxu0 0.0
          %628 = vmatprep.subr.mxu0 0.0
          %629 = vmatpush2.msra.mxu0 0.0
          %630 = vmatprep.subr.mxu0 0.0
          %631 = vmatpush2.msra.mxu0 0.0
          %632 = vmatprep.subr.mxu0 0.0
          %633 = vmatpush2.msra.mxu0 0.0
          %634 = vmatprep.subr.mxu0 0.0
          %635 = vmatpush2.msra.mxu0 0.0
          %636 = vmatprep.subr.mxu0 0.0
          %637 = vmatpush2.msra.mxu0 0.0
          %638 = vmatprep.subr.mxu0 0.0
          %639 = vmatpush2.msra.mxu0 0.0
          %640 = vmatprep.subr.mxu0 0.0
          %641 = vmatpush2.msra.mxu0 0.0
          %642 = vmatprep.subr.mxu0 0.0
          %643 = vmatpush2.msra.mxu0 0.0
          %644 = vmatprep.subr.mxu0 0.0
          %645 = vmatpush2.msra.mxu0 0.0
          %646 = vmatprep.subr.mxu0 0.0
          %647 = vmatpush2.msra.mxu0 0.0
          %648 = vmatprep.subr.mxu0 0.0
          %649 = vmatpush2.msra.mxu0 0.0
          %650 = vmatprep.mubr.f32.mxu0 0.0
          %651 = vmatmul.mubr.f32.gmra.mxu0 %v584
          %v652 = vpop.f32.mrf.mxu0
          %v653 = vadd.f32 %v580, %v652
          %v654 = vpop.f32.mrf.mxu0
          %655 = vdwg.mxu0
          %656 = vst.msk [vmem:[#allocation2] sm:$0xff] %vm582, %v653
          %vm657 = vcmask 7168
          %658 = vst.msk [vmem:[#allocation3] sm:$0xff] %vm657, -inf
          %659 = vst.msk [vmem:[#allocation3 + $0x8] sm:$0xff] %vm657, -inf
          %660 = vst.msk [vmem:[#allocation3 + $0x10] sm:$0xff] %vm657, -inf
          %661 = vst.msk [vmem:[#allocation3 + $0x18] sm:$0xff] %vm657, -inf
          %662 = vst.msk [vmem:[#allocation4] sm:$0xff] %vm657, 0.0
          %663 = vst.msk [vmem:[#allocation4 + $0x8] sm:$0xff] %vm657, 0.0
          %664 = vst.msk [vmem:[#allocation4 + $0x10] sm:$0xff] %vm657, 0.0
          %665 = vst.msk [vmem:[#allocation4 + $0x18] sm:$0xff] %vm657, 0.0
          %666 = vst.msk [vmem:[#allocation5] sm:$0xff] %vm582, 0.0
        $region80: #{tpu_custom_call.1} parent=75 // pred_fallthru
          _
        %v667 = vld [vmem:[%s552] sm:$0xff]
        %v668 = vld [vmem:[%s552 + $0x8] sm:$0xff]
        %v669 = vld [vmem:[%s562] sm:$0xff]
        %v670 = vld [vmem:[%s562 + $0x8] sm:$0xff]
        %v671 = vadd.f32 %v667, %v669
        %v672 = vadd.f32 %v668, %v670
        %v673 = vld [vmem:[%s5] sm:$0xff]
        %v674 = vld [vmem:[%s5 + $0x8] sm:$0xff]
        %v675 = vld [vmem:[%s5 + $0x10] sm:$0xff]
        %v676 = vld [vmem:[%s5 + $0x18] sm:$0xff]
        %v677 = vld [vmem:[%s9] sm:$0x1]
        %v679 = vlaneseq
        %v680 = vshrl.u32 %v679, 7
        %v681 = vsub.s32 0, %v680
        %v682 = vrot.slane %v677, %v681
        %vm684 = vcmask 261120
        %v686 = vsel %vm684, %v671, 0
        %v689 = vsel %vm684, %v672, 0
        %691 = vmatprep.subr.mxu0 0.0
        %692 = vmatpush1.msra.mxu0 0.0
        %693 = vmatprep.subr.mxu0 0.0
        %694 = vmatpush1.msra.mxu0 0.0
        %695 = vmatprep.subr.mxu0 0.0
        %696 = vmatpush1.msra.mxu0 0.0
        %697 = vmatprep.subr.mxu0 0.0
        %698 = vmatpush1.msra.mxu0 0.0
        %699 = vmatprep.subr.mxu0 0.0
        %700 = vmatpush1.msra.mxu0 0.0
        %701 = vmatprep.subr.mxu0 0.0
        %702 = vmatpush1.msra.mxu0 0.0
        %703 = vmatprep.subr.mxu0 0.0
        %704 = vmatpush1.msra.mxu0 0.0
        %705 = vmatprep.subr.mxu0 0.0
        %706 = vmatpush1.msra.mxu0 0.0
        %707 = vmatprep.subr.mxu0 0.0
        %708 = vmatpush1.msra.mxu0 0.0
        %709 = vmatprep.subr.mxu0 0.0
        %710 = vmatpush1.msra.mxu0 0.0
        %711 = vmatprep.subr.mxu0 0.0
        %712 = vmatpush1.msra.mxu0 0.0
        %713 = vmatprep.subr.mxu0 0.0
        %714 = vmatpush1.msra.mxu0 0.0
        %715 = vmatprep.subr.mxu0 0.0
        %716 = vmatpush1.msra.mxu0 %v676
        %717 = vmatprep.subr.mxu0 0.0
        %718 = vmatpush1.msra.mxu0 %v675
        %719 = vmatprep.subr.mxu0 0.0
        %720 = vmatpush1.msra.mxu0 %v674
        %721 = vmatprep.subr.mxu0 0.0
        %722 = vmatpush1.msra.mxu0 %v673
        %723 = vmatprep.subr.mxu0 0.0
        %724 = vmatpush2.msra.mxu0 0.0
        %725 = vmatprep.subr.mxu0 0.0
        %726 = vmatpush2.msra.mxu0 0.0
        %727 = vmatprep.subr.mxu0 0.0
        %728 = vmatpush2.msra.mxu0 0.0
        %729 = vmatprep.subr.mxu0 0.0
        %730 = vmatpush2.msra.mxu0 0.0
        %731 = vmatprep.subr.mxu0 0.0
        %732 = vmatpush2.msra.mxu0 0.0
        %733 = vmatprep.subr.mxu0 0.0
        %734 = vmatpush2.msra.mxu0 0.0
        %735 = vmatprep.subr.mxu0 0.0
        %736 = vmatpush2.msra.mxu0 0.0
        %737 = vmatprep.subr.mxu0 0.0
        %738 = vmatpush2.msra.mxu0 0.0
        %739 = vmatprep.subr.mxu0 0.0
        %740 = vmatpush2.msra.mxu0 0.0
        %741 = vmatprep.subr.mxu0 0.0
        %742 = vmatpush2.msra.mxu0 0.0
        %743 = vmatprep.subr.mxu0 0.0
        %744 = vmatpush2.msra.mxu0 0.0
        %745 = vmatprep.subr.mxu0 0.0
        %746 = vmatpush2.msra.mxu0 0.0
        %747 = vmatprep.subr.mxu0 0.0
        %748 = vmatpush2.msra.mxu0 0.0
        %749 = vmatprep.subr.mxu0 0.0
        %750 = vmatpush2.msra.mxu0 0.0
        %751 = vmatprep.subr.mxu0 0.0
        %752 = vmatpush2.msra.mxu0 0.0
        %753 = vmatprep.subr.mxu0 0.0
        %754 = vmatpush2.msra.mxu0 0.0
        %755 = vmatprep.mubr.f32.mxu0 0.0
        %756 = vmatmul.mubr.f32.gmra.mxu0 %v686
        %v757 = vpop.f32.mrf.mxu0
        %v758 = vadd.f32 %v682, %v757
        %v759 = vpop.f32.mrf.mxu0
        %760 = vmatprep.mubr.f32.mxu0 0.0
        %761 = vmatmul.mubr.f32.gmra.mxu0 %v689
        %v762 = vpop.f32.mrf.mxu0
        %v763 = vadd.f32 %v682, %v762
        %v764 = vpop.f32.mrf.mxu0
        %765 = vdwg.mxu0
        %v766 = vld [vmem:[%s6] sm:$0xff]
        %v767 = vld [vmem:[%s6 + $0x8] sm:$0xff]
        %v768 = vld [vmem:[%s6 + $0x10] sm:$0xff]
        %v769 = vld [vmem:[%s6 + $0x18] sm:$0xff]
        %v770 = vld [vmem:[%s10] sm:$0x1]
        %v772 = vlaneseq
        %v773 = vshrl.u32 %v772, 7
        %v774 = vsub.s32 0, %v773
        %v775 = vrot.slane %v770, %v774
        %v778 = vsel %vm684, %v667, 0
        %v781 = vsel %vm684, %v668, 0
        %783 = vmatprep.subr.mxu0 0.0
        %784 = vmatpush1.msra.mxu0 0.0
        %785 = vmatprep.subr.mxu0 0.0
        %786 = vmatpush1.msra.mxu0 0.0
        %787 = vmatprep.subr.mxu0 0.0
        %788 = vmatpush1.msra.mxu0 0.0
        %789 = vmatprep.subr.mxu0 0.0
        %790 = vmatpush1.msra.mxu0 0.0
        %791 = vmatprep.subr.mxu0 0.0
        %792 = vmatpush1.msra.mxu0 0.0
        %793 = vmatprep.subr.mxu0 0.0
        %794 = vmatpush1.msra.mxu0 0.0
        %795 = vmatprep.subr.mxu0 0.0
        %796 = vmatpush1.msra.mxu0 0.0
        %797 = vmatprep.subr.mxu0 0.0
        %798 = vmatpush1.msra.mxu0 0.0
        %799 = vmatprep.subr.mxu0 0.0
        %800 = vmatpush1.msra.mxu0 0.0
        %801 = vmatprep.subr.mxu0 0.0
        %802 = vmatpush1.msra.mxu0 0.0
        %803 = vmatprep.subr.mxu0 0.0
        %804 = vmatpush1.msra.mxu0 0.0
        %805 = vmatprep.subr.mxu0 0.0
        %806 = vmatpush1.msra.mxu0 0.0
        %807 = vmatprep.subr.mxu0 0.0
        %808 = vmatpush1.msra.mxu0 %v769
        %809 = vmatprep.subr.mxu0 0.0
        %810 = vmatpush1.msra.mxu0 %v768
        %811 = vmatprep.subr.mxu0 0.0
        %812 = vmatpush1.msra.mxu0 %v767
        %813 = vmatprep.subr.mxu0 0.0
        %814 = vmatpush1.msra.mxu0 %v766
        %815 = vmatprep.subr.mxu0 0.0
        %816 = vmatpush2.msra.mxu0 0.0
        %817 = vmatprep.subr.mxu0 0.0
        %818 = vmatpush2.msra.mxu0 0.0
        %819 = vmatprep.subr.mxu0 0.0
        %820 = vmatpush2.msra.mxu0 0.0
        %821 = vmatprep.subr.mxu0 0.0
        %822 = vmatpush2.msra.mxu0 0.0
        %823 = vmatprep.subr.mxu0 0.0
        %824 = vmatpush2.msra.mxu0 0.0
        %825 = vmatprep.subr.mxu0 0.0
        %826 = vmatpush2.msra.mxu0 0.0
        %827 = vmatprep.subr.mxu0 0.0
        %828 = vmatpush2.msra.mxu0 0.0
        %829 = vmatprep.subr.mxu0 0.0
        %830 = vmatpush2.msra.mxu0 0.0
        %831 = vmatprep.subr.mxu0 0.0
        %832 = vmatpush2.msra.mxu0 0.0
        %833 = vmatprep.subr.mxu0 0.0
        %834 = vmatpush2.msra.mxu0 0.0
        %835 = vmatprep.subr.mxu0 0.0
        %836 = vmatpush2.msra.mxu0 0.0
        %837 = vmatprep.subr.mxu0 0.0
        %838 = vmatpush2.msra.mxu0 0.0
        %839 = vmatprep.subr.mxu0 0.0
        %840 = vmatpush2.msra.mxu0 0.0
        %841 = vmatprep.subr.mxu0 0.0
        %842 = vmatpush2.msra.mxu0 0.0
        %843 = vmatprep.subr.mxu0 0.0
        %844 = vmatpush2.msra.mxu0 0.0
        %845 = vmatprep.subr.mxu0 0.0
        %846 = vmatpush2.msra.mxu0 0.0
        %847 = vmatprep.mubr.f32.mxu0 0.0
        %848 = vmatmul.mubr.f32.gmra.mxu0 %v778
        %v849 = vpop.f32.mrf.mxu0
        %v850 = vadd.f32 %v775, %v849
        %v851 = vpop.f32.mrf.mxu0
        %852 = vmatprep.mubr.f32.mxu0 0.0
        %853 = vmatmul.mubr.f32.gmra.mxu0 %v781
        %v854 = vpop.f32.mrf.mxu0
        %v855 = vadd.f32 %v775, %v854
        %v856 = vpop.f32.mrf.mxu0
        %857 = vdwg.mxu0
        %v858 = vld [vmem:[#allocation2] sm:$0xff]
        %vm859 = vcmask 64512
        %v861 = vsel %vm859, %v858, 0
        %v864 = vsel %vm859, %v758, 0
        %v867 = vsel %vm859, %v763, 0
        %869 = vmatprep.subr.mxu0 0.0
        %870 = vmatpush1.xpose.msra.mxu0 0.0
        %871 = vmatprep.subr.mxu0 0.0
        %872 = vmatpush1.xpose.msra.mxu0 0.0
        %873 = vmatprep.subr.mxu0 0.0
        %874 = vmatpush1.xpose.msra.mxu0 0.0
        %875 = vmatprep.subr.mxu0 0.0
        %876 = vmatpush1.xpose.msra.mxu0 0.0
        %877 = vmatprep.subr.mxu0 0.0
        %878 = vmatpush1.xpose.msra.mxu0 0.0
        %879 = vmatprep.subr.mxu0 0.0
        %880 = vmatpush1.xpose.msra.mxu0 0.0
        %881 = vmatprep.subr.mxu0 0.0
        %882 = vmatpush1.xpose.msra.mxu0 0.0
        %883 = vmatprep.subr.mxu0 0.0
        %884 = vmatpush1.xpose.msra.mxu0 0.0
        %885 = vmatprep.subr.mxu0 0.0
        %886 = vmatpush1.xpose.msra.mxu0 0.0
        %887 = vmatprep.subr.mxu0 0.0
        %888 = vmatpush1.xpose.msra.mxu0 0.0
        %889 = vmatprep.subr.mxu0 0.0
        %890 = vmatpush1.xpose.msra.mxu0 0.0
        %891 = vmatprep.subr.mxu0 0.0
        %892 = vmatpush1.xpose.msra.mxu0 0.0
        %893 = vmatprep.subr.mxu0 0.0
        %894 = vmatpush1.xpose.msra.mxu0 0.0
        %895 = vmatprep.subr.mxu0 0.0
        %896 = vmatpush1.xpose.msra.mxu0 0.0
        %897 = vmatprep.subr.mxu0 0.0
        %898 = vmatpush1.xpose.msra.mxu0 %v867
        %899 = vmatprep.subr.mxu0 0.0
        %900 = vmatpush1.xpose.msra.mxu0 %v864
        %901 = vmatprep.subr.mxu0 0.0
        %902 = vmatpush2.xpose.msra.mxu0 0.0
        %903 = vmatprep.subr.mxu0 0.0
        %904 = vmatpush2.xpose.msra.mxu0 0.0
        %905 = vmatprep.subr.mxu0 0.0
        %906 = vmatpush2.xpose.msra.mxu0 0.0
        %907 = vmatprep.subr.mxu0 0.0
        %908 = vmatpush2.xpose.msra.mxu0 0.0
        %909 = vmatprep.subr.mxu0 0.0
        %910 = vmatpush2.xpose.msra.mxu0 0.0
        %911 = vmatprep.subr.mxu0 0.0
        %912 = vmatpush2.xpose.msra.mxu0 0.0
        %913 = vmatprep.subr.mxu0 0.0
        %914 = vmatpush2.xpose.msra.mxu0 0.0
        %915 = vmatprep.subr.mxu0 0.0
        %916 = vmatpush2.xpose.msra.mxu0 0.0
        %917 = vmatprep.subr.mxu0 0.0
        %918 = vmatpush2.xpose.msra.mxu0 0.0
        %919 = vmatprep.subr.mxu0 0.0
        %920 = vmatpush2.xpose.msra.mxu0 0.0
        %921 = vmatprep.subr.mxu0 0.0
        %922 = vmatpush2.xpose.msra.mxu0 0.0
        %923 = vmatprep.subr.mxu0 0.0
        %924 = vmatpush2.xpose.msra.mxu0 0.0
        %925 = vmatprep.subr.mxu0 0.0
        %926 = vmatpush2.xpose.msra.mxu0 0.0
        %927 = vmatprep.subr.mxu0 0.0
        %928 = vmatpush2.xpose.msra.mxu0 0.0
        %929 = vmatprep.subr.mxu0 0.0
        %930 = vmatpush2.xpose.msra.mxu0 0.0
        %931 = vmatprep.subr.mxu0 0.0
        %932 = vmatpush2.xpose.msra.mxu0 0.0
        %933 = vmatprep.mubr.f32.mxu0 0.0
        %934 = vmatmul.mubr.f32.gmra.mxu0 %v861
        %v935 = vpop.f32.mrf.mxu0
        %v936 = vadd.f32 0.0, %v935
        %v937 = vpop.f32.mrf.mxu0
        %938 = vdwg.mxu0
        %v939 = vld [vmem:[#allocation3] sm:$0xff]
        %vm940 = vcmask 130048
        %v941 = vsel %vm940, %v936, -inf
        %942 = vmax.xlane.f32.xlu0 %v941
        %v943 = vpop.xlane.xlu0 %942
        %v944 = vmax.f32 %v939, %v943
        %v945 = vsub.f32 %v939, %v944
        %v946 = vmul.f32 %v945, 1.442695
        %v947 = vpow.pop %v946
        %949 = vset.pattern.permute.xlu0 0
        %950 = vperm.xlu0 %949, %v944
        %v951 = vpop.permute.xlu0 %950
        %v953 = vsub.f32 %v936, %v951
        %v954 = vmul.f32 %v953, 1.442695
        %v955 = vpow.pop %v954
        %v956 = vld [vmem:[#allocation4] sm:$0xff]
        %v957 = vmul.f32 %v947, %v956
        %v958 = vsel %vm940, %v955, 0.0
        %959 = vadd.xlane.f32.xlu0 %v958
        %v960 = vpop.xlane.xlu0 %959
        %v961 = vadd.f32 %v957, %v960
        %vm962 = vcmask 7168
        %963 = vst.msk [vmem:[#allocation4] sm:$0xff] %vm962, %v961
        %v965 = vsel %vm940, %v955, 0
        %967 = vmatprep.subr.mxu0 0.0
        %968 = vmatpush1.msra.mxu0 0.0
        %969 = vmatprep.subr.mxu0 0.0
        %970 = vmatpush1.msra.mxu0 0.0
        %971 = vmatprep.subr.mxu0 0.0
        %972 = vmatpush1.msra.mxu0 0.0
        %973 = vmatprep.subr.mxu0 0.0
        %974 = vmatpush1.msra.mxu0 0.0
        %975 = vmatprep.subr.mxu0 0.0
        %976 = vmatpush1.msra.mxu0 0.0
        %977 = vmatprep.subr.mxu0 0.0
        %978 = vmatpush1.msra.mxu0 0.0
        %979 = vmatprep.subr.mxu0 0.0
        %980 = vmatpush1.msra.mxu0 0.0
        %981 = vmatprep.subr.mxu0 0.0
        %982 = vmatpush1.msra.mxu0 0.0
        %983 = vmatprep.subr.mxu0 0.0
        %984 = vmatpush1.msra.mxu0 0.0
        %985 = vmatprep.subr.mxu0 0.0
        %986 = vmatpush1.msra.mxu0 0.0
        %987 = vmatprep.subr.mxu0 0.0
        %988 = vmatpush1.msra.mxu0 0.0
        %989 = vmatprep.subr.mxu0 0.0
        %990 = vmatpush1.msra.mxu0 0.0
        %991 = vmatprep.subr.mxu0 0.0
        %992 = vmatpush1.msra.mxu0 0.0
        %993 = vmatprep.subr.mxu0 0.0
        %994 = vmatpush1.msra.mxu0 0.0
        %995 = vmatprep.subr.mxu0 0.0
        %996 = vmatpush1.msra.mxu0 %v855
        %997 = vmatprep.subr.mxu0 0.0
        %998 = vmatpush1.msra.mxu0 %v850
        %999 = vmatprep.subr.mxu0 0.0
        %1000 = vmatpush2.msra.mxu0 0.0
        %1001 = vmatprep.subr.mxu0 0.0
        %1002 = vmatpush2.msra.mxu0 0.0
        %1003 = vmatprep.subr.mxu0 0.0
        %1004 = vmatpush2.msra.mxu0 0.0
        %1005 = vmatprep.subr.mxu0 0.0
        %1006 = vmatpush2.msra.mxu0 0.0
        %1007 = vmatprep.subr.mxu0 0.0
        %1008 = vmatpush2.msra.mxu0 0.0
        %1009 = vmatprep.subr.mxu0 0.0
        %1010 = vmatpush2.msra.mxu0 0.0
        %1011 = vmatprep.subr.mxu0 0.0
        %1012 = vmatpush2.msra.mxu0 0.0
        %1013 = vmatprep.subr.mxu0 0.0
        %1014 = vmatpush2.msra.mxu0 0.0
        %1015 = vmatprep.subr.mxu0 0.0
        %1016 = vmatpush2.msra.mxu0 0.0
        %1017 = vmatprep.subr.mxu0 0.0
        %1018 = vmatpush2.msra.mxu0 0.0
        %1019 = vmatprep.subr.mxu0 0.0
        %1020 = vmatpush2.msra.mxu0 0.0
        %1021 = vmatprep.subr.mxu0 0.0
        %1022 = vmatpush2.msra.mxu0 0.0
        %1023 = vmatprep.subr.mxu0 0.0
        %1024 = vmatpush2.msra.mxu0 0.0
        %1025 = vmatprep.subr.mxu0 0.0
        %1026 = vmatpush2.msra.mxu0 0.0
        %1027 = vmatprep.subr.mxu0 0.0
        %1028 = vmatpush2.msra.mxu0 0.0
        %1029 = vmatprep.subr.mxu0 0.0
        %1030 = vmatpush2.msra.mxu0 0.0
        %1031 = vmatprep.mubr.f32.mxu0 0.0
        %1032 = vmatmul.mubr.f32.gmra.mxu0 %v965
        %v1033 = vpop.f32.mrf.mxu0
        %v1034 = vadd.f32 0.0, %v1033
        %v1035 = vpop.f32.mrf.mxu0
        %1036 = vdwg.mxu0
        %v1037 = vld [vmem:[#allocation5] sm:$0xff]
        %1039 = vset.pattern.permute.xlu0 0
        %1040 = vperm.xlu0 %1039, %v947
        %v1041 = vpop.permute.xlu0 %1040
        %v1043 = vmul.f32 %v1041, %v1037
        %v1044 = vadd.f32 %v1043, %v1034
        %1045 = vst.msk [vmem:[#allocation5] sm:$0xff] %vm859, %v1044
        %1046 = vst.msk [vmem:[#allocation3] sm:$0xff] %vm962, %v944
        %1047 = vrot.lane.b32.xlu0 %v858, 120
        %v1048 = vpop.permute.xlu0 %1047
        %1049 = vrot.lane.b32.xlu0 %v758, 120
        %v1050 = vpop.permute.xlu0 %1049
        %1051 = vrot.lane.b32.xlu0 %v763, 120
        %v1052 = vpop.permute.xlu0 %1051
        %v1053 = vsel %vm859, %v1048, 0
        %v1055 = vsel %vm859, %v1050, 0
        %v1057 = vsel %vm859, %v1052, 0
        %1059 = vmatprep.subr.mxu0 0.0
        %1060 = vmatpush1.xpose.msra.mxu0 0.0
        %1061 = vmatprep.subr.mxu0 0.0
        %1062 = vmatpush1.xpose.msra.mxu0 0.0
        %1063 = vmatprep.subr.mxu0 0.0
        %1064 = vmatpush1.xpose.msra.mxu0 0.0
        %1065 = vmatprep.subr.mxu0 0.0
        %1066 = vmatpush1.xpose.msra.mxu0 0.0
        %1067 = vmatprep.subr.mxu0 0.0
        %1068 = vmatpush1.xpose.msra.mxu0 0.0
        %1069 = vmatprep.subr.mxu0 0.0
        %1070 = vmatpush1.xpose.msra.mxu0 0.0
        %1071 = vmatprep.subr.mxu0 0.0
        %1072 = vmatpush1.xpose.msra.mxu0 0.0
        %1073 = vmatprep.subr.mxu0 0.0
        %1074 = vmatpush1.xpose.msra.mxu0 0.0
        %1075 = vmatprep.subr.mxu0 0.0
        %1076 = vmatpush1.xpose.msra.mxu0 0.0
        %1077 = vmatprep.subr.mxu0 0.0
        %1078 = vmatpush1.xpose.msra.mxu0 0.0
        %1079 = vmatprep.subr.mxu0 0.0
        %1080 = vmatpush1.xpose.msra.mxu0 0.0
        %1081 = vmatprep.subr.mxu0 0.0
        %1082 = vmatpush1.xpose.msra.mxu0 0.0
        %1083 = vmatprep.subr.mxu0 0.0
        %1084 = vmatpush1.xpose.msra.mxu0 0.0
        %1085 = vmatprep.subr.mxu0 0.0
        %1086 = vmatpush1.xpose.msra.mxu0 0.0
        %1087 = vmatprep.subr.mxu0 0.0
        %1088 = vmatpush1.xpose.msra.mxu0 %v1057
        %1089 = vmatprep.subr.mxu0 0.0
        %1090 = vmatpush1.xpose.msra.mxu0 %v1055
        %1091 = vmatprep.subr.mxu0 0.0
        %1092 = vmatpush2.xpose.msra.mxu0 0.0
        %1093 = vmatprep.subr.mxu0 0.0
        %1094 = vmatpush2.xpose.msra.mxu0 0.0
        %1095 = vmatprep.subr.mxu0 0.0
        %1096 = vmatpush2.xpose.msra.mxu0 0.0
        %1097 = vmatprep.subr.mxu0 0.0
        %1098 = vmatpush2.xpose.msra.mxu0 0.0
        %1099 = vmatprep.subr.mxu0 0.0
        %1100 = vmatpush2.xpose.msra.mxu0 0.0
        %1101 = vmatprep.subr.mxu0 0.0
        %1102 = vmatpush2.xpose.msra.mxu0 0.0
        %1103 = vmatprep.subr.mxu0 0.0
        %1104 = vmatpush2.xpose.msra.mxu0 0.0
        %1105 = vmatprep.subr.mxu0 0.0
        %1106 = vmatpush2.xpose.msra.mxu0 0.0
        %1107 = vmatprep.subr.mxu0 0.0
        %1108 = vmatpush2.xpose.msra.mxu0 0.0
        %1109 = vmatprep.subr.mxu0 0.0
        %1110 = vmatpush2.xpose.msra.mxu0 0.0
        %1111 = vmatprep.subr.mxu0 0.0
        %1112 = vmatpush2.xpose.msra.mxu0 0.0
        %1113 = vmatprep.subr.mxu0 0.0
        %1114 = vmatpush2.xpose.msra.mxu0 0.0
        %1115 = vmatprep.subr.mxu0 0.0
        %1116 = vmatpush2.xpose.msra.mxu0 0.0
        %1117 = vmatprep.subr.mxu0 0.0
        %1118 = vmatpush2.xpose.msra.mxu0 0.0
        %1119 = vmatprep.subr.mxu0 0.0
        %1120 = vmatpush2.xpose.msra.mxu0 0.0
        %1121 = vmatprep.subr.mxu0 0.0
        %1122 = vmatpush2.xpose.msra.mxu0 0.0
        %1123 = vmatprep.mubr.f32.mxu0 0.0
        %1124 = vmatmul.mubr.f32.gmra.mxu0 %v1053
        %v1125 = vpop.f32.mrf.mxu0
        %v1126 = vadd.f32 0.0, %v1125
        %v1127 = vpop.f32.mrf.mxu0
        %1128 = vdwg.mxu0
        %s1129 = scalar_lea.vmem [#allocation3], 8
        %v1130 = vld [vmem:[%s1129] sm:$0xff]
        %v1131 = vsel %vm940, %v1126, -inf
        %1132 = vmax.xlane.f32.xlu0 %v1131
        %v1133 = vpop.xlane.xlu0 %1132
        %v1134 = vmax.f32 %v1130, %v1133
        %v1135 = vsub.f32 %v1130, %v1134
        %v1136 = vmul.f32 %v1135, 1.442695
        %v1137 = vpow.pop %v1136
        %1139 = vset.pattern.permute.xlu0 0
        %1140 = vperm.xlu0 %1139, %v1134
        %v1141 = vpop.permute.xlu0 %1140
        %v1143 = vsub.f32 %v1126, %v1141
        %v1144 = vmul.f32 %v1143, 1.442695
        %v1145 = vpow.pop %v1144
        %s1146 = scalar_lea.vmem [#allocation4], 8
        %v1147 = vld [vmem:[%s1146] sm:$0xff]
        %v1148 = vmul.f32 %v1137, %v1147
        %v1149 = vsel %vm940, %v1145, 0.0
        %1150 = vadd.xlane.f32.xlu0 %v1149
        %v1151 = vpop.xlane.xlu0 %1150
        %v1152 = vadd.f32 %v1148, %v1151
        %1153 = vst.msk [vmem:[%s1146] sm:$0xff] %vm962, %v1152
        %1156 = vrot.lane.b32.xlu0 %v850, 120
        %v1157 = vpop.permute.xlu0 %1156
        %1158 = vrot.lane.b32.xlu0 %v855, 120
        %v1159 = vpop.permute.xlu0 %1158
        %v1163 = vsel %vm940, %v1145, 0
        %1165 = vmatprep.subr.mxu0 0.0
        %1166 = vmatpush1.msra.mxu0 0.0
        %1167 = vmatprep.subr.mxu0 0.0
        %1168 = vmatpush1.msra.mxu0 0.0
        %1169 = vmatprep.subr.mxu0 0.0
        %1170 = vmatpush1.msra.mxu0 0.0
        %1171 = vmatprep.subr.mxu0 0.0
        %1172 = vmatpush1.msra.mxu0 0.0
        %1173 = vmatprep.subr.mxu0 0.0
        %1174 = vmatpush1.msra.mxu0 0.0
        %1175 = vmatprep.subr.mxu0 0.0
        %1176 = vmatpush1.msra.mxu0 0.0
        %1177 = vmatprep.subr.mxu0 0.0
        %1178 = vmatpush1.msra.mxu0 0.0
        %1179 = vmatprep.subr.mxu0 0.0
        %1180 = vmatpush1.msra.mxu0 0.0
        %1181 = vmatprep.subr.mxu0 0.0
        %1182 = vmatpush1.msra.mxu0 0.0
        %1183 = vmatprep.subr.mxu0 0.0
        %1184 = vmatpush1.msra.mxu0 0.0
        %1185 = vmatprep.subr.mxu0 0.0
        %1186 = vmatpush1.msra.mxu0 0.0
        %1187 = vmatprep.subr.mxu0 0.0
        %1188 = vmatpush1.msra.mxu0 0.0
        %1189 = vmatprep.subr.mxu0 0.0
        %1190 = vmatpush1.msra.mxu0 0.0
        %1191 = vmatprep.subr.mxu0 0.0
        %1192 = vmatpush1.msra.mxu0 0.0
        %1193 = vmatprep.subr.mxu0 0.0
        %1194 = vmatpush1.msra.mxu0 %v1159
        %1195 = vmatprep.subr.mxu0 0.0
        %1196 = vmatpush1.msra.mxu0 %v1157
        %1197 = vmatprep.subr.mxu0 0.0
        %1198 = vmatpush2.msra.mxu0 0.0
        %1199 = vmatprep.subr.mxu0 0.0
        %1200 = vmatpush2.msra.mxu0 0.0
        %1201 = vmatprep.subr.mxu0 0.0
        %1202 = vmatpush2.msra.mxu0 0.0
        %1203 = vmatprep.subr.mxu0 0.0
        %1204 = vmatpush2.msra.mxu0 0.0
        %1205 = vmatprep.subr.mxu0 0.0
        %1206 = vmatpush2.msra.mxu0 0.0
        %1207 = vmatprep.subr.mxu0 0.0
        %1208 = vmatpush2.msra.mxu0 0.0
        %1209 = vmatprep.subr.mxu0 0.0
        %1210 = vmatpush2.msra.mxu0 0.0
        %1211 = vmatprep.subr.mxu0 0.0
        %1212 = vmatpush2.msra.mxu0 0.0
        %1213 = vmatprep.subr.mxu0 0.0
        %1214 = vmatpush2.msra.mxu0 0.0
        %1215 = vmatprep.subr.mxu0 0.0
        %1216 = vmatpush2.msra.mxu0 0.0
        %1217 = vmatprep.subr.mxu0 0.0
        %1218 = vmatpush2.msra.mxu0 0.0
        %1219 = vmatprep.subr.mxu0 0.0
        %1220 = vmatpush2.msra.mxu0 0.0
        %1221 = vmatprep.subr.mxu0 0.0
        %1222 = vmatpush2.msra.mxu0 0.0
        %1223 = vmatprep.subr.mxu0 0.0
        %1224 = vmatpush2.msra.mxu0 0.0
        %1225 = vmatprep.subr.mxu0 0.0
        %1226 = vmatpush2.msra.mxu0 0.0
        %1227 = vmatprep.subr.mxu0 0.0
        %1228 = vmatpush2.msra.mxu0 0.0
        %1229 = vmatprep.mubr.f32.mxu0 0.0
        %1230 = vmatmul.mubr.f32.gmra.mxu0 %v1163
        %v1231 = vpop.f32.mrf.mxu0
        %v1232 = vadd.f32 0.0, %v1231
        %v1233 = vpop.f32.mrf.mxu0
        %1234 = vdwg.mxu0
        %v1235 = vld [vmem:[#allocation5] sm:$0xff]
        %1237 = vset.pattern.permute.xlu0 0
        %1238 = vperm.xlu0 %1237, %v1137
        %v1239 = vpop.permute.xlu0 %1238
        %v1241 = vmul.f32 %v1239, %v1235
        %1243 = vrot.lane.b32.xlu0 %v1232, 8
        %v1244 = vpop.permute.xlu0 %1243
        %v1246 = vadd.f32 %v1241, %v1244
        %vm1247 = vcmask 130112
        %1248 = vst.msk [vmem:[#allocation5] sm:$0xff] %vm1247, %v1246
        %1249 = vst.msk [vmem:[%s1129] sm:$0xff] %vm962, %v1134
        %1250 = vrot.lane.b32.xlu0 %v858, 112
        %v1251 = vpop.permute.xlu0 %1250
        %1252 = vrot.lane.b32.xlu0 %v758, 112
        %v1253 = vpop.permute.xlu0 %1252
        %1254 = vrot.lane.b32.xlu0 %v763, 112
        %v1255 = vpop.permute.xlu0 %1254
        %v1256 = vsel %vm859, %v1251, 0
        %v1258 = vsel %vm859, %v1253, 0
        %v1260 = vsel %vm859, %v1255, 0
        %1262 = vmatprep.subr.mxu0 0.0
        %1263 = vmatpush1.xpose.msra.mxu0 0.0
        %1264 = vmatprep.subr.mxu0 0.0
        %1265 = vmatpush1.xpose.msra.mxu0 0.0
        %1266 = vmatprep.subr.mxu0 0.0
        %1267 = vmatpush1.xpose.msra.mxu0 0.0
        %1268 = vmatprep.subr.mxu0 0.0
        %1269 = vmatpush1.xpose.msra.mxu0 0.0
        %1270 = vmatprep.subr.mxu0 0.0
        %1271 = vmatpush1.xpose.msra.mxu0 0.0
        %1272 = vmatprep.subr.mxu0 0.0
        %1273 = vmatpush1.xpose.msra.mxu0 0.0
        %1274 = vmatprep.subr.mxu0 0.0
        %1275 = vmatpush1.xpose.msra.mxu0 0.0
        %1276 = vmatprep.subr.mxu0 0.0
        %1277 = vmatpush1.xpose.msra.mxu0 0.0
        %1278 = vmatprep.subr.mxu0 0.0
        %1279 = vmatpush1.xpose.msra.mxu0 0.0
        %1280 = vmatprep.subr.mxu0 0.0
        %1281 = vmatpush1.xpose.msra.mxu0 0.0
        %1282 = vmatprep.subr.mxu0 0.0
        %1283 = vmatpush1.xpose.msra.mxu0 0.0
        %1284 = vmatprep.subr.mxu0 0.0
        %1285 = vmatpush1.xpose.msra.mxu0 0.0
        %1286 = vmatprep.subr.mxu0 0.0
        %1287 = vmatpush1.xpose.msra.mxu0 0.0
        %1288 = vmatprep.subr.mxu0 0.0
        %1289 = vmatpush1.xpose.msra.mxu0 0.0
        %1290 = vmatprep.subr.mxu0 0.0
        %1291 = vmatpush1.xpose.msra.mxu0 %v1260
        %1292 = vmatprep.subr.mxu0 0.0
        %1293 = vmatpush1.xpose.msra.mxu0 %v1258
        %1294 = vmatprep.subr.mxu0 0.0
        %1295 = vmatpush2.xpose.msra.mxu0 0.0
        %1296 = vmatprep.subr.mxu0 0.0
        %1297 = vmatpush2.xpose.msra.mxu0 0.0
        %1298 = vmatprep.subr.mxu0 0.0
        %1299 = vmatpush2.xpose.msra.mxu0 0.0
        %1300 = vmatprep.subr.mxu0 0.0
        %1301 = vmatpush2.xpose.msra.mxu0 0.0
        %1302 = vmatprep.subr.mxu0 0.0
        %1303 = vmatpush2.xpose.msra.mxu0 0.0
        %1304 = vmatprep.subr.mxu0 0.0
        %1305 = vmatpush2.xpose.msra.mxu0 0.0
        %1306 = vmatprep.subr.mxu0 0.0
        %1307 = vmatpush2.xpose.msra.mxu0 0.0
        %1308 = vmatprep.subr.mxu0 0.0
        %1309 = vmatpush2.xpose.msra.mxu0 0.0
        %1310 = vmatprep.subr.mxu0 0.0
        %1311 = vmatpush2.xpose.msra.mxu0 0.0
        %1312 = vmatprep.subr.mxu0 0.0
        %1313 = vmatpush2.xpose.msra.mxu0 0.0
        %1314 = vmatprep.subr.mxu0 0.0
        %1315 = vmatpush2.xpose.msra.mxu0 0.0
        %1316 = vmatprep.subr.mxu0 0.0
        %1317 = vmatpush2.xpose.msra.mxu0 0.0
        %1318 = vmatprep.subr.mxu0 0.0
        %1319 = vmatpush2.xpose.msra.mxu0 0.0
        %1320 = vmatprep.subr.mxu0 0.0
        %1321 = vmatpush2.xpose.msra.mxu0 0.0
        %1322 = vmatprep.subr.mxu0 0.0
        %1323 = vmatpush2.xpose.msra.mxu0 0.0
        %1324 = vmatprep.subr.mxu0 0.0
        %1325 = vmatpush2.xpose.msra.mxu0 0.0
        %1326 = vmatprep.mubr.f32.mxu0 0.0
        %1327 = vmatmul.mubr.f32.gmra.mxu0 %v1256
        %v1328 = vpop.f32.mrf.mxu0
        %v1329 = vadd.f32 0.0, %v1328
        %v1330 = vpop.f32.mrf.mxu0
        %1331 = vdwg.mxu0
        %s1332 = scalar_lea.vmem [#allocation3], 16
        %v1333 = vld [vmem:[%s1332] sm:$0xff]
        %v1334 = vsel %vm940, %v1329, -inf
        %1335 = vmax.xlane.f32.xlu0 %v1334
        %v1336 = vpop.xlane.xlu0 %1335
        %v1337 = vmax.f32 %v1333, %v1336
        %v1338 = vsub.f32 %v1333, %v1337
        %v1339 = vmul.f32 %v1338, 1.442695
        %v1340 = vpow.pop %v1339
        %1342 = vset.pattern.permute.xlu0 0
        %1343 = vperm.xlu0 %1342, %v1337
        %v1344 = vpop.permute.xlu0 %1343
        %v1346 = vsub.f32 %v1329, %v1344
        %v1347 = vmul.f32 %v1346, 1.442695
        %v1348 = vpow.pop %v1347
        %s1349 = scalar_lea.vmem [#allocation4], 16
        %v1350 = vld [vmem:[%s1349] sm:$0xff]
        %v1351 = vmul.f32 %v1340, %v1350
        %v1352 = vsel %vm940, %v1348, 0.0
        %1353 = vadd.xlane.f32.xlu0 %v1352
        %v1354 = vpop.xlane.xlu0 %1353
        %v1355 = vadd.f32 %v1351, %v1354
        %1356 = vst.msk [vmem:[%s1349] sm:$0xff] %vm962, %v1355
        %1357 = vrot.lane.b32.xlu0 %v850, 112
        %v1358 = vpop.permute.xlu0 %1357
        %1359 = vrot.lane.b32.xlu0 %v855, 112
        %v1360 = vpop.permute.xlu0 %1359
        %v1364 = vsel %vm940, %v1348, 0
        %1366 = vmatprep.subr.mxu0 0.0
        %1367 = vmatpush1.msra.mxu0 0.0
        %1368 = vmatprep.subr.mxu0 0.0
        %1369 = vmatpush1.msra.mxu0 0.0
        %1370 = vmatprep.subr.mxu0 0.0
        %1371 = vmatpush1.msra.mxu0 0.0
        %1372 = vmatprep.subr.mxu0 0.0
        %1373 = vmatpush1.msra.mxu0 0.0
        %1374 = vmatprep.subr.mxu0 0.0
        %1375 = vmatpush1.msra.mxu0 0.0
        %1376 = vmatprep.subr.mxu0 0.0
        %1377 = vmatpush1.msra.mxu0 0.0
        %1378 = vmatprep.subr.mxu0 0.0
        %1379 = vmatpush1.msra.mxu0 0.0
        %1380 = vmatprep.subr.mxu0 0.0
        %1381 = vmatpush1.msra.mxu0 0.0
        %1382 = vmatprep.subr.mxu0 0.0
        %1383 = vmatpush1.msra.mxu0 0.0
        %1384 = vmatprep.subr.mxu0 0.0
        %1385 = vmatpush1.msra.mxu0 0.0
        %1386 = vmatprep.subr.mxu0 0.0
        %1387 = vmatpush1.msra.mxu0 0.0
        %1388 = vmatprep.subr.mxu0 0.0
        %1389 = vmatpush1.msra.mxu0 0.0
        %1390 = vmatprep.subr.mxu0 0.0
        %1391 = vmatpush1.msra.mxu0 0.0
        %1392 = vmatprep.subr.mxu0 0.0
        %1393 = vmatpush1.msra.mxu0 0.0
        %1394 = vmatprep.subr.mxu0 0.0
        %1395 = vmatpush1.msra.mxu0 %v1360
        %1396 = vmatprep.subr.mxu0 0.0
        %1397 = vmatpush1.msra.mxu0 %v1358
        %1398 = vmatprep.subr.mxu0 0.0
        %1399 = vmatpush2.msra.mxu0 0.0
        %1400 = vmatprep.subr.mxu0 0.0
        %1401 = vmatpush2.msra.mxu0 0.0
        %1402 = vmatprep.subr.mxu0 0.0
        %1403 = vmatpush2.msra.mxu0 0.0
        %1404 = vmatprep.subr.mxu0 0.0
        %1405 = vmatpush2.msra.mxu0 0.0
        %1406 = vmatprep.subr.mxu0 0.0
        %1407 = vmatpush2.msra.mxu0 0.0
        %1408 = vmatprep.subr.mxu0 0.0
        %1409 = vmatpush2.msra.mxu0 0.0
        %1410 = vmatprep.subr.mxu0 0.0
        %1411 = vmatpush2.msra.mxu0 0.0
        %1412 = vmatprep.subr.mxu0 0.0
        %1413 = vmatpush2.msra.mxu0 0.0
        %1414 = vmatprep.subr.mxu0 0.0
        %1415 = vmatpush2.msra.mxu0 0.0
        %1416 = vmatprep.subr.mxu0 0.0
        %1417 = vmatpush2.msra.mxu0 0.0
        %1418 = vmatprep.subr.mxu0 0.0
        %1419 = vmatpush2.msra.mxu0 0.0
        %1420 = vmatprep.subr.mxu0 0.0
        %1421 = vmatpush2.msra.mxu0 0.0
        %1422 = vmatprep.subr.mxu0 0.0
        %1423 = vmatpush2.msra.mxu0 0.0
        %1424 = vmatprep.subr.mxu0 0.0
        %1425 = vmatpush2.msra.mxu0 0.0
        %1426 = vmatprep.subr.mxu0 0.0
        %1427 = vmatpush2.msra.mxu0 0.0
        %1428 = vmatprep.subr.mxu0 0.0
        %1429 = vmatpush2.msra.mxu0 0.0
        %1430 = vmatprep.mubr.f32.mxu0 0.0
        %1431 = vmatmul.mubr.f32.gmra.mxu0 %v1364
        %v1432 = vpop.f32.mrf.mxu0
        %v1433 = vadd.f32 0.0, %v1432
        %v1434 = vpop.f32.mrf.mxu0
        %1435 = vdwg.mxu0
        %v1436 = vld [vmem:[#allocation5] sm:$0xff]
        %1438 = vset.pattern.permute.xlu0 0
        %1439 = vperm.xlu0 %1438, %v1340
        %v1440 = vpop.permute.xlu0 %1439
        %v1442 = vmul.f32 %v1440, %v1436
        %1444 = vrot.lane.b32.xlu0 %v1433, 16
        %v1445 = vpop.permute.xlu0 %1444
        %v1447 = vadd.f32 %v1442, %v1445
        %vm1448 = vcmask 195712
        %1449 = vst.msk [vmem:[#allocation5] sm:$0xff] %vm1448, %v1447
        %1450 = vst.msk [vmem:[%s1332] sm:$0xff] %vm962, %v1337
        %1451 = vrot.lane.b32.xlu0 %v858, 104
        %v1452 = vpop.permute.xlu0 %1451
        %1453 = vrot.lane.b32.xlu0 %v758, 104
        %v1454 = vpop.permute.xlu0 %1453
        %1455 = vrot.lane.b32.xlu0 %v763, 104
        %v1456 = vpop.permute.xlu0 %1455
        %v1457 = vsel %vm859, %v1452, 0
        %v1459 = vsel %vm859, %v1454, 0
        %v1461 = vsel %vm859, %v1456, 0
        %1463 = vmatprep.subr.mxu0 0.0
        %1464 = vmatpush1.xpose.msra.mxu0 0.0
        %1465 = vmatprep.subr.mxu0 0.0
        %1466 = vmatpush1.xpose.msra.mxu0 0.0
        %1467 = vmatprep.subr.mxu0 0.0
        %1468 = vmatpush1.xpose.msra.mxu0 0.0
        %1469 = vmatprep.subr.mxu0 0.0
        %1470 = vmatpush1.xpose.msra.mxu0 0.0
        %1471 = vmatprep.subr.mxu0 0.0
        %1472 = vmatpush1.xpose.msra.mxu0 0.0
        %1473 = vmatprep.subr.mxu0 0.0
        %1474 = vmatpush1.xpose.msra.mxu0 0.0
        %1475 = vmatprep.subr.mxu0 0.0
        %1476 = vmatpush1.xpose.msra.mxu0 0.0
        %1477 = vmatprep.subr.mxu0 0.0
        %1478 = vmatpush1.xpose.msra.mxu0 0.0
        %1479 = vmatprep.subr.mxu0 0.0
        %1480 = vmatpush1.xpose.msra.mxu0 0.0
        %1481 = vmatprep.subr.mxu0 0.0
        %1482 = vmatpush1.xpose.msra.mxu0 0.0
        %1483 = vmatprep.subr.mxu0 0.0
        %1484 = vmatpush1.xpose.msra.mxu0 0.0
        %1485 = vmatprep.subr.mxu0 0.0
        %1486 = vmatpush1.xpose.msra.mxu0 0.0
        %1487 = vmatprep.subr.mxu0 0.0
        %1488 = vmatpush1.xpose.msra.mxu0 0.0
        %1489 = vmatprep.subr.mxu0 0.0
        %1490 = vmatpush1.xpose.msra.mxu0 0.0
        %1491 = vmatprep.subr.mxu0 0.0
        %1492 = vmatpush1.xpose.msra.mxu0 %v1461
        %1493 = vmatprep.subr.mxu0 0.0
        %1494 = vmatpush1.xpose.msra.mxu0 %v1459
        %1495 = vmatprep.subr.mxu0 0.0
        %1496 = vmatpush2.xpose.msra.mxu0 0.0
        %1497 = vmatprep.subr.mxu0 0.0
        %1498 = vmatpush2.xpose.msra.mxu0 0.0
        %1499 = vmatprep.subr.mxu0 0.0
        %1500 = vmatpush2.xpose.msra.mxu0 0.0
        %1501 = vmatprep.subr.mxu0 0.0
        %1502 = vmatpush2.xpose.msra.mxu0 0.0
        %1503 = vmatprep.subr.mxu0 0.0
        %1504 = vmatpush2.xpose.msra.mxu0 0.0
        %1505 = vmatprep.subr.mxu0 0.0
        %1506 = vmatpush2.xpose.msra.mxu0 0.0
        %1507 = vmatprep.subr.mxu0 0.0
        %1508 = vmatpush2.xpose.msra.mxu0 0.0
        %1509 = vmatprep.subr.mxu0 0.0
        %1510 = vmatpush2.xpose.msra.mxu0 0.0
        %1511 = vmatprep.subr.mxu0 0.0
        %1512 = vmatpush2.xpose.msra.mxu0 0.0
        %1513 = vmatprep.subr.mxu0 0.0
        %1514 = vmatpush2.xpose.msra.mxu0 0.0
        %1515 = vmatprep.subr.mxu0 0.0
        %1516 = vmatpush2.xpose.msra.mxu0 0.0
        %1517 = vmatprep.subr.mxu0 0.0
        %1518 = vmatpush2.xpose.msra.mxu0 0.0
        %1519 = vmatprep.subr.mxu0 0.0
        %1520 = vmatpush2.xpose.msra.mxu0 0.0
        %1521 = vmatprep.subr.mxu0 0.0
        %1522 = vmatpush2.xpose.msra.mxu0 0.0
        %1523 = vmatprep.subr.mxu0 0.0
        %1524 = vmatpush2.xpose.msra.mxu0 0.0
        %1525 = vmatprep.subr.mxu0 0.0
        %1526 = vmatpush2.xpose.msra.mxu0 0.0
        %1527 = vmatprep.mubr.f32.mxu0 0.0
        %1528 = vmatmul.mubr.f32.gmra.mxu0 %v1457
        %v1529 = vpop.f32.mrf.mxu0
        %v1530 = vadd.f32 0.0, %v1529
        %v1531 = vpop.f32.mrf.mxu0
        %1532 = vdwg.mxu0
        %s1533 = scalar_lea.vmem [#allocation3], 24
        %v1534 = vld [vmem:[%s1533] sm:$0xff]
        %v1535 = vsel %vm940, %v1530, -inf
        %1536 = vmax.xlane.f32.xlu0 %v1535
        %v1537 = vpop.xlane.xlu0 %1536
        %v1538 = vmax.f32 %v1534, %v1537
        %v1539 = vsub.f32 %v1534, %v1538
        %v1540 = vmul.f32 %v1539, 1.442695
        %v1541 = vpow.pop %v1540
        %1543 = vset.pattern.permute.xlu0 0
        %1544 = vperm.xlu0 %1543, %v1538
        %v1545 = vpop.permute.xlu0 %1544
        %v1547 = vsub.f32 %v1530, %v1545
        %v1548 = vmul.f32 %v1547, 1.442695
        %v1549 = vpow.pop %v1548
        %s1550 = scalar_lea.vmem [#allocation4], 24
        %v1551 = vld [vmem:[%s1550] sm:$0xff]
        %v1552 = vmul.f32 %v1541, %v1551
        %v1553 = vsel %vm940, %v1549, 0.0
        %1554 = vadd.xlane.f32.xlu0 %v1553
        %v1555 = vpop.xlane.xlu0 %1554
        %v1556 = vadd.f32 %v1552, %v1555
        %1557 = vst.msk [vmem:[%s1550] sm:$0xff] %vm962, %v1556
        %1558 = vrot.lane.b32.xlu0 %v850, 104
        %v1559 = vpop.permute.xlu0 %1558
        %1560 = vrot.lane.b32.xlu0 %v855, 104
        %v1561 = vpop.permute.xlu0 %1560
        %v1565 = vsel %vm940, %v1549, 0
        %1567 = vmatprep.subr.mxu0 0.0
        %1568 = vmatpush1.msra.mxu0 0.0
        %1569 = vmatprep.subr.mxu0 0.0
        %1570 = vmatpush1.msra.mxu0 0.0
        %1571 = vmatprep.subr.mxu0 0.0
        %1572 = vmatpush1.msra.mxu0 0.0
        %1573 = vmatprep.subr.mxu0 0.0
        %1574 = vmatpush1.msra.mxu0 0.0
        %1575 = vmatprep.subr.mxu0 0.0
        %1576 = vmatpush1.msra.mxu0 0.0
        %1577 = vmatprep.subr.mxu0 0.0
        %1578 = vmatpush1.msra.mxu0 0.0
        %1579 = vmatprep.subr.mxu0 0.0
        %1580 = vmatpush1.msra.mxu0 0.0
        %1581 = vmatprep.subr.mxu0 0.0
        %1582 = vmatpush1.msra.mxu0 0.0
        %1583 = vmatprep.subr.mxu0 0.0
        %1584 = vmatpush1.msra.mxu0 0.0
        %1585 = vmatprep.subr.mxu0 0.0
        %1586 = vmatpush1.msra.mxu0 0.0
        %1587 = vmatprep.subr.mxu0 0.0
        %1588 = vmatpush1.msra.mxu0 0.0
        %1589 = vmatprep.subr.mxu0 0.0
        %1590 = vmatpush1.msra.mxu0 0.0
        %1591 = vmatprep.subr.mxu0 0.0
        %1592 = vmatpush1.msra.mxu0 0.0
        %1593 = vmatprep.subr.mxu0 0.0
        %1594 = vmatpush1.msra.mxu0 0.0
        %1595 = vmatprep.subr.mxu0 0.0
        %1596 = vmatpush1.msra.mxu0 %v1561
        %1597 = vmatprep.subr.mxu0 0.0
        %1598 = vmatpush1.msra.mxu0 %v1559
        %1599 = vmatprep.subr.mxu0 0.0
        %1600 = vmatpush2.msra.mxu0 0.0
        %1601 = vmatprep.subr.mxu0 0.0
        %1602 = vmatpush2.msra.mxu0 0.0
        %1603 = vmatprep.subr.mxu0 0.0
        %1604 = vmatpush2.msra.mxu0 0.0
        %1605 = vmatprep.subr.mxu0 0.0
        %1606 = vmatpush2.msra.mxu0 0.0
        %1607 = vmatprep.subr.mxu0 0.0
        %1608 = vmatpush2.msra.mxu0 0.0
        %1609 = vmatprep.subr.mxu0 0.0
        %1610 = vmatpush2.msra.mxu0 0.0
        %1611 = vmatprep.subr.mxu0 0.0
        %1612 = vmatpush2.msra.mxu0 0.0
        %1613 = vmatprep.subr.mxu0 0.0
        %1614 = vmatpush2.msra.mxu0 0.0
        %1615 = vmatprep.subr.mxu0 0.0
        %1616 = vmatpush2.msra.mxu0 0.0
        %1617 = vmatprep.subr.mxu0 0.0
        %1618 = vmatpush2.msra.mxu0 0.0
        %1619 = vmatprep.subr.mxu0 0.0
        %1620 = vmatpush2.msra.mxu0 0.0
        %1621 = vmatprep.subr.mxu0 0.0
        %1622 = vmatpush2.msra.mxu0 0.0
        %1623 = vmatprep.subr.mxu0 0.0
        %1624 = vmatpush2.msra.mxu0 0.0
        %1625 = vmatprep.subr.mxu0 0.0
        %1626 = vmatpush2.msra.mxu0 0.0
        %1627 = vmatprep.subr.mxu0 0.0
        %1628 = vmatpush2.msra.mxu0 0.0
        %1629 = vmatprep.subr.mxu0 0.0
        %1630 = vmatpush2.msra.mxu0 0.0
        %1631 = vmatprep.mubr.f32.mxu0 0.0
        %1632 = vmatmul.mubr.f32.gmra.mxu0 %v1565
        %v1633 = vpop.f32.mrf.mxu0
        %v1634 = vadd.f32 0.0, %v1633
        %v1635 = vpop.f32.mrf.mxu0
        %1636 = vdwg.mxu0
        %v1637 = vld [vmem:[#allocation5] sm:$0xff]
        %1639 = vset.pattern.permute.xlu0 0
        %1640 = vperm.xlu0 %1639, %v1541
        %v1641 = vpop.permute.xlu0 %1640
        %v1643 = vmul.f32 %v1641, %v1637
        %1645 = vrot.lane.b32.xlu0 %v1634, 24
        %v1646 = vpop.permute.xlu0 %1645
        %v1648 = vadd.f32 %v1643, %v1646
        %vm1649 = vcmask 261312
        %1650 = vst.msk [vmem:[#allocation5] sm:$0xff] %vm1649, %v1648
        %1651 = vst.msk [vmem:[%s1533] sm:$0xff] %vm962, %v1538
        %p1652 = scmp.eq.s32.totalorder %s33, 3
        // Predicated region
        $region81: #{tpu_custom_call.1} parent=75 // pred_check
          %p1653 = pneg %p1652
        $region82: #{tpu_custom_call.1} parent=75 // pred_check_branch
          %1655 = sbr.rel (%p1653) target = $region84
        $region83: #{tpu_custom_call.1} parent=75 // pred_region
          %v1656 = vld [vmem:[#allocation4] sm:$0xff]
          %v1657 = vld [vmem:[#allocation4 + $0x8] sm:$0xff]
          %v1658 = vld [vmem:[#allocation4 + $0x10] sm:$0xff]
          %v1659 = vld [vmem:[#allocation4 + $0x18] sm:$0xff]
          %v1660 = vrcp.pop %v1656
          %v1661 = vrcp.pop %v1657
          %v1662 = vrcp.pop %v1658
          %v1663 = vrcp.pop %v1659
          %v1664 = vld [vmem:[#allocation5] sm:$0xff]
          %1666 = vset.pattern.permute.xlu0 0
          %1667 = vperm.xlu0 %1666, %v1660
          %v1668 = vpop.permute.xlu0 %1667
          %v1670 = vmul.f32 %v1664, %v1668
          %1671 = vst.msk [vmem:[#allocation5] sm:$0xff] %vm859, %v1670
          %v1672 = vld [vmem:[#allocation5] sm:$0xff]
          %1674 = vset.pattern.permute.xlu0 0
          %1675 = vperm.xlu0 %1674, %v1661
          %v1676 = vpop.permute.xlu0 %1675
          %v1678 = vmul.f32 %v1672, %v1676
          %1679 = vst.msk [vmem:[#allocation5] sm:$0xff] %vm1247, %v1678
          %v1680 = vld [vmem:[#allocation5] sm:$0xff]
          %1682 = vset.pattern.permute.xlu0 0
          %1683 = vperm.xlu0 %1682, %v1662
          %v1684 = vpop.permute.xlu0 %1683
          %v1686 = vmul.f32 %v1680, %v1684
          %1687 = vst.msk [vmem:[#allocation5] sm:$0xff] %vm1448, %v1686
          %v1688 = vld [vmem:[#allocation5] sm:$0xff]
          %1690 = vset.pattern.permute.xlu0 0
          %1691 = vperm.xlu0 %1690, %v1663
          %v1692 = vpop.permute.xlu0 %1691
          %v1694 = vmul.f32 %v1688, %v1692
          %1695 = vst.msk [vmem:[#allocation5] sm:$0xff] %vm1649, %v1694
          %v1696 = vld [vmem:[#allocation5] sm:$0xff]
          %v1697 = vld [vmem:[%s7] sm:$0xff]
          %v1698 = vld [vmem:[%s7 + $0x8] sm:$0xff]
          %v1699 = vld [vmem:[%s7 + $0x10] sm:$0xff]
          %v1700 = vld [vmem:[%s7 + $0x18] sm:$0xff]
          %v1701 = vld [vmem:[%s11] sm:$0x1]
          %v1703 = vlaneseq
          %v1704 = vshrl.u32 %v1703, 7
          %v1705 = vsub.s32 0, %v1704
          %v1706 = vrot.slane %v1701, %v1705
          %v1709 = vsel %vm684, %v1696, 0
          %1711 = vmatprep.subr.mxu0 0.0
          %1712 = vmatpush1.msra.mxu0 0.0
          %1713 = vmatprep.subr.mxu0 0.0
          %1714 = vmatpush1.msra.mxu0 0.0
          %1715 = vmatprep.subr.mxu0 0.0
          %1716 = vmatpush1.msra.mxu0 0.0
          %1717 = vmatprep.subr.mxu0 0.0
          %1718 = vmatpush1.msra.mxu0 0.0
          %1719 = vmatprep.subr.mxu0 0.0
          %1720 = vmatpush1.msra.mxu0 0.0
          %1721 = vmatprep.subr.mxu0 0.0
          %1722 = vmatpush1.msra.mxu0 0.0
          %1723 = vmatprep.subr.mxu0 0.0
          %1724 = vmatpush1.msra.mxu0 0.0
          %1725 = vmatprep.subr.mxu0 0.0
          %1726 = vmatpush1.msra.mxu0 0.0
          %1727 = vmatprep.subr.mxu0 0.0
          %1728 = vmatpush1.msra.mxu0 0.0
          %1729 = vmatprep.subr.mxu0 0.0
          %1730 = vmatpush1.msra.mxu0 0.0
          %1731 = vmatprep.subr.mxu0 0.0
          %1732 = vmatpush1.msra.mxu0 0.0
          %1733 = vmatprep.subr.mxu0 0.0
          %1734 = vmatpush1.msra.mxu0 0.0
          %1735 = vmatprep.subr.mxu0 0.0
          %1736 = vmatpush1.msra.mxu0 %v1700
          %1737 = vmatprep.subr.mxu0 0.0
          %1738 = vmatpush1.msra.mxu0 %v1699
          %1739 = vmatprep.subr.mxu0 0.0
          %1740 = vmatpush1.msra.mxu0 %v1698
          %1741 = vmatprep.subr.mxu0 0.0
          %1742 = vmatpush1.msra.mxu0 %v1697
          %1743 = vmatprep.subr.mxu0 0.0
          %1744 = vmatpush2.msra.mxu0 0.0
          %1745 = vmatprep.subr.mxu0 0.0
          %1746 = vmatpush2.msra.mxu0 0.0
          %1747 = vmatprep.subr.mxu0 0.0
          %1748 = vmatpush2.msra.mxu0 0.0
          %1749 = vmatprep.subr.mxu0 0.0
          %1750 = vmatpush2.msra.mxu0 0.0
          %1751 = vmatprep.subr.mxu0 0.0
          %1752 = vmatpush2.msra.mxu0 0.0
          %1753 = vmatprep.subr.mxu0 0.0
          %1754 = vmatpush2.msra.mxu0 0.0
          %1755 = vmatprep.subr.mxu0 0.0
          %1756 = vmatpush2.msra.mxu0 0.0
          %1757 = vmatprep.subr.mxu0 0.0
          %1758 = vmatpush2.msra.mxu0 0.0
          %1759 = vmatprep.subr.mxu0 0.0
          %1760 = vmatpush2.msra.mxu0 0.0
          %1761 = vmatprep.subr.mxu0 0.0
          %1762 = vmatpush2.msra.mxu0 0.0
          %1763 = vmatprep.subr.mxu0 0.0
          %1764 = vmatpush2.msra.mxu0 0.0
          %1765 = vmatprep.subr.mxu0 0.0
          %1766 = vmatpush2.msra.mxu0 0.0
          %1767 = vmatprep.subr.mxu0 0.0
          %1768 = vmatpush2.msra.mxu0 0.0
          %1769 = vmatprep.subr.mxu0 0.0
          %1770 = vmatpush2.msra.mxu0 0.0
          %1771 = vmatprep.subr.mxu0 0.0
          %1772 = vmatpush2.msra.mxu0 0.0
          %1773 = vmatprep.subr.mxu0 0.0
          %1774 = vmatpush2.msra.mxu0 0.0
          %1775 = vmatprep.mubr.f32.mxu0 0.0
          %1776 = vmatmul.mubr.f32.gmra.mxu0 %v1709
          %v1777 = vpop.f32.mrf.mxu0
          %v1778 = vadd.f32 %v1706, %v1777
          %v1779 = vpop.f32.mrf.mxu0
          %1780 = vdwg.mxu0
          %v1781 = vld [vmem:[%s539] sm:$0xff]
          %v1782 = vadd.f32 %v1781, %v1778
          %v1783 = vsel %vm684, %v1782, 0.0
          %1784 = vadd.xlane.f32.xlu0 %v1783
          %v1785 = vpop.xlane.xlu0 %1784
          %v1786 = vrcp.pop 32.0
          %v1787 = vmul.f32 %v1785, %v1786
          %v1788 = vsub.f32 %v1782, %v1787
          %v1789 = vmul.f32 %v1788, %v1788
          %v1790 = vsel %vm684, %v1789, 0.0
          %1791 = vadd.xlane.f32.xlu0 %v1790
          %v1792 = vpop.xlane.xlu0 %1791
          %v1793 = vmul.f32 %v1792, %v1786
          %v1794 = vadd.f32 %v1793, 1e-05
          %v1795 = vrsqrt.pop %v1794
          %v1796 = vmul.f32 %v1788, %v1795
          %v1797 = vld [vmem:[%s12] sm:$0x1]
          %v1799 = vlaneseq
          %v1800 = vshrl.u32 %v1799, 7
          %v1801 = vsub.s32 0, %v1800
          %v1802 = vrot.slane %v1797, %v1801
          %v1804 = vmul.f32 %v1796, %v1802
          %v1805 = vld [vmem:[%s13] sm:$0x1]
          %v1807 = vlaneseq
          %v1808 = vshrl.u32 %v1807, 7
          %v1809 = vsub.s32 0, %v1808
          %v1810 = vrot.slane %v1805, %v1809
          %v1812 = vadd.f32 %v1804, %v1810
          %1813 = vst.msk [vmem:[%s535] sm:$0xff] %vm684, %v1812
        $region84: #{tpu_custom_call.1} parent=75 // pred_fallthru
          _
        %s1814 = sand.u32 %s366, 1
        %s1815 = scalar_lea.sflag [#allocation7], %s1814
        %s1816 = sand.u32 %s366, 1
        %s1817 = smul.addr %s1816, 8
        %s1818 = scalar_lea.vmem [#allocation6], %s1817
        // Predicated region
        $region85: #{tpu_custom_call.1} parent=75 // pred_check
          %p1819 = pneg %p376
        $region86: #{tpu_custom_call.1} parent=75 // pred_check_branch
          %1821 = sbr.rel (%p1819) target = $region88
        $region87: #{tpu_custom_call.1} parent=75 // pred_region
          %s1823 = ssub.s32 128, 128
          %1824 = vsyncadd %s1815, %s1823
          %s1825 = smul.addr %s32, 128
          %s1826 = scalar_lea.hbm %s14, %s1825
          %s1828 = sshll.u32 %s1818, 4
          %s1829 = int_to_ptr.vmem [resolvable:$true] %s1828
          %1831 = dma.vmem_to_hbm [thread:$0]  %s1829, 128, %s1826, %s1815
        $region88: #{tpu_custom_call.1} parent=75 // pred_fallthru
          _
      $region76: #{tpu_custom_call.1} parent=5 // pred_fallthru
        _
      %p1832 = scmp.le.s32.totalorder 2, %s23
      // Predicated region
      $region89: #{tpu_custom_call.1} parent=5 // pred_check
        %p1833 = pneg %p1832
      $region90: #{tpu_custom_call.1} parent=5 // pred_check_branch
        %1835 = sbr.rel (%p1833) target = $region92
      $region91: #{tpu_custom_call.1} parent=5 // pred_region
        %s1836 = ssub.s32 %s23, 2
        // Predicated region
        $region93: #{tpu_custom_call.1} parent=91 // pred_check
          %p1837 = pneg %p382
        $region94: #{tpu_custom_call.1} parent=91 // pred_check_branch
          %1839 = sbr.rel (%p1837) target = $region96
        $region95: #{tpu_custom_call.1} parent=91 // pred_region
          %s1840 = sand.u32 %s367, 1
          %s1841 = scalar_lea.sflag [#allocation7], %s1840
          %s1842 = sand.u32 %s367, 1
          %s1843 = smul.addr %s1842, 8
          %s1844 = scalar_lea.vmem [#allocation6], %s1843
          %1845 = dma.done %s1841, 128
        $region96: #{tpu_custom_call.1} parent=91 // pred_fallthru
          _
      $region92: #{tpu_custom_call.1} parent=5 // pred_fallthru
        _
    $region6: #{tpu_custom_call.1} parent=1 // loop_footer
      %s27 = sadd.s32 1, %s23
    $region7: #{tpu_custom_call.1} parent=1 // loop_footer_branch
      %22 = sbr.rel target = $region3
    $region8: #{tpu_custom_call.1} parent=1 // loop_exit
      _
    %1846 = vsyncpa [#allocation7], 1
    %s1847 = scalar_lea.sflag [#allocation7], 1
    %1848 = vsyncpa %s1847, 1

// kernel: tpu_custom_call.1
$region0: #{tpu_custom_call.1}
  #allocation0 [shape = 'u32[]', space=smem, size = 0x4, offset = 0x4, fixed_abs, tag = 'smem constant byte address 0x4 - core index']
  #allocation1 [shape = 'u32[144,128]{1,0:T(1,128)}', space=vmem, size = 0x12000, scoped, tag = 'internal scratch']
  #allocation2 [shape = 'f32[8,32]{1,0:T(8,128)}', space=vmem, size = 0x1000, scoped, tag = 'scratch operand']
  #allocation3 [shape = 'f32[4,8,1]{2,1,0:T(8,128)}', space=vmem, size = 0x4000, scoped, tag = 'scratch operand']
  #allocation4 [shape = 'f32[4,8,1]{2,1,0:T(8,128)}', space=vmem, size = 0x4000, scoped, tag = 'scratch operand']
  #allocation5 [shape = 'f32[8,32]{1,0:T(8,128)}', space=vmem, size = 0x1000, scoped, tag = 'scratch operand']
  %s0 = inlined_call_operand.vmem [shape: f32[2,8,32], index: 0, kind: input, shape index: {}]
  %s1 = inlined_call_operand.vmem [shape: f32[2,8,32], index: 1, kind: input, shape index: {}]
  %s2 = inlined_call_operand.vmem [shape: f32[2,64,32], index: 2, kind: input, shape index: {}]
  %s3 = inlined_call_operand.vmem [shape: f32[2,64,32], index: 3, kind: input, shape index: {}]
  %s4 = inlined_call_operand.vmem [shape: f32[32,32], index: 4, kind: input, shape index: {}]
  %s5 = inlined_call_operand.vmem [shape: f32[32,32], index: 5, kind: input, shape index: {}]
  %s6 = inlined_call_operand.vmem [shape: f32[32,32], index: 6, kind: input, shape index: {}]
  %s7 = inlined_call_operand.vmem [shape: f32[32,32], index: 7, kind: input, shape index: {}]
  %s8 = inlined_call_operand.vmem [shape: f32[1,32], index: 8, kind: input, shape index: {}]
  %s9 = inlined_call_operand.vmem [shape: f32[1,32], index: 9, kind: input, shape index: {}]
  %s10 = inlined_call_operand.vmem [shape: f32[1,32], index: 10, kind: input, shape index: {}]
  %s11 = inlined_call_operand.vmem [shape: f32[1,32], index: 11, kind: input, shape index: {}]
  %s12 = inlined_call_operand.vmem [shape: f32[1,32], index: 12, kind: input, shape index: {}]
  %s13 = inlined_call_operand.vmem [shape: f32[1,32], index: 13, kind: input, shape index: {}]
  %s14 = inlined_call_operand.hbm [shape: f32[2,8,32], index: 14, kind: output, shape index: {}]
  %s15 = sld [smem:[#allocation0]]
  $region97: #{tpu_custom_call.1} parent=0
    _
  %s17 = ssub.s32 1, %s15
  %s18 = scalar_select 0, %s17, %s15
  $region1: #{tpu_custom_call.1} parent=0
    #allocation6 [shape = 'u8[8192]{0}', space=vmem, size = 0x2000, scoped, tag = 'output window, operand 0']
    #allocation7 [shape = 's32[2]{0}', space=sflag, size = 0x8, scoped, tag = 'scoped memory for tpu_custom_call.1']
    %19 = vsyncpa [#allocation7], 0
    %s20 = scalar_lea.sflag [#allocation7], 1
    %21 = vsyncpa %s20, 0
    loop: start=0, step=1, limit=10
    $region2: #{tpu_custom_call.1} parent=1 // loop_pre_header
      _
    $region3: #{tpu_custom_call.1} parent=1 // loop_header
      %s23 = sphi 0, %s27
      %p24 = scmp.ge.s32.totalorder %s23, 10
      %s30 = sphi 0, %s42
      %s31 = sphi 0, %s38
      %s32 = sphi 0, %s30
      %s33 = sphi 0, %s31
      %s34 = sphi 0, %s32
      %s35 = sphi 0, %s33
      %s45 = sphi 0, %s47
      %s48 = sphi 0, %s45
      %s49 = sphi 0, %s48
      %s65 = sphi 0, %s49
      %s71 = sphi 0, %s73
      %s74 = sphi 0, %s71
      %s75 = sphi 0, %s74
      %s91 = sphi 0, %s75
      %s99 = sphi 0, %s101
      %s102 = sphi 0, %s99
      %s103 = sphi 0, %s102
      %s119 = sphi 0, %s103
      %s127 = sphi 0, %s129
      %s130 = sphi 0, %s127
      %s131 = sphi 0, %s130
      %s147 = sphi 0, %s131
      %s151 = sphi 0, %s151
      %s153 = sphi 0, %s151
      %s154 = sphi 0, %s153
      %s168 = sphi 0, %s154
      %s172 = sphi 0, %s172
      %s174 = sphi 0, %s172
      %s175 = sphi 0, %s174
      %s189 = sphi 0, %s175
      %s193 = sphi 0, %s193
      %s195 = sphi 0, %s193
      %s196 = sphi 0, %s195
      %s210 = sphi 0, %s196
      %s214 = sphi 0, %s214
      %s216 = sphi 0, %s214
      %s217 = sphi 0, %s216
      %s231 = sphi 0, %s217
      %s235 = sphi 0, %s235
      %s237 = sphi 0, %s235
      %s238 = sphi 0, %s237
      %s252 = sphi 0, %s238
      %s256 = sphi 0, %s256
      %s258 = sphi 0, %s256
      %s259 = sphi 0, %s258
      %s273 = sphi 0, %s259
      %s277 = sphi 0, %s277
      %s279 = sphi 0, %s277
      %s280 = sphi 0, %s279
      %s294 = sphi 0, %s280
      %s298 = sphi 0, %s298
      %s300 = sphi 0, %s298
      %s301 = sphi 0, %s300
      %s315 = sphi 0, %s301
      %s319 = sphi 0, %s319
      %s321 = sphi 0, %s319
      %s322 = sphi 0, %s321
      %s336 = sphi 0, %s322
      %s340 = sphi 0, %s340
      %s342 = sphi 0, %s340
      %s343 = sphi 0, %s342
      %s357 = sphi 0, %s343
      %s363 = sphi 0, %s365
      %s366 = sphi 0, %s363
      %s367 = sphi 0, %s366
      %s383 = sphi 0, %s367
    $region4: #{tpu_custom_call.1} parent=1 // loop_header_branch
      %26 = sbr.rel (%p24) target = $region8
    $region5: #{tpu_custom_call.1} parent=1 // loop_body
      %s28 = ssub.s32 %s23, 1
      %s29 = ssub.s32 %s23, 2
      %s36 = sadd.s32 1, %s31
      %p37 = scmp.ge.s32.totalorder %s36, 4
      %s38 = scalar_select %p37, 0, %s36
      %s39 = sadd.s32 1, %s30
      %s40 = scalar_select %p37, %s39, %s30
      %p41 = scmp.ge.s32.totalorder %s40, 2
      %s42 = scalar_select %p41, 0, %s40
      %s43 = ssub.s32 %s30, %s42
      %p44 = scmp.eq.s32.totalorder %s43, 0
      %s46 = sadd.s32 %s45, 1
      %s47 = scalar_select %p44, %s45, %s46
      %p50 = pneg %p44
      %p51 = scmp.eq.s32.totalorder %s23, 7
      %p52 = por %p50, %p51
      %p53 = scmp.ne.s32.totalorder %s45, %s48
      %p54 = scmp.eq.s32.totalorder %s23, 0
      %p55 = por %p53, %p54
      %p56 = scmp.ne.s32.totalorder %s45, %s48
      %p57 = scmp.eq.s32.totalorder %s28, 7
      %p58 = por %p56, %p57
      %p59 = scmp.ne.s32.totalorder %s48, %s49
      %p60 = scmp.eq.s32.totalorder %s28, 0
      %p61 = por %p59, %p60
      %p62 = scmp.ne.s32.totalorder %s48, %s49
      %p63 = scmp.eq.s32.totalorder %s29, 7
      %p64 = por %p62, %p63
      %p66 = scmp.ne.s32.totalorder %s49, %s65
      %p67 = scmp.eq.s32.totalorder %s29, 0
      %p68 = por %p66, %p67
      %s69 = ssub.s32 %s30, %s42
      %p70 = scmp.eq.s32.totalorder %s69, 0
      %s72 = sadd.s32 %s71, 1
      %s73 = scalar_select %p70, %s71, %s72
      %p76 = pneg %p70
      %p77 = scmp.eq.s32.totalorder %s23, 7
      %p78 = por %p76, %p77
      %p79 = scmp.ne.s32.totalorder %s71, %s74
      %p80 = scmp.eq.s32.totalorder %s23, 0
      %p81 = por %p79, %p80
      %p82 = scmp.ne.s32.totalorder %s71, %s74
      %p83 = scmp.eq.s32.totalorder %s28, 7
      %p84 = por %p82, %p83
      %p85 = scmp.ne.s32.totalorder %s74, %s75
      %p86 = scmp.eq.s32.totalorder %s28, 0
      %p87 = por %p85, %p86
      %p88 = scmp.ne.s32.totalorder %s74, %s75
      %p89 = scmp.eq.s32.totalorder %s29, 7
      %p90 = por %p88, %p89
      %p92 = scmp.ne.s32.totalorder %s75, %s91
      %p93 = scmp.eq.s32.totalorder %s29, 0
      %p94 = por %p92, %p93
      %s95 = ssub.s32 %s30, %s42
      %s96 = ssub.s32 %s31, %s38
      %s97 = sor.u32 %s95, %s96
      %p98 = scmp.eq.s32.totalorder %s97, 0
      %s100 = sadd.s32 %s99, 1
      %s101 = scalar_select %p98, %s99, %s100
      %p104 = pneg %p98
      %p105 = scmp.eq.s32.totalorder %s23, 7
      %p106 = por %p104, %p105
      %p107 = scmp.ne.s32.totalorder %s99, %s102
      %p108 = scmp.eq.s32.totalorder %s23, 0
      %p109 = por %p107, %p108
      %p110 = scmp.ne.s32.totalorder %s99, %s102
      %p111 = scmp.eq.s32.totalorder %s28, 7
      %p112 = por %p110, %p111
      %p113 = scmp.ne.s32.totalorder %s102, %s103
      %p114 = scmp.eq.s32.totalorder %s28, 0
      %p115 = por %p113, %p114
      %p116 = scmp.ne.s32.totalorder %s102, %s103
      %p117 = scmp.eq.s32.totalorder %s29, 7
      %p118 = por %p116, %p117
      %p120 = scmp.ne.s32.totalorder %s103, %s119
      %p121 = scmp.eq.s32.totalorder %s29, 0
      %p122 = por %p120, %p121
      %s123 = ssub.s32 %s30, %s42
      %s124 = ssub.s32 %s31, %s38
      %s125 = sor.u32 %s123, %s124
      %p126 = scmp.eq.s32.totalorder %s125, 0
      %s128 = sadd.s32 %s127, 1
      %s129 = scalar_select %p126, %s127, %s128
      %p132 = pneg %p126
      %p133 = scmp.eq.s32.totalorder %s23, 7
      %p134 = por %p132, %p133
      %p135 = scmp.ne.s32.totalorder %s127, %s130
      %p136 = scmp.eq.s32.totalorder %s23, 0
      %p137 = por %p135, %p136
      %p138 = scmp.ne.s32.totalorder %s127, %s130
      %p139 = scmp.eq.s32.totalorder %s28, 7
      %p140 = por %p138, %p139
      %p141 = scmp.ne.s32.totalorder %s130, %s131
      %p142 = scmp.eq.s32.totalorder %s28, 0
      %p143 = por %p141, %p142
      %p144 = scmp.ne.s32.totalorder %s130, %s131
      %p145 = scmp.eq.s32.totalorder %s29, 7
      %p146 = por %p144, %p145
      %p148 = scmp.ne.s32.totalorder %s131, %s147
      %p149 = scmp.eq.s32.totalorder %s29, 0
      %p150 = por %p148, %p149
      %s152 = sadd.s32 %s151, 1
      %p155 = scmp.eq.s32.totalorder %s23, 7
      %p156 = scmp.ne.s32.totalorder %s151, %s153
      %p157 = scmp.eq.s32.totalorder %s23, 0
      %p158 = por %p156, %p157
      %p159 = scmp.ne.s32.totalorder %s151, %s153
      %p160 = scmp.eq.s32.totalorder %s28, 7
      %p161 = por %p159, %p160
      %p162 = scmp.ne.s32.totalorder %s153, %s154
      %p163 = scmp.eq.s32.totalorder %s28, 0
      %p164 = por %p162, %p163
      %p165 = scmp.ne.s32.totalorder %s153, %s154
      %p166 = scmp.eq.s32.totalorder %s29, 7
      %p167 = por %p165, %p166
      %p169 = scmp.ne.s32.totalorder %s154, %s168
      %p170 = scmp.eq.s32.totalorder %s29, 0
      %p171 = por %p169, %p170
      %s173 = sadd.s32 %s172, 1
      %p176 = scmp.eq.s32.totalorder %s23, 7
      %p177 = scmp.ne.s32.totalorder %s172, %s174
      %p178 = scmp.eq.s32.totalorder %s23, 0
      %p179 = por %p177, %p178
      %p180 = scmp.ne.s32.totalorder %s172, %s174
      %p181 = scmp.eq.s32.totalorder %s28, 7
      %p182 = por %p180, %p181
      %p183 = scmp.ne.s32.totalorder %s174, %s175
      %p184 = scmp.eq.s32.totalorder %s28, 0
      %p185 = por %p183, %p184
      %p186 = scmp.ne.s32.totalorder %s174, %s175
      %p187 = scmp.eq.s32.totalorder %s29, 7
      %p188 = por %p186, %p187
      %p190 = scmp.ne.s32.totalorder %s175, %s189
      %p191 = scmp.eq.s32.totalorder %s29, 0
      %p192 = por %p190, %p191
      %s194 = sadd.s32 %s193, 1
      %p197 = scmp.eq.s32.totalorder %s23, 7
      %p198 = scmp.ne.s32.totalorder %s193, %s195
      %p199 = scmp.eq.s32.totalorder %s23, 0
      %p200 = por %p198, %p199
      %p201 = scmp.ne.s32.totalorder %s193, %s195
      %p202 = scmp.eq.s32.totalorder %s28, 7
      %p203 = por %p201, %p202
      %p204 = scmp.ne.s32.totalorder %s195, %s196
      %p205 = scmp.eq.s32.totalorder %s28, 0
      %p206 = por %p204, %p205
      %p207 = scmp.ne.s32.totalorder %s195, %s196
      %p208 = scmp.eq.s32.totalorder %s29, 7
      %p209 = por %p207, %p208
      %p211 = scmp.ne.s32.totalorder %s196, %s210
      %p212 = scmp.eq.s32.totalorder %s29, 0
      %p213 = por %p211, %p212
      %s215 = sadd.s32 %s214, 1
      %p218 = scmp.eq.s32.totalorder %s23, 7
      %p219 = scmp.ne.s32.totalorder %s214, %s216
      %p220 = scmp.eq.s32.totalorder %s23, 0
      %p221 = por %p219, %p220
      %p222 = scmp.ne.s32.totalorder %s214, %s216
      %p223 = scmp.eq.s32.totalorder %s28, 7
      %p224 = por %p222, %p223
      %p225 = scmp.ne.s32.totalorder %s216, %s217
      %p226 = scmp.eq.s32.totalorder %s28, 0
      %p227 = por %p225, %p226
      %p228 = scmp.ne.s32.totalorder %s216, %s217
      %p229 = scmp.eq.s32.totalorder %s29, 7
      %p230 = por %p228, %p229
      %p232 = scmp.ne.s32.totalorder %s217, %s231
      %p233 = scmp.eq.s32.totalorder %s29, 0
      %p234 = por %p232, %p233
      %s236 = sadd.s32 %s235, 1
      %p239 = scmp.eq.s32.totalorder %s23, 7
      %p240 = scmp.ne.s32.totalorder %s235, %s237
      %p241 = scmp.eq.s32.totalorder %s23, 0
      %p242 = por %p240, %p241
      %p243 = scmp.ne.s32.totalorder %s235, %s237
      %p244 = scmp.eq.s32.totalorder %s28, 7
      %p245 = por %p243, %p244
      %p246 = scmp.ne.s32.totalorder %s237, %s238
      %p247 = scmp.eq.s32.totalorder %s28, 0
      %p248 = por %p246, %p247
      %p249 = scmp.ne.s32.totalorder %s237, %s238
      %p250 = scmp.eq.s32.totalorder %s29, 7
      %p251 = por %p249, %p250
      %p253 = scmp.ne.s32.totalorder %s238, %s252
      %p254 = scmp.eq.s32.totalorder %s29, 0
      %p255 = por %p253, %p254
      %s257 = sadd.s32 %s256, 1
      %p260 = scmp.eq.s32.totalorder %s23, 7
      %p261 = scmp.ne.s32.totalorder %s256, %s258
      %p262 = scmp.eq.s32.totalorder %s23, 0
      %p263 = por %p261, %p262
      %p264 = scmp.ne.s32.totalorder %s256, %s258
      %p265 = scmp.eq.s32.totalorder %s28, 7
      %p266 = por %p264, %p265
      %p267 = scmp.ne.s32.totalorder %s258, %s259
      %p268 = scmp.eq.s32.totalorder %s28, 0
      %p269 = por %p267, %p268
      %p270 = scmp.ne.s32.totalorder %s258, %s259
      %p271 = scmp.eq.s32.totalorder %s29, 7
      %p272 = por %p270, %p271
      %p274 = scmp.ne.s32.totalorder %s259, %s273
      %p275 = scmp.eq.s32.totalorder %s29, 0
      %p276 = por %p274, %p275
      %s278 = sadd.s32 %s277, 1
      %p281 = scmp.eq.s32.totalorder %s23, 7
      %p282 = scmp.ne.s32.totalorder %s277, %s279
      %p283 = scmp.eq.s32.totalorder %s23, 0
      %p284 = por %p282, %p283
      %p285 = scmp.ne.s32.totalorder %s277, %s279
      %p286 = scmp.eq.s32.totalorder %s28, 7
      %p287 = por %p285, %p286
      %p288 = scmp.ne.s32.totalorder %s279, %s280
      %p289 = scmp.eq.s32.totalorder %s28, 0
      %p290 = por %p288, %p289
      %p291 = scmp.ne.s32.totalorder %s279, %s280
      %p292 = scmp.eq.s32.totalorder %s29, 7
      %p293 = por %p291, %p292
      %p295 = scmp.ne.s32.totalorder %s280, %s294
      %p296 = scmp.eq.s32.totalorder %s29, 0
      %p297 = por %p295, %p296
      %s299 = sadd.s32 %s298, 1
      %p302 = scmp.eq.s32.totalorder %s23, 7
      %p303 = scmp.ne.s32.totalorder %s298, %s300
      %p304 = scmp.eq.s32.totalorder %s23, 0
      %p305 = por %p303, %p304
      %p306 = scmp.ne.s32.totalorder %s298, %s300
      %p307 = scmp.eq.s32.totalorder %s28, 7
      %p308 = por %p306, %p307
      %p309 = scmp.ne.s32.totalorder %s300, %s301
      %p310 = scmp.eq.s32.totalorder %s28, 0
      %p311 = por %p309, %p310
      %p312 = scmp.ne.s32.totalorder %s300, %s301
      %p313 = scmp.eq.s32.totalorder %s29, 7
      %p314 = por %p312, %p313
      %p316 = scmp.ne.s32.totalorder %s301, %s315
      %p317 = scmp.eq.s32.totalorder %s29, 0
      %p318 = por %p316, %p317
      %s320 = sadd.s32 %s319, 1
      %p323 = scmp.eq.s32.totalorder %s23, 7
      %p324 = scmp.ne.s32.totalorder %s319, %s321
      %p325 = scmp.eq.s32.totalorder %s23, 0
      %p326 = por %p324, %p325
      %p327 = scmp.ne.s32.totalorder %s319, %s321
      %p328 = scmp.eq.s32.totalorder %s28, 7
      %p329 = por %p327, %p328
      %p330 = scmp.ne.s32.totalorder %s321, %s322
      %p331 = scmp.eq.s32.totalorder %s28, 0
      %p332 = por %p330, %p331
      %p333 = scmp.ne.s32.totalorder %s321, %s322
      %p334 = scmp.eq.s32.totalorder %s29, 7
      %p335 = por %p333, %p334
      %p337 = scmp.ne.s32.totalorder %s322, %s336
      %p338 = scmp.eq.s32.totalorder %s29, 0
      %p339 = por %p337, %p338
      %s341 = sadd.s32 %s340, 1
      %p344 = scmp.eq.s32.totalorder %s23, 7
      %p345 = scmp.ne.s32.totalorder %s340, %s342
      %p346 = scmp.eq.s32.totalorder %s23, 0
      %p347 = por %p345, %p346
      %p348 = scmp.ne.s32.totalorder %s340, %s342
      %p349 = scmp.eq.s32.totalorder %s28, 7
      %p350 = por %p348, %p349
      %p351 = scmp.ne.s32.totalorder %s342, %s343
      %p352 = scmp.eq.s32.totalorder %s28, 0
      %p353 = por %p351, %p352
      %p354 = scmp.ne.s32.totalorder %s342, %s343
      %p355 = scmp.eq.s32.totalorder %s29, 7
      %p356 = por %p354, %p355
      %p358 = scmp.ne.s32.totalorder %s343, %s357
      %p359 = scmp.eq.s32.totalorder %s29, 0
      %p360 = por %p358, %p359
      %s361 = ssub.s32 %s30, %s42
      %p362 = scmp.eq.s32.totalorder %s361, 0
      %s364 = sadd.s32 %s363, 1
      %s365 = scalar_select %p362, %s363, %s364
      %p368 = pneg %p362
      %p369 = scmp.eq.s32.totalorder %s23, 7
      %p370 = por %p368, %p369
      %p371 = scmp.ne.s32.totalorder %s363, %s366
      %p372 = scmp.eq.s32.totalorder %s23, 0
      %p373 = por %p371, %p372
      %p374 = scmp.ne.s32.totalorder %s363, %s366
      %p375 = scmp.eq.s32.totalorder %s28, 7
      %p376 = por %p374, %p375
      %p377 = scmp.ne.s32.totalorder %s366, %s367
      %p378 = scmp.eq.s32.totalorder %s28, 0
      %p379 = por %p377, %p378
      %p380 = scmp.ne.s32.totalorder %s366, %s367
      %p381 = scmp.eq.s32.totalorder %s29, 7
      %p382 = por %p380, %p381
      %p384 = scmp.ne.s32.totalorder %s367, %s383
      %p385 = scmp.eq.s32.totalorder %s29, 0
      %p386 = por %p384, %p385
      %p387 = scmp.le.s32.totalorder 1, %s23
      %p388 = scmp.lt.s32.totalorder %s23, 9
      %p389 = pnand %p387, %p388
      %p390 = pneg %p389
      // Predicated region
      $region9: #{tpu_custom_call.1} parent=5 // pred_check
        _
      $region10: #{tpu_custom_call.1} parent=5 // pred_check_branch
        %392 = sbr.rel (%p389) target = $region12
      $region11: #{tpu_custom_call.1} parent=5 // pred_region
        %s393 = ssub.s32 %s23, 1
        // Predicated region
        $region13: #{tpu_custom_call.1} parent=11 // pred_check
          %p394 = pneg %p164
        $region14: #{tpu_custom_call.1} parent=11 // pred_check_branch
          %396 = sbr.rel (%p394) target = $region16
        $region15: #{tpu_custom_call.1} parent=11 // pred_region
          _
        $region16: #{tpu_custom_call.1} parent=11 // pred_fallthru
          _
        // Predicated region
        $region17: #{tpu_custom_call.1} parent=11 // pred_check
          %p397 = pneg %p185
        $region18: #{tpu_custom_call.1} parent=11 // pred_check_branch
          %399 = sbr.rel (%p397) target = $region20
        $region19: #{tpu_custom_call.1} parent=11 // pred_region
          _
        $region20: #{tpu_custom_call.1} parent=11 // pred_fallthru
          _
        // Predicated region
        $region21: #{tpu_custom_call.1} parent=11 // pred_check
          %p400 = pneg %p206
        $region22: #{tpu_custom_call.1} parent=11 // pred_check_branch
          %402 = sbr.rel (%p400) target = $region24
        $region23: #{tpu_custom_call.1} parent=11 // pred_region
          _
        $region24: #{tpu_custom_call.1} parent=11 // pred_fallthru
          _
        // Predicated region
        $region25: #{tpu_custom_call.1} parent=11 // pred_check
          %p403 = pneg %p227
        $region26: #{tpu_custom_call.1} parent=11 // pred_check_branch
          %405 = sbr.rel (%p403) target = $region28
        $region27: #{tpu_custom_call.1} parent=11 // pred_region
          _
        $region28: #{tpu_custom_call.1} parent=11 // pred_fallthru
          _
        // Predicated region
        $region29: #{tpu_custom_call.1} parent=11 // pred_check
          %p406 = pneg %p248
        $region30: #{tpu_custom_call.1} parent=11 // pred_check_branch
          %408 = sbr.rel (%p406) target = $region32
        $region31: #{tpu_custom_call.1} parent=11 // pred_region
          _
        $region32: #{tpu_custom_call.1} parent=11 // pred_fallthru
          _
        // Predicated region
        $region33: #{tpu_custom_call.1} parent=11 // pred_check
          %p409 = pneg %p269
        $region34: #{tpu_custom_call.1} parent=11 // pred_check_branch
          %411 = sbr.rel (%p409) target = $region36
        $region35: #{tpu_custom_call.1} parent=11 // pred_region
          _
        $region36: #{tpu_custom_call.1} parent=11 // pred_fallthru
          _
        // Predicated region
        $region37: #{tpu_custom_call.1} parent=11 // pred_check
          %p412 = pneg %p290
        $region38: #{tpu_custom_call.1} parent=11 // pred_check_branch
          %414 = sbr.rel (%p412) target = $region40
        $region39: #{tpu_custom_call.1} parent=11 // pred_region
          _
        $region40: #{tpu_custom_call.1} parent=11 // pred_fallthru
          _
        // Predicated region
        $region41: #{tpu_custom_call.1} parent=11 // pred_check
          %p415 = pneg %p311
        $region42: #{tpu_custom_call.1} parent=11 // pred_check_branch
          %417 = sbr.rel (%p415) target = $region44
        $region43: #{tpu_custom_call.1} parent=11 // pred_region
          _
        $region44: #{tpu_custom_call.1} parent=11 // pred_fallthru
          _
        // Predicated region
        $region45: #{tpu_custom_call.1} parent=11 // pred_check
          %p418 = pneg %p332
        $region46: #{tpu_custom_call.1} parent=11 // pred_check_branch
          %420 = sbr.rel (%p418) target = $region48
        $region47: #{tpu_custom_call.1} parent=11 // pred_region
          _
        $region48: #{tpu_custom_call.1} parent=11 // pred_fallthru
          _
        // Predicated region
        $region49: #{tpu_custom_call.1} parent=11 // pred_check
          %p421 = pneg %p353
        $region50: #{tpu_custom_call.1} parent=11 // pred_check_branch
          %423 = sbr.rel (%p421) target = $region52
        $region51: #{tpu_custom_call.1} parent=11 // pred_region
          _
        $region52: #{tpu_custom_call.1} parent=11 // pred_fallthru
          _
      $region12: #{tpu_custom_call.1} parent=5 // pred_fallthru
        _
      %p424 = scmp.lt.s32.totalorder %s23, 8
      // Predicated region
      $region53: #{tpu_custom_call.1} parent=5 // pred_check
        %p425 = pneg %p424
      $region54: #{tpu_custom_call.1} parent=5 // pred_check_branch
        %427 = sbr.rel (%p425) target = $region56
      $region55: #{tpu_custom_call.1} parent=5 // pred_region
        // Predicated region
        $region57: #{tpu_custom_call.1} parent=55 // pred_check
          %p428 = pneg %p55
        $region58: #{tpu_custom_call.1} parent=55 // pred_check_branch
          %430 = sbr.rel (%p428) target = $region60
        $region59: #{tpu_custom_call.1} parent=55 // pred_region
          %p431 = scmp.lt.s32.totalorder %s30, 1
          %s432 = scalar_select %p431, %s30, 1
          %s433 = smul.addr %s432, 8
          %s434 = scalar_lea.vmem %s0, %s433
        $region60: #{tpu_custom_call.1} parent=55 // pred_fallthru
          _
        // Predicated region
        $region61: #{tpu_custom_call.1} parent=55 // pred_check
          %p435 = pneg %p81
        $region62: #{tpu_custom_call.1} parent=55 // pred_check_branch
          %437 = sbr.rel (%p435) target = $region64
        $region63: #{tpu_custom_call.1} parent=55 // pred_region
          %p438 = scmp.lt.s32.totalorder %s30, 1
          %s439 = scalar_select %p438, %s30, 1
          %s440 = smul.addr %s439, 8
          %s441 = scalar_lea.vmem %s1, %s440
        $region64: #{tpu_custom_call.1} parent=55 // pred_fallthru
          _
        // Predicated region
        $region65: #{tpu_custom_call.1} parent=55 // pred_check
          %p442 = pneg %p109
        $region66: #{tpu_custom_call.1} parent=55 // pred_check_branch
          %444 = sbr.rel (%p442) target = $region68
        $region67: #{tpu_custom_call.1} parent=55 // pred_region
          %s445 = smul.u32 2, %s31
          %p446 = scmp.lt.s32.totalorder %s30, 1
          %s447 = scalar_select %p446, %s30, 1
          %p448 = scmp.lt.s32.totalorder %s445, 7
          %s449 = scalar_select %p448, %s445, 7
          %s450 = smul.addr %s447, 8
          %s451 = sadd.s32 %s449, %s450
          %s452 = smul.addr %s451, 8
          %s453 = scalar_lea.vmem %s2, %s452
          %s454 = smul.u32 2, %s31
        $region68: #{tpu_custom_call.1} parent=55 // pred_fallthru
          _
        // Predicated region
        $region69: #{tpu_custom_call.1} parent=55 // pred_check
          %p455 = pneg %p137
        $region70: #{tpu_custom_call.1} parent=55 // pred_check_branch
          %457 = sbr.rel (%p455) target = $region72
        $region71: #{tpu_custom_call.1} parent=55 // pred_region
          %s458 = smul.u32 2, %s31
          %p459 = scmp.lt.s32.totalorder %s30, 1
          %s460 = scalar_select %p459, %s30, 1
          %p461 = scmp.lt.s32.totalorder %s458, 7
          %s462 = scalar_select %p461, %s458, 7
          %s463 = smul.addr %s460, 8
          %s464 = sadd.s32 %s462, %s463
          %s465 = smul.addr %s464, 8
          %s466 = scalar_lea.vmem %s3, %s465
          %s467 = smul.u32 2, %s31
        $region72: #{tpu_custom_call.1} parent=55 // pred_fallthru
          _
      $region56: #{tpu_custom_call.1} parent=5 // pred_fallthru
        _
      %p468 = scmp.le.s32.totalorder 1, %s23
      %p469 = scmp.lt.s32.totalorder %s23, 9
      %p470 = pnand %p468, %p469
      %p471 = pneg %p470
      // Predicated region
      $region73: #{tpu_custom_call.1} parent=5 // pred_check
        _
      $region74: #{tpu_custom_call.1} parent=5 // pred_check_branch
        %473 = sbr.rel (%p470) target = $region76
      $region75: #{tpu_custom_call.1} parent=5 // pred_region
        %s474 = ssub.s32 %s23, 1
        %p475 = scmp.lt.s32.totalorder %s32, 1
        %s476 = scalar_select %p475, %s32, 1
        %s477 = smul.addr %s476, 8
        %s478 = scalar_lea.vmem %s0, %s477
        %p479 = pneg %p61
        %p480 = pneg %p58
        %p481 = scmp.lt.s32.totalorder %s32, 1
        %s482 = scalar_select %p481, %s32, 1
        %s483 = smul.addr %s482, 8
        %s484 = scalar_lea.vmem %s1, %s483
        %p485 = pneg %p87
        %p486 = pneg %p84
        %s487 = smul.u32 2, %s33
        %p488 = scmp.lt.s32.totalorder %s32, 1
        %s489 = scalar_select %p488, %s32, 1
        %p490 = scmp.lt.s32.totalorder %s487, 7
        %s491 = scalar_select %p490, %s487, 7
        %s492 = smul.addr %s489, 8
        %s493 = sadd.s32 %s491, %s492
        %s494 = smul.addr %s493, 8
        %s495 = scalar_lea.vmem %s2, %s494
        %p496 = pneg %p115
        %p497 = pneg %p112
        %s498 = smul.u32 2, %s33
        %p499 = scmp.lt.s32.totalorder %s32, 1
        %s500 = scalar_select %p499, %s32, 1
        %p501 = scmp.lt.s32.totalorder %s498, 7
        %s502 = scalar_select %p501, %s498, 7
        %s503 = smul.addr %s500, 8
        %s504 = sadd.s32 %s502, %s503
        %s505 = smul.addr %s504, 8
        %s506 = scalar_lea.vmem %s3, %s505
        %p507 = pneg %p143
        %p508 = pneg %p140
        %p509 = pneg %p164
        %p510 = pneg %p161
        %p511 = pneg %p185
        %p512 = pneg %p182
        %p513 = pneg %p206
        %p514 = pneg %p203
        %p515 = pneg %p227
        %p516 = pneg %p224
        %p517 = pneg %p248
        %p518 = pneg %p245
        %p519 = pneg %p269
        %p520 = pneg %p266
        %p521 = pneg %p290
        %p522 = pneg %p287
        %p523 = pneg %p311
        %p524 = pneg %p308
        %p525 = pneg %p332
        %p526 = pneg %p329
        %p527 = pneg %p353
        %p528 = pneg %p350
        %p529 = pneg %p379
        %p530 = pneg %p376
        %s531 = sand.u32 %s366, 1
        %s532 = scalar_lea.sflag [#allocation7], %s531
        %s533 = sand.u32 %s366, 1
        %s534 = smul.addr %s533, 8
        %s535 = scalar_lea.vmem [#allocation6], %s534
        %p536 = scmp.lt.s32.totalorder %s32, 1
        %s537 = scalar_select %p536, %s32, 1
        %s538 = smul.addr %s537, 8
        %s539 = scalar_lea.vmem %s0, %s538
        %p540 = scmp.lt.s32.totalorder %s32, 1
        %s541 = scalar_select %p540, %s32, 1
        %s542 = smul.addr %s541, 8
        %s543 = scalar_lea.vmem %s1, %s542
        %s544 = smul.u32 2, %s33
        %p545 = scmp.lt.s32.totalorder %s32, 1
        %s546 = scalar_select %p545, %s32, 1
        %p547 = scmp.lt.s32.totalorder %s544, 7
        %s548 = scalar_select %p547, %s544, 7
        %s549 = smul.addr %s546, 8
        %s550 = sadd.s32 %s548, %s549
        %s551 = smul.addr %s550, 8
        %s552 = scalar_lea.vmem %s2, %s551
        %s553 = smul.u32 2, %s33
        %s554 = smul.u32 2, %s33
        %p555 = scmp.lt.s32.totalorder %s32, 1
        %s556 = scalar_select %p555, %s32, 1
        %p557 = scmp.lt.s32.totalorder %s554, 7
        %s558 = scalar_select %p557, %s554, 7
        %s559 = smul.addr %s556, 8
        %s560 = sadd.s32 %s558, %s559
        %s561 = smul.addr %s560, 8
        %s562 = scalar_lea.vmem %s3, %s561
        %s563 = smul.u32 2, %s33
        %p564 = scmp.eq.s32.totalorder %s33, 0
        // Predicated region
        $region77: #{tpu_custom_call.1} parent=75 // pred_check
          %p565 = pneg %p564
        $region78: #{tpu_custom_call.1} parent=75 // pred_check_branch
          %567 = sbr.rel (%p565) target = $region80
        $region79: #{tpu_custom_call.1} parent=75 // pred_region
          %v568 = vld [vmem:[%s539] sm:$0xff]
          %v569 = vld [vmem:[%s543] sm:$0xff]
          %v570 = vadd.f32 %v568, %v569
          %v571 = vld [vmem:[%s4] sm:$0xff]
          %v572 = vld [vmem:[%s4 + $0x8] sm:$0xff]
          %v573 = vld [vmem:[%s4 + $0x10] sm:$0xff]
          %v574 = vld [vmem:[%s4 + $0x18] sm:$0xff]
          %v575 = vld [vmem:[%s8] sm:$0x1]
          %v577 = vlaneseq
          %v578 = vshrl.u32 %v577, 7
          %v579 = vsub.s32 0, %v578
          %v580 = vrot.slane %v575, %v579
          %vm582 = vcmask 261120
          %v584 = vsel %vm582, %v570, 0
          %586 = vmatprep.subr.mxu0 0.0
          %587 = vmatpush1.msra.mxu0 0.0
          %588 = vmatprep.subr.mxu0 0.0
          %589 = vmatpush1.msra.mxu0 0.0
          %590 = vmatprep.subr.mxu0 0.0
          %591 = vmatpush1.msra.mxu0 0.0
          %592 = vmatprep.subr.mxu0 0.0
          %593 = vmatpush1.msra.mxu0 0.0
          %594 = vmatprep.subr.mxu0 0.0
          %595 = vmatpush1.msra.mxu0 0.0
          %596 = vmatprep.subr.mxu0 0.0
          %597 = vmatpush1.msra.mxu0 0.0
          %598 = vmatprep.subr.mxu0 0.0
          %599 = vmatpush1.msra.mxu0 0.0
          %600 = vmatprep.subr.mxu0 0.0
          %601 = vmatpush1.msra.mxu0 0.0
          %602 = vmatprep.subr.mxu0 0.0
          %603 = vmatpush1.msra.mxu0 0.0
          %604 = vmatprep.subr.mxu0 0.0
          %605 = vmatpush1.msra.mxu0 0.0
          %606 = vmatprep.subr.mxu0 0.0
          %607 = vmatpush1.msra.mxu0 0.0
          %608 = vmatprep.subr.mxu0 0.0
          %609 = vmatpush1.msra.mxu0 0.0
          %610 = vmatprep.subr.mxu0 0.0
          %611 = vmatpush1.msra.mxu0 %v574
          %612 = vmatprep.subr.mxu0 0.0
          %613 = vmatpush1.msra.mxu0 %v573
          %614 = vmatprep.subr.mxu0 0.0
          %615 = vmatpush1.msra.mxu0 %v572
          %616 = vmatprep.subr.mxu0 0.0
          %617 = vmatpush1.msra.mxu0 %v571
          %618 = vmatprep.subr.mxu0 0.0
          %619 = vmatpush2.msra.mxu0 0.0
          %620 = vmatprep.subr.mxu0 0.0
          %621 = vmatpush2.msra.mxu0 0.0
          %622 = vmatprep.subr.mxu0 0.0
          %623 = vmatpush2.msra.mxu0 0.0
          %624 = vmatprep.subr.mxu0 0.0
          %625 = vmatpush2.msra.mxu0 0.0
          %626 = vmatprep.subr.mxu0 0.0
          %627 = vmatpush2.msra.mxu0 0.0
          %628 = vmatprep.subr.mxu0 0.0
          %629 = vmatpush2.msra.mxu0 0.0
          %630 = vmatprep.subr.mxu0 0.0
          %631 = vmatpush2.msra.mxu0 0.0
          %632 = vmatprep.subr.mxu0 0.0
          %633 = vmatpush2.msra.mxu0 0.0
          %634 = vmatprep.subr.mxu0 0.0
          %635 = vmatpush2.msra.mxu0 0.0
          %636 = vmatprep.subr.mxu0 0.0
          %637 = vmatpush2.msra.mxu0 0.0
          %638 = vmatprep.subr.mxu0 0.0
          %639 = vmatpush2.msra.mxu0 0.0
          %640 = vmatprep.subr.mxu0 0.0
          %641 = vmatpush2.msra.mxu0 0.0
          %642 = vmatprep.subr.mxu0 0.0
          %643 = vmatpush2.msra.mxu0 0.0
          %644 = vmatprep.subr.mxu0 0.0
          %645 = vmatpush2.msra.mxu0 0.0
          %646 = vmatprep.subr.mxu0 0.0
          %647 = vmatpush2.msra.mxu0 0.0
          %648 = vmatprep.subr.mxu0 0.0
          %649 = vmatpush2.msra.mxu0 0.0
          %650 = vmatprep.mubr.f32.mxu0 0.0
          %651 = vmatmul.mubr.f32.gmra.mxu0 %v584
          %v652 = vpop.f32.mrf.mxu0
          %v653 = vadd.f32 %v580, %v652
          %v654 = vpop.f32.mrf.mxu0
          %655 = vdwg.mxu0
          %656 = vst.msk [vmem:[#allocation2] sm:$0xff] %vm582, %v653
          %vm657 = vcmask 7168
          %658 = vst.msk [vmem:[#allocation3] sm:$0xff] %vm657, -inf
          %659 = vst.msk [vmem:[#allocation3 + $0x8] sm:$0xff] %vm657, -inf
          %660 = vst.msk [vmem:[#allocation3 + $0x10] sm:$0xff] %vm657, -inf
          %661 = vst.msk [vmem:[#allocation3 + $0x18] sm:$0xff] %vm657, -inf
          %662 = vst.msk [vmem:[#allocation4] sm:$0xff] %vm657, 0.0
          %663 = vst.msk [vmem:[#allocation4 + $0x8] sm:$0xff] %vm657, 0.0
          %664 = vst.msk [vmem:[#allocation4 + $0x10] sm:$0xff] %vm657, 0.0
          %665 = vst.msk [vmem:[#allocation4 + $0x18] sm:$0xff] %vm657, 0.0
          %666 = vst.msk [vmem:[#allocation5] sm:$0xff] %vm582, 0.0
        $region80: #{tpu_custom_call.1} parent=75 // pred_fallthru
          _
        %v667 = vld [vmem:[%s552] sm:$0xff]
        %v668 = vld [vmem:[%s552 + $0x8] sm:$0xff]
        %v669 = vld [vmem:[%s562] sm:$0xff]
        %v670 = vld [vmem:[%s562 + $0x8] sm:$0xff]
        %v671 = vadd.f32 %v667, %v669
        %v672 = vadd.f32 %v668, %v670
        %v673 = vld [vmem:[%s5] sm:$0xff]
        %v674 = vld [vmem:[%s5 + $0x8] sm:$0xff]
        %v675 = vld [vmem:[%s5 + $0x10] sm:$0xff]
        %v676 = vld [vmem:[%s5 + $0x18] sm:$0xff]
        %v677 = vld [vmem:[%s9] sm:$0x1]
        %v679 = vlaneseq
        %v680 = vshrl.u32 %v679, 7
        %v681 = vsub.s32 0, %v680
        %v682 = vrot.slane %v677, %v681
        %vm684 = vcmask 261120
        %v686 = vsel %vm684, %v671, 0
        %v689 = vsel %vm684, %v672, 0
        %691 = vmatprep.subr.mxu0 0.0
        %692 = vmatpush1.msra.mxu0 0.0
        %693 = vmatprep.subr.mxu0 0.0
        %694 = vmatpush1.msra.mxu0 0.0
        %695 = vmatprep.subr.mxu0 0.0
        %696 = vmatpush1.msra.mxu0 0.0
        %697 = vmatprep.subr.mxu0 0.0
        %698 = vmatpush1.msra.mxu0 0.0
        %699 = vmatprep.subr.mxu0 0.0
        %700 = vmatpush1.msra.mxu0 0.0
        %701 = vmatprep.subr.mxu0 0.0
        %702 = vmatpush1.msra.mxu0 0.0
        %703 = vmatprep.subr.mxu0 0.0
        %704 = vmatpush1.msra.mxu0 0.0
        %705 = vmatprep.subr.mxu0 0.0
        %706 = vmatpush1.msra.mxu0 0.0
        %707 = vmatprep.subr.mxu0 0.0
        %708 = vmatpush1.msra.mxu0 0.0
        %709 = vmatprep.subr.mxu0 0.0
        %710 = vmatpush1.msra.mxu0 0.0
        %711 = vmatprep.subr.mxu0 0.0
        %712 = vmatpush1.msra.mxu0 0.0
        %713 = vmatprep.subr.mxu0 0.0
        %714 = vmatpush1.msra.mxu0 0.0
        %715 = vmatprep.subr.mxu0 0.0
        %716 = vmatpush1.msra.mxu0 %v676
        %717 = vmatprep.subr.mxu0 0.0
        %718 = vmatpush1.msra.mxu0 %v675
        %719 = vmatprep.subr.mxu0 0.0
        %720 = vmatpush1.msra.mxu0 %v674
        %721 = vmatprep.subr.mxu0 0.0
        %722 = vmatpush1.msra.mxu0 %v673
        %723 = vmatprep.subr.mxu0 0.0
        %724 = vmatpush2.msra.mxu0 0.0
        %725 = vmatprep.subr.mxu0 0.0
        %726 = vmatpush2.msra.mxu0 0.0
        %727 = vmatprep.subr.mxu0 0.0
        %728 = vmatpush2.msra.mxu0 0.0
        %729 = vmatprep.subr.mxu0 0.0
        %730 = vmatpush2.msra.mxu0 0.0
        %731 = vmatprep.subr.mxu0 0.0
        %732 = vmatpush2.msra.mxu0 0.0
        %733 = vmatprep.subr.mxu0 0.0
        %734 = vmatpush2.msra.mxu0 0.0
        %735 = vmatprep.subr.mxu0 0.0
        %736 = vmatpush2.msra.mxu0 0.0
        %737 = vmatprep.subr.mxu0 0.0
        %738 = vmatpush2.msra.mxu0 0.0
        %739 = vmatprep.subr.mxu0 0.0
        %740 = vmatpush2.msra.mxu0 0.0
        %741 = vmatprep.subr.mxu0 0.0
        %742 = vmatpush2.msra.mxu0 0.0
        %743 = vmatprep.subr.mxu0 0.0
        %744 = vmatpush2.msra.mxu0 0.0
        %745 = vmatprep.subr.mxu0 0.0
        %746 = vmatpush2.msra.mxu0 0.0
        %747 = vmatprep.subr.mxu0 0.0
        %748 = vmatpush2.msra.mxu0 0.0
        %749 = vmatprep.subr.mxu0 0.0
        %750 = vmatpush2.msra.mxu0 0.0
        %751 = vmatprep.subr.mxu0 0.0
        %752 = vmatpush2.msra.mxu0 0.0
        %753 = vmatprep.subr.mxu0 0.0
        %754 = vmatpush2.msra.mxu0 0.0
        %755 = vmatprep.mubr.f32.mxu0 0.0
        %756 = vmatmul.mubr.f32.gmra.mxu0 %v686
        %v757 = vpop.f32.mrf.mxu0
        %v758 = vadd.f32 %v682, %v757
        %v759 = vpop.f32.mrf.mxu0
        %760 = vmatprep.mubr.f32.mxu0 0.0
        %761 = vmatmul.mubr.f32.gmra.mxu0 %v689
        %v762 = vpop.f32.mrf.mxu0
        %v763 = vadd.f32 %v682, %v762
        %v764 = vpop.f32.mrf.mxu0
        %765 = vdwg.mxu0
        %v766 = vld [vmem:[%s6] sm:$0xff]
        %v767 = vld [vmem:[%s6 + $0x8] sm:$0xff]
        %v768 = vld [vmem:[%s6 + $0x10] sm:$0xff]
        %v769 = vld [vmem:[%s6 + $0x18] sm:$0xff]
        %v770 = vld [vmem:[%s10] sm:$0x1]
        %v772 = vlaneseq
        %v773 = vshrl.u32 %v772, 7
        %v774 = vsub.s32 0, %v773
        %v775 = vrot.slane %v770, %v774
        %v778 = vsel %vm684, %v667, 0
        %v781 = vsel %vm684, %v668, 0
        %783 = vmatprep.subr.mxu0 0.0
        %784 = vmatpush1.msra.mxu0 0.0
        %785 = vmatprep.subr.mxu0 0.0
        %786 = vmatpush1.msra.mxu0 0.0
        %787 = vmatprep.subr.mxu0 0.0
        %788 = vmatpush1.msra.mxu0 0.0
        %789 = vmatprep.subr.mxu0 0.0
        %790 = vmatpush1.msra.mxu0 0.0
        %791 = vmatprep.subr.mxu0 0.0
        %792 = vmatpush1.msra.mxu0 0.0
        %793 = vmatprep.subr.mxu0 0.0
        %794 = vmatpush1.msra.mxu0 0.0
        %795 = vmatprep.subr.mxu0 0.0
        %796 = vmatpush1.msra.mxu0 0.0
        %797 = vmatprep.subr.mxu0 0.0
        %798 = vmatpush1.msra.mxu0 0.0
        %799 = vmatprep.subr.mxu0 0.0
        %800 = vmatpush1.msra.mxu0 0.0
        %801 = vmatprep.subr.mxu0 0.0
        %802 = vmatpush1.msra.mxu0 0.0
        %803 = vmatprep.subr.mxu0 0.0
        %804 = vmatpush1.msra.mxu0 0.0
        %805 = vmatprep.subr.mxu0 0.0
        %806 = vmatpush1.msra.mxu0 0.0
        %807 = vmatprep.subr.mxu0 0.0
        %808 = vmatpush1.msra.mxu0 %v769
        %809 = vmatprep.subr.mxu0 0.0
        %810 = vmatpush1.msra.mxu0 %v768
        %811 = vmatprep.subr.mxu0 0.0
        %812 = vmatpush1.msra.mxu0 %v767
        %813 = vmatprep.subr.mxu0 0.0
        %814 = vmatpush1.msra.mxu0 %v766
        %815 = vmatprep.subr.mxu0 0.0
        %816 = vmatpush2.msra.mxu0 0.0
        %817 = vmatprep.subr.mxu0 0.0
        %818 = vmatpush2.msra.mxu0 0.0
        %819 = vmatprep.subr.mxu0 0.0
        %820 = vmatpush2.msra.mxu0 0.0
        %821 = vmatprep.subr.mxu0 0.0
        %822 = vmatpush2.msra.mxu0 0.0
        %823 = vmatprep.subr.mxu0 0.0
        %824 = vmatpush2.msra.mxu0 0.0
        %825 = vmatprep.subr.mxu0 0.0
        %826 = vmatpush2.msra.mxu0 0.0
        %827 = vmatprep.subr.mxu0 0.0
        %828 = vmatpush2.msra.mxu0 0.0
        %829 = vmatprep.subr.mxu0 0.0
        %830 = vmatpush2.msra.mxu0 0.0
        %831 = vmatprep.subr.mxu0 0.0
        %832 = vmatpush2.msra.mxu0 0.0
        %833 = vmatprep.subr.mxu0 0.0
        %834 = vmatpush2.msra.mxu0 0.0
        %835 = vmatprep.subr.mxu0 0.0
        %836 = vmatpush2.msra.mxu0 0.0
        %837 = vmatprep.subr.mxu0 0.0
        %838 = vmatpush2.msra.mxu0 0.0
        %839 = vmatprep.subr.mxu0 0.0
        %840 = vmatpush2.msra.mxu0 0.0
        %841 = vmatprep.subr.mxu0 0.0
        %842 = vmatpush2.msra.mxu0 0.0
        %843 = vmatprep.subr.mxu0 0.0
        %844 = vmatpush2.msra.mxu0 0.0
        %845 = vmatprep.subr.mxu0 0.0
        %846 = vmatpush2.msra.mxu0 0.0
        %847 = vmatprep.mubr.f32.mxu0 0.0
        %848 = vmatmul.mubr.f32.gmra.mxu0 %v778
        %v849 = vpop.f32.mrf.mxu0
        %v850 = vadd.f32 %v775, %v849
        %v851 = vpop.f32.mrf.mxu0
        %852 = vmatprep.mubr.f32.mxu0 0.0
        %853 = vmatmul.mubr.f32.gmra.mxu0 %v781
        %v854 = vpop.f32.mrf.mxu0
        %v855 = vadd.f32 %v775, %v854
        %v856 = vpop.f32.mrf.mxu0
        %857 = vdwg.mxu0
        %v858 = vld [vmem:[#allocation2] sm:$0xff]
        %vm859 = vcmask 64512
        %v861 = vsel %vm859, %v858, 0
        %v864 = vsel %vm859, %v758, 0
        %v867 = vsel %vm859, %v763, 0
        %869 = vmatprep.subr.mxu0 0.0
        %870 = vmatpush1.xpose.msra.mxu0 0.0
        %871 = vmatprep.subr.mxu0 0.0
        %872 = vmatpush1.xpose.msra.mxu0 0.0
        %873 = vmatprep.subr.mxu0 0.0
        %874 = vmatpush1.xpose.msra.mxu0 0.0
        %875 = vmatprep.subr.mxu0 0.0
        %876 = vmatpush1.xpose.msra.mxu0 0.0
        %877 = vmatprep.subr.mxu0 0.0
        %878 = vmatpush1.xpose.msra.mxu0 0.0
        %879 = vmatprep.subr.mxu0 0.0
        %880 = vmatpush1.xpose.msra.mxu0 0.0
        %881 = vmatprep.subr.mxu0 0.0
        %882 = vmatpush1.xpose.msra.mxu0 0.0
        %883 = vmatprep.subr.mxu0 0.0
        %884 = vmatpush1.xpose.msra.mxu0 0.0
        %885 = vmatprep.subr.mxu0 0.0
        %886 = vmatpush1.xpose.msra.mxu0 0.0
        %887 = vmatprep.subr.mxu0 0.0
        %888 = vmatpush1.xpose.msra.mxu0 0.0
        %889 = vmatprep.subr.mxu0 0.0
        %890 = vmatpush1.xpose.msra.mxu0 0.0
        %891 = vmatprep.subr.mxu0 0.0
        %892 = vmatpush1.xpose.msra.mxu0 0.0
        %893 = vmatprep.subr.mxu0 0.0
        %894 = vmatpush1.xpose.msra.mxu0 0.0
        %895 = vmatprep.subr.mxu0 0.0
        %896 = vmatpush1.xpose.msra.mxu0 0.0
        %897 = vmatprep.subr.mxu0 0.0
        %898 = vmatpush1.xpose.msra.mxu0 %v867
        %899 = vmatprep.subr.mxu0 0.0
        %900 = vmatpush1.xpose.msra.mxu0 %v864
        %901 = vmatprep.subr.mxu0 0.0
        %902 = vmatpush2.xpose.msra.mxu0 0.0
        %903 = vmatprep.subr.mxu0 0.0
        %904 = vmatpush2.xpose.msra.mxu0 0.0
        %905 = vmatprep.subr.mxu0 0.0
        %906 = vmatpush2.xpose.msra.mxu0 0.0
        %907 = vmatprep.subr.mxu0 0.0
        %908 = vmatpush2.xpose.msra.mxu0 0.0
        %909 = vmatprep.subr.mxu0 0.0
        %910 = vmatpush2.xpose.msra.mxu0 0.0
        %911 = vmatprep.subr.mxu0 0.0
        %912 = vmatpush2.xpose.msra.mxu0 0.0
        %913 = vmatprep.subr.mxu0 0.0
        %914 = vmatpush2.xpose.msra.mxu0 0.0
        %915 = vmatprep.subr.mxu0 0.0
        %916 = vmatpush2.xpose.msra.mxu0 0.0
        %917 = vmatprep.subr.mxu0 0.0
        %918 = vmatpush2.xpose.msra.mxu0 0.0
        %919 = vmatprep.subr.mxu0 0.0
        %920 = vmatpush2.xpose.msra.mxu0 0.0
        %921 = vmatprep.subr.mxu0 0.0
        %922 = vmatpush2.xpose.msra.mxu0 0.0
        %923 = vmatprep.subr.mxu0 0.0
        %924 = vmatpush2.xpose.msra.mxu0 0.0
        %925 = vmatprep.subr.mxu0 0.0
        %926 = vmatpush2.xpose.msra.mxu0 0.0
        %927 = vmatprep.subr.mxu0 0.0
        %928 = vmatpush2.xpose.msra.mxu0 0.0
        %929 = vmatprep.subr.mxu0 0.0
        %930 = vmatpush2.xpose.msra.mxu0 0.0
        %931 = vmatprep.subr.mxu0 0.0
        %932 = vmatpush2.xpose.msra.mxu0 0.0
        %933 = vmatprep.mubr.f32.mxu0 0.0
        %934 = vmatmul.mubr.f32.gmra.mxu0 %v861
        %v935 = vpop.f32.mrf.mxu0
        %v936 = vadd.f32 0.0, %v935
        %v937 = vpop.f32.mrf.mxu0
        %938 = vdwg.mxu0
        %v939 = vld [vmem:[#allocation3] sm:$0xff]
        %vm940 = vcmask 130048
        %v941 = vsel %vm940, %v936, -inf
        %942 = vmax.xlane.f32.xlu0 %v941
        %v943 = vpop.xlane.xlu0 %942
        %v944 = vmax.f32 %v939, %v943
        %v945 = vsub.f32 %v939, %v944
        %v946 = vmul.f32 %v945, 1.442695
        %v947 = vpow.pop %v946
        %949 = vset.pattern.permute.xlu0 0
        %950 = vperm.xlu0 %949, %v944
        %v951 = vpop.permute.xlu0 %950
        %v953 = vsub.f32 %v936, %v951
        %v954 = vmul.f32 %v953, 1.442695
        %v955 = vpow.pop %v954
        %v956 = vld [vmem:[#allocation4] sm:$0xff]
        %v957 = vmul.f32 %v947, %v956
        %v958 = vsel %vm940, %v955, 0.0
        %959 = vadd.xlane.f32.xlu0 %v958
        %v960 = vpop.xlane.xlu0 %959
        %v961 = vadd.f32 %v957, %v960
        %vm962 = vcmask 7168
        %963 = vst.msk [vmem:[#allocation4] sm:$0xff] %vm962, %v961
        %v965 = vsel %vm940, %v955, 0
        %967 = vmatprep.subr.mxu0 0.0
        %968 = vmatpush1.msra.mxu0 0.0
        %969 = vmatprep.subr.mxu0 0.0
        %970 = vmatpush1.msra.mxu0 0.0
        %971 = vmatprep.subr.mxu0 0.0
        %972 = vmatpush1.msra.mxu0 0.0
        %973 = vmatprep.subr.mxu0 0.0
        %974 = vmatpush1.msra.mxu0 0.0
        %975 = vmatprep.subr.mxu0 0.0
        %976 = vmatpush1.msra.mxu0 0.0
        %977 = vmatprep.subr.mxu0 0.0
        %978 = vmatpush1.msra.mxu0 0.0
        %979 = vmatprep.subr.mxu0 0.0
        %980 = vmatpush1.msra.mxu0 0.0
        %981 = vmatprep.subr.mxu0 0.0
        %982 = vmatpush1.msra.mxu0 0.0
        %983 = vmatprep.subr.mxu0 0.0
        %984 = vmatpush1.msra.mxu0 0.0
        %985 = vmatprep.subr.mxu0 0.0
        %986 = vmatpush1.msra.mxu0 0.0
        %987 = vmatprep.subr.mxu0 0.0
        %988 = vmatpush1.msra.mxu0 0.0
        %989 = vmatprep.subr.mxu0 0.0
        %990 = vmatpush1.msra.mxu0 0.0
        %991 = vmatprep.subr.mxu0 0.0
        %992 = vmatpush1.msra.mxu0 0.0
        %993 = vmatprep.subr.mxu0 0.0
        %994 = vmatpush1.msra.mxu0 0.0
        %995 = vmatprep.subr.mxu0 0.0
        %996 = vmatpush1.msra.mxu0 %v855
        %997 = vmatprep.subr.mxu0 0.0
        %998 = vmatpush1.msra.mxu0 %v850
        %999 = vmatprep.subr.mxu0 0.0
        %1000 = vmatpush2.msra.mxu0 0.0
        %1001 = vmatprep.subr.mxu0 0.0
        %1002 = vmatpush2.msra.mxu0 0.0
        %1003 = vmatprep.subr.mxu0 0.0
        %1004 = vmatpush2.msra.mxu0 0.0
        %1005 = vmatprep.subr.mxu0 0.0
        %1006 = vmatpush2.msra.mxu0 0.0
        %1007 = vmatprep.subr.mxu0 0.0
        %1008 = vmatpush2.msra.mxu0 0.0
        %1009 = vmatprep.subr.mxu0 0.0
        %1010 = vmatpush2.msra.mxu0 0.0
        %1011 = vmatprep.subr.mxu0 0.0
        %1012 = vmatpush2.msra.mxu0 0.0
        %1013 = vmatprep.subr.mxu0 0.0
        %1014 = vmatpush2.msra.mxu0 0.0
        %1015 = vmatprep.subr.mxu0 0.0
        %1016 = vmatpush2.msra.mxu0 0.0
        %1017 = vmatprep.subr.mxu0 0.0
        %1018 = vmatpush2.msra.mxu0 0.0
        %1019 = vmatprep.subr.mxu0 0.0
        %1020 = vmatpush2.msra.mxu0 0.0
        %1021 = vmatprep.subr.mxu0 0.0
        %1022 = vmatpush2.msra.mxu0 0.0
        %1023 = vmatprep.subr.mxu0 0.0
        %1024 = vmatpush2.msra.mxu0 0.0
        %1025 = vmatprep.subr.mxu0 0.0
        %1026 = vmatpush2.msra.mxu0 0.0
        %1027 = vmatprep.subr.mxu0 0.0
        %1028 = vmatpush2.msra.mxu0 0.0
        %1029 = vmatprep.subr.mxu0 0.0
        %1030 = vmatpush2.msra.mxu0 0.0
        %1031 = vmatprep.mubr.f32.mxu0 0.0
        %1032 = vmatmul.mubr.f32.gmra.mxu0 %v965
        %v1033 = vpop.f32.mrf.mxu0
        %v1034 = vadd.f32 0.0, %v1033
        %v1035 = vpop.f32.mrf.mxu0
        %1036 = vdwg.mxu0
        %v1037 = vld [vmem:[#allocation5] sm:$0xff]
        %1039 = vset.pattern.permute.xlu0 0
        %1040 = vperm.xlu0 %1039, %v947
        %v1041 = vpop.permute.xlu0 %1040
        %v1043 = vmul.f32 %v1041, %v1037
        %v1044 = vadd.f32 %v1043, %v1034
        %1045 = vst.msk [vmem:[#allocation5] sm:$0xff] %vm859, %v1044
        %1046 = vst.msk [vmem:[#allocation3] sm:$0xff] %vm962, %v944
        %1047 = vrot.lane.b32.xlu0 %v858, 120
        %v1048 = vpop.permute.xlu0 %1047
        %1049 = vrot.lane.b32.xlu0 %v758, 120
        %v1050 = vpop.permute.xlu0 %1049
        %1051 = vrot.lane.b32.xlu0 %v763, 120
        %v1052 = vpop.permute.xlu0 %1051
        %v1053 = vsel %vm859, %v1048, 0
        %v1055 = vsel %vm859, %v1050, 0
        %v1057 = vsel %vm859, %v1052, 0
        %1059 = vmatprep.subr.mxu0 0.0
        %1060 = vmatpush1.xpose.msra.mxu0 0.0
        %1061 = vmatprep.subr.mxu0 0.0
        %1062 = vmatpush1.xpose.msra.mxu0 0.0
        %1063 = vmatprep.subr.mxu0 0.0
        %1064 = vmatpush1.xpose.msra.mxu0 0.0
        %1065 = vmatprep.subr.mxu0 0.0
        %1066 = vmatpush1.xpose.msra.mxu0 0.0
        %1067 = vmatprep.subr.mxu0 0.0
        %1068 = vmatpush1.xpose.msra.mxu0 0.0
        %1069 = vmatprep.subr.mxu0 0.0
        %1070 = vmatpush1.xpose.msra.mxu0 0.0
        %1071 = vmatprep.subr.mxu0 0.0
        %1072 = vmatpush1.xpose.msra.mxu0 0.0
        %1073 = vmatprep.subr.mxu0 0.0
        %1074 = vmatpush1.xpose.msra.mxu0 0.0
        %1075 = vmatprep.subr.mxu0 0.0
        %1076 = vmatpush1.xpose.msra.mxu0 0.0
        %1077 = vmatprep.subr.mxu0 0.0
        %1078 = vmatpush1.xpose.msra.mxu0 0.0
        %1079 = vmatprep.subr.mxu0 0.0
        %1080 = vmatpush1.xpose.msra.mxu0 0.0
        %1081 = vmatprep.subr.mxu0 0.0
        %1082 = vmatpush1.xpose.msra.mxu0 0.0
        %1083 = vmatprep.subr.mxu0 0.0
        %1084 = vmatpush1.xpose.msra.mxu0 0.0
        %1085 = vmatprep.subr.mxu0 0.0
        %1086 = vmatpush1.xpose.msra.mxu0 0.0
        %1087 = vmatprep.subr.mxu0 0.0
        %1088 = vmatpush1.xpose.msra.mxu0 %v1057
        %1089 = vmatprep.subr.mxu0 0.0
        %1090 = vmatpush1.xpose.msra.mxu0 %v1055
        %1091 = vmatprep.subr.mxu0 0.0
        %1092 = vmatpush2.xpose.msra.mxu0 0.0
        %1093 = vmatprep.subr.mxu0 0.0
        %1094 = vmatpush2.xpose.msra.mxu0 0.0
        %1095 = vmatprep.subr.mxu0 0.0
        %1096 = vmatpush2.xpose.msra.mxu0 0.0
        %1097 = vmatprep.subr.mxu0 0.0
        %1098 = vmatpush2.xpose.msra.mxu0 0.0
        %1099 = vmatprep.subr.mxu0 0.0
        %1100 = vmatpush2.xpose.msra.mxu0 0.0
        %1101 = vmatprep.subr.mxu0 0.0
        %1102 = vmatpush2.xpose.msra.mxu0 0.0
        %1103 = vmatprep.subr.mxu0 0.0
        %1104 = vmatpush2.xpose.msra.mxu0 0.0
        %1105 = vmatprep.subr.mxu0 0.0
        %1106 = vmatpush2.xpose.msra.mxu0 0.0
        %1107 = vmatprep.subr.mxu0 0.0
        %1108 = vmatpush2.xpose.msra.mxu0 0.0
        %1109 = vmatprep.subr.mxu0 0.0
        %1110 = vmatpush2.xpose.msra.mxu0 0.0
        %1111 = vmatprep.subr.mxu0 0.0
        %1112 = vmatpush2.xpose.msra.mxu0 0.0
        %1113 = vmatprep.subr.mxu0 0.0
        %1114 = vmatpush2.xpose.msra.mxu0 0.0
        %1115 = vmatprep.subr.mxu0 0.0
        %1116 = vmatpush2.xpose.msra.mxu0 0.0
        %1117 = vmatprep.subr.mxu0 0.0
        %1118 = vmatpush2.xpose.msra.mxu0 0.0
        %1119 = vmatprep.subr.mxu0 0.0
        %1120 = vmatpush2.xpose.msra.mxu0 0.0
        %1121 = vmatprep.subr.mxu0 0.0
        %1122 = vmatpush2.xpose.msra.mxu0 0.0
        %1123 = vmatprep.mubr.f32.mxu0 0.0
        %1124 = vmatmul.mubr.f32.gmra.mxu0 %v1053
        %v1125 = vpop.f32.mrf.mxu0
        %v1126 = vadd.f32 0.0, %v1125
        %v1127 = vpop.f32.mrf.mxu0
        %1128 = vdwg.mxu0
        %s1129 = scalar_lea.vmem [#allocation3], 8
        %v1130 = vld [vmem:[%s1129] sm:$0xff]
        %v1131 = vsel %vm940, %v1126, -inf
        %1132 = vmax.xlane.f32.xlu0 %v1131
        %v1133 = vpop.xlane.xlu0 %1132
        %v1134 = vmax.f32 %v1130, %v1133
        %v1135 = vsub.f32 %v1130, %v1134
        %v1136 = vmul.f32 %v1135, 1.442695
        %v1137 = vpow.pop %v1136
        %1139 = vset.pattern.permute.xlu0 0
        %1140 = vperm.xlu0 %1139, %v1134
        %v1141 = vpop.permute.xlu0 %1140
        %v1143 = vsub.f32 %v1126, %v1141
        %v1144 = vmul.f32 %v1143, 1.442695
        %v1145 = vpow.pop %v1144
        %s1146 = scalar_lea.vmem [#allocation4], 8
        %v1147 = vld [vmem:[%s1146] sm:$0xff]
        %v1148 = vmul.f32 %v1137, %v1147
        %v1149 = vsel %vm940, %v1145, 0.0
        %1150 = vadd.xlane.f32.xlu0 %v1149
        %v1151 = vpop.xlane.xlu0 %1150
        %v1152 = vadd.f32 %v1148, %v1151
        %1153 = vst.msk [vmem:[%s1146] sm:$0xff] %vm962, %v1152
        %1156 = vrot.lane.b32.xlu0 %v850, 120
        %v1157 = vpop.permute.xlu0 %1156
        %1158 = vrot.lane.b32.xlu0 %v855, 120
        %v1159 = vpop.permute.xlu0 %1158
        %v1163 = vsel %vm940, %v1145, 0
        %1165 = vmatprep.subr.mxu0 0.0
        %1166 = vmatpush1.msra.mxu0 0.0
        %1167 = vmatprep.subr.mxu0 0.0
        %1168 = vmatpush1.msra.mxu0 0.0
        %1169 = vmatprep.subr.mxu0 0.0
        %1170 = vmatpush1.msra.mxu0 0.0
        %1171 = vmatprep.subr.mxu0 0.0
        %1172 = vmatpush1.msra.mxu0 0.0
        %1173 = vmatprep.subr.mxu0 0.0
        %1174 = vmatpush1.msra.mxu0 0.0
        %1175 = vmatprep.subr.mxu0 0.0
        %1176 = vmatpush1.msra.mxu0 0.0
        %1177 = vmatprep.subr.mxu0 0.0
        %1178 = vmatpush1.msra.mxu0 0.0
        %1179 = vmatprep.subr.mxu0 0.0
        %1180 = vmatpush1.msra.mxu0 0.0
        %1181 = vmatprep.subr.mxu0 0.0
        %1182 = vmatpush1.msra.mxu0 0.0
        %1183 = vmatprep.subr.mxu0 0.0
        %1184 = vmatpush1.msra.mxu0 0.0
        %1185 = vmatprep.subr.mxu0 0.0
        %1186 = vmatpush1.msra.mxu0 0.0
        %1187 = vmatprep.subr.mxu0 0.0
        %1188 = vmatpush1.msra.mxu0 0.0
        %1189 = vmatprep.subr.mxu0 0.0
        %1190 = vmatpush1.msra.mxu0 0.0
        %1191 = vmatprep.subr.mxu0 0.0
        %1192 = vmatpush1.msra.mxu0 0.0
        %1193 = vmatprep.subr.mxu0 0.0
        %1194 = vmatpush1.msra.mxu0 %v1159
        %1195 = vmatprep.subr.mxu0 0.0
        %1196 = vmatpush1.msra.mxu0 %v1157
        %1197 = vmatprep.subr.mxu0 0.0
        %1198 = vmatpush2.msra.mxu0 0.0
        %1199 = vmatprep.subr.mxu0 0.0
        %1200 = vmatpush2.msra.mxu0 0.0
        %1201 = vmatprep.subr.mxu0 0.0
        %1202 = vmatpush2.msra.mxu0 0.0
        %1203 = vmatprep.subr.mxu0 0.0
        %1204 = vmatpush2.msra.mxu0 0.0
        %1205 = vmatprep.subr.mxu0 0.0
        %1206 = vmatpush2.msra.mxu0 0.0
        %1207 = vmatprep.subr.mxu0 0.0
        %1208 = vmatpush2.msra.mxu0 0.0
        %1209 = vmatprep.subr.mxu0 0.0
        %1210 = vmatpush2.msra.mxu0 0.0
        %1211 = vmatprep.subr.mxu0 0.0
        %1212 = vmatpush2.msra.mxu0 0.0
        %1213 = vmatprep.subr.mxu0 0.0
        %1214 = vmatpush2.msra.mxu0 0.0
        %1215 = vmatprep.subr.mxu0 0.0
        %1216 = vmatpush2.msra.mxu0 0.0
        %1217 = vmatprep.subr.mxu0 0.0
        %1218 = vmatpush2.msra.mxu0 0.0
        %1219 = vmatprep.subr.mxu0 0.0
        %1220 = vmatpush2.msra.mxu0 0.0
        %1221 = vmatprep.subr.mxu0 0.0
        %1222 = vmatpush2.msra.mxu0 0.0
        %1223 = vmatprep.subr.mxu0 0.0
        %1224 = vmatpush2.msra.mxu0 0.0
        %1225 = vmatprep.subr.mxu0 0.0
        %1226 = vmatpush2.msra.mxu0 0.0
        %1227 = vmatprep.subr.mxu0 0.0
        %1228 = vmatpush2.msra.mxu0 0.0
        %1229 = vmatprep.mubr.f32.mxu0 0.0
        %1230 = vmatmul.mubr.f32.gmra.mxu0 %v1163
        %v1231 = vpop.f32.mrf.mxu0
        %v1232 = vadd.f32 0.0, %v1231
        %v1233 = vpop.f32.mrf.mxu0
        %1234 = vdwg.mxu0
        %v1235 = vld [vmem:[#allocation5] sm:$0xff]
        %1237 = vset.pattern.permute.xlu0 0
        %1238 = vperm.xlu0 %1237, %v1137
        %v1239 = vpop.permute.xlu0 %1238
        %v1241 = vmul.f32 %v1239, %v1235
        %1243 = vrot.lane.b32.xlu0 %v1232, 8
        %v1244 = vpop.permute.xlu0 %1243
        %v1246 = vadd.f32 %v1241, %v1244
        %vm1247 = vcmask 130112
        %1248 = vst.msk [vmem:[#allocation5] sm:$0xff] %vm1247, %v1246
        %1249 = vst.msk [vmem:[%s1129] sm:$0xff] %vm962, %v1134
        %1250 = vrot.lane.b32.xlu0 %v858, 112
        %v1251 = vpop.permute.xlu0 %1250
        %1252 = vrot.lane.b32.xlu0 %v758, 112
        %v1253 = vpop.permute.xlu0 %1252
        %1254 = vrot.lane.b32.xlu0 %v763, 112
        %v1255 = vpop.permute.xlu0 %1254
        %v1256 = vsel %vm859, %v1251, 0
        %v1258 = vsel %vm859, %v1253, 0
        %v1260 = vsel %vm859, %v1255, 0
        %1262 = vmatprep.subr.mxu0 0.0
        %1263 = vmatpush1.xpose.msra.mxu0 0.0
        %1264 = vmatprep.subr.mxu0 0.0
        %1265 = vmatpush1.xpose.msra.mxu0 0.0
        %1266 = vmatprep.subr.mxu0 0.0
        %1267 = vmatpush1.xpose.msra.mxu0 0.0
        %1268 = vmatprep.subr.mxu0 0.0
        %1269 = vmatpush1.xpose.msra.mxu0 0.0
        %1270 = vmatprep.subr.mxu0 0.0
        %1271 = vmatpush1.xpose.msra.mxu0 0.0
        %1272 = vmatprep.subr.mxu0 0.0
        %1273 = vmatpush1.xpose.msra.mxu0 0.0
        %1274 = vmatprep.subr.mxu0 0.0
        %1275 = vmatpush1.xpose.msra.mxu0 0.0
        %1276 = vmatprep.subr.mxu0 0.0
        %1277 = vmatpush1.xpose.msra.mxu0 0.0
        %1278 = vmatprep.subr.mxu0 0.0
        %1279 = vmatpush1.xpose.msra.mxu0 0.0
        %1280 = vmatprep.subr.mxu0 0.0
        %1281 = vmatpush1.xpose.msra.mxu0 0.0
        %1282 = vmatprep.subr.mxu0 0.0
        %1283 = vmatpush1.xpose.msra.mxu0 0.0
        %1284 = vmatprep.subr.mxu0 0.0
        %1285 = vmatpush1.xpose.msra.mxu0 0.0
        %1286 = vmatprep.subr.mxu0 0.0
        %1287 = vmatpush1.xpose.msra.mxu0 0.0
        %1288 = vmatprep.subr.mxu0 0.0
        %1289 = vmatpush1.xpose.msra.mxu0 0.0
        %1290 = vmatprep.subr.mxu0 0.0
        %1291 = vmatpush1.xpose.msra.mxu0 %v1260
        %1292 = vmatprep.subr.mxu0 0.0
        %1293 = vmatpush1.xpose.msra.mxu0 %v1258
        %1294 = vmatprep.subr.mxu0 0.0
        %1295 = vmatpush2.xpose.msra.mxu0 0.0
        %1296 = vmatprep.subr.mxu0 0.0
        %1297 = vmatpush2.xpose.msra.mxu0 0.0
        %1298 = vmatprep.subr.mxu0 0.0
        %1299 = vmatpush2.xpose.msra.mxu0 0.0
        %1300 = vmatprep.subr.mxu0 0.0
        %1301 = vmatpush2.xpose.msra.mxu0 0.0
        %1302 = vmatprep.subr.mxu0 0.0
        %1303 = vmatpush2.xpose.msra.mxu0 0.0
        %1304 = vmatprep.subr.mxu0 0.0
        %1305 = vmatpush2.xpose.msra.mxu0 0.0
        %1306 = vmatprep.subr.mxu0 0.0
        %1307 = vmatpush2.xpose.msra.mxu0 0.0
        %1308 = vmatprep.subr.mxu0 0.0
        %1309 = vmatpush2.xpose.msra.mxu0 0.0
        %1310 = vmatprep.subr.mxu0 0.0
        %1311 = vmatpush2.xpose.msra.mxu0 0.0
        %1312 = vmatprep.subr.mxu0 0.0
        %1313 = vmatpush2.xpose.msra.mxu0 0.0
        %1314 = vmatprep.subr.mxu0 0.0
        %1315 = vmatpush2.xpose.msra.mxu0 0.0
        %1316 = vmatprep.subr.mxu0 0.0
        %1317 = vmatpush2.xpose.msra.mxu0 0.0
        %1318 = vmatprep.subr.mxu0 0.0
        %1319 = vmatpush2.xpose.msra.mxu0 0.0
        %1320 = vmatprep.subr.mxu0 0.0
        %1321 = vmatpush2.xpose.msra.mxu0 0.0
        %1322 = vmatprep.subr.mxu0 0.0
        %1323 = vmatpush2.xpose.msra.mxu0 0.0
        %1324 = vmatprep.subr.mxu0 0.0
        %1325 = vmatpush2.xpose.msra.mxu0 0.0
        %1326 = vmatprep.mubr.f32.mxu0 0.0
        %1327 = vmatmul.mubr.f32.gmra.mxu0 %v1256
        %v1328 = vpop.f32.mrf.mxu0
        %v1329 = vadd.f32 0.0, %v1328
        %v1330 = vpop.f32.mrf.mxu0
        %1331 = vdwg.mxu0
        %s1332 = scalar_lea.vmem [#allocation3], 16
        %v1333 = vld [vmem:[%s1332] sm:$0xff]
        %v1334 = vsel %vm940, %v1329, -inf
        %1335 = vmax.xlane.f32.xlu0 %v1334
        %v1336 = vpop.xlane.xlu0 %1335
        %v1337 = vmax.f32 %v1333, %v1336
        %v1338 = vsub.f32 %v1333, %v1337
        %v1339 = vmul.f32 %v1338, 1.442695
        %v1340 = vpow.pop %v1339
        %1342 = vset.pattern.permute.xlu0 0
        %1343 = vperm.xlu0 %1342, %v1337
        %v1344 = vpop.permute.xlu0 %1343
        %v1346 = vsub.f32 %v1329, %v1344
        %v1347 = vmul.f32 %v1346, 1.442695
        %v1348 = vpow.pop %v1347
        %s1349 = scalar_lea.vmem [#allocation4], 16
        %v1350 = vld [vmem:[%s1349] sm:$0xff]
        %v1351 = vmul.f32 %v1340, %v1350
        %v1352 = vsel %vm940, %v1348, 0.0
        %1353 = vadd.xlane.f32.xlu0 %v1352
        %v1354 = vpop.xlane.xlu0 %1353
        %v1355 = vadd.f32 %v1351, %v1354
        %1356 = vst.msk [vmem:[%s1349] sm:$0xff] %vm962, %v1355
        %1357 = vrot.lane.b32.xlu0 %v850, 112
        %v1358 = vpop.permute.xlu0 %1357
        %1359 = vrot.lane.b32.xlu0 %v855, 112
        %v1360 = vpop.permute.xlu0 %1359
        %v1364 = vsel %vm940, %v1348, 0
        %1366 = vmatprep.subr.mxu0 0.0
        %1367 = vmatpush1.msra.mxu0 0.0
        %1368 = vmatprep.subr.mxu0 0.0
        %1369 = vmatpush1.msra.mxu0 0.0
        %1370 = vmatprep.subr.mxu0 0.0
        %1371 = vmatpush1.msra.mxu0 0.0
        %1372 = vmatprep.subr.mxu0 0.0
        %1373 = vmatpush1.msra.mxu0 0.0
        %1374 = vmatprep.subr.mxu0 0.0
        %1375 = vmatpush1.msra.mxu0 0.0
        %1376 = vmatprep.subr.mxu0 0.0
        %1377 = vmatpush1.msra.mxu0 0.0
        %1378 = vmatprep.subr.mxu0 0.0
        %1379 = vmatpush1.msra.mxu0 0.0
        %1380 = vmatprep.subr.mxu0 0.0
        %1381 = vmatpush1.msra.mxu0 0.0
        %1382 = vmatprep.subr.mxu0 0.0
        %1383 = vmatpush1.msra.mxu0 0.0
        %1384 = vmatprep.subr.mxu0 0.0
        %1385 = vmatpush1.msra.mxu0 0.0
        %1386 = vmatprep.subr.mxu0 0.0
        %1387 = vmatpush1.msra.mxu0 0.0
        %1388 = vmatprep.subr.mxu0 0.0
        %1389 = vmatpush1.msra.mxu0 0.0
        %1390 = vmatprep.subr.mxu0 0.0
        %1391 = vmatpush1.msra.mxu0 0.0
        %1392 = vmatprep.subr.mxu0 0.0
        %1393 = vmatpush1.msra.mxu0 0.0
        %1394 = vmatprep.subr.mxu0 0.0
        %1395 = vmatpush1.msra.mxu0 %v1360
        %1396 = vmatprep.subr.mxu0 0.0
        %1397 = vmatpush1.msra.mxu0 %v1358
        %1398 = vmatprep.subr.mxu0 0.0
        %1399 = vmatpush2.msra.mxu0 0.0
        %1400 = vmatprep.subr.mxu0 0.0
        %1401 = vmatpush2.msra.mxu0 0.0
        %1402 = vmatprep.subr.mxu0 0.0
        %1403 = vmatpush2.msra.mxu0 0.0
        %1404 = vmatprep.subr.mxu0 0.0
        %1405 = vmatpush2.msra.mxu0 0.0
        %1406 = vmatprep.subr.mxu0 0.0
        %1407 = vmatpush2.msra.mxu0 0.0
        %1408 = vmatprep.subr.mxu0 0.0
        %1409 = vmatpush2.msra.mxu0 0.0
        %1410 = vmatprep.subr.mxu0 0.0
        %1411 = vmatpush2.msra.mxu0 0.0
        %1412 = vmatprep.subr.mxu0 0.0
        %1413 = vmatpush2.msra.mxu0 0.0
        %1414 = vmatprep.subr.mxu0 0.0
        %1415 = vmatpush2.msra.mxu0 0.0
        %1416 = vmatprep.subr.mxu0 0.0
        %1417 = vmatpush2.msra.mxu0 0.0
        %1418 = vmatprep.subr.mxu0 0.0
        %1419 = vmatpush2.msra.mxu0 0.0
        %1420 = vmatprep.subr.mxu0 0.0
        %1421 = vmatpush2.msra.mxu0 0.0
        %1422 = vmatprep.subr.mxu0 0.0
        %1423 = vmatpush2.msra.mxu0 0.0
        %1424 = vmatprep.subr.mxu0 0.0
        %1425 = vmatpush2.msra.mxu0 0.0
        %1426 = vmatprep.subr.mxu0 0.0
        %1427 = vmatpush2.msra.mxu0 0.0
        %1428 = vmatprep.subr.mxu0 0.0
        %1429 = vmatpush2.msra.mxu0 0.0
        %1430 = vmatprep.mubr.f32.mxu0 0.0
        %1431 = vmatmul.mubr.f32.gmra.mxu0 %v1364
        %v1432 = vpop.f32.mrf.mxu0
        %v1433 = vadd.f32 0.0, %v1432
        %v1434 = vpop.f32.mrf.mxu0
        %1435 = vdwg.mxu0
        %v1436 = vld [vmem:[#allocation5] sm:$0xff]
        %1438 = vset.pattern.permute.xlu0 0
        %1439 = vperm.xlu0 %1438, %v1340
        %v1440 = vpop.permute.xlu0 %1439
        %v1442 = vmul.f32 %v1440, %v1436
        %1444 = vrot.lane.b32.xlu0 %v1433, 16
        %v1445 = vpop.permute.xlu0 %1444
        %v1447 = vadd.f32 %v1442, %v1445
        %vm1448 = vcmask 195712
        %1449 = vst.msk [vmem:[#allocation5] sm:$0xff] %vm1448, %v1447
        %1450 = vst.msk [vmem:[%s1332] sm:$0xff] %vm962, %v1337
        %1451 = vrot.lane.b32.xlu0 %v858, 104
        %v1452 = vpop.permute.xlu0 %1451
        %1453 = vrot.lane.b32.xlu0 %v758, 104
        %v1454 = vpop.permute.xlu0 %1453
        %1455 = vrot.lane.b32.xlu0 %v763, 104
        %v1456 = vpop.permute.xlu0 %1455
        %v1457 = vsel %vm859, %v1452, 0
        %v1459 = vsel %vm859, %v1454, 0
        %v1461 = vsel %vm859, %v1456, 0
        %1463 = vmatprep.subr.mxu0 0.0
        %1464 = vmatpush1.xpose.msra.mxu0 0.0
        %1465 = vmatprep.subr.mxu0 0.0
        %1466 = vmatpush1.xpose.msra.mxu0 0.0
        %1467 = vmatprep.subr.mxu0 0.0
        %1468 = vmatpush1.xpose.msra.mxu0 0.0
        %1469 = vmatprep.subr.mxu0 0.0
        %1470 = vmatpush1.xpose.msra.mxu0 0.0
        %1471 = vmatprep.subr.mxu0 0.0
        %1472 = vmatpush1.xpose.msra.mxu0 0.0
        %1473 = vmatprep.subr.mxu0 0.0
        %1474 = vmatpush1.xpose.msra.mxu0 0.0
        %1475 = vmatprep.subr.mxu0 0.0
        %1476 = vmatpush1.xpose.msra.mxu0 0.0
        %1477 = vmatprep.subr.mxu0 0.0
        %1478 = vmatpush1.xpose.msra.mxu0 0.0
        %1479 = vmatprep.subr.mxu0 0.0
        %1480 = vmatpush1.xpose.msra.mxu0 0.0
        %1481 = vmatprep.subr.mxu0 0.0
        %1482 = vmatpush1.xpose.msra.mxu0 0.0
        %1483 = vmatprep.subr.mxu0 0.0
        %1484 = vmatpush1.xpose.msra.mxu0 0.0
        %1485 = vmatprep.subr.mxu0 0.0
        %1486 = vmatpush1.xpose.msra.mxu0 0.0
        %1487 = vmatprep.subr.mxu0 0.0
        %1488 = vmatpush1.xpose.msra.mxu0 0.0
        %1489 = vmatprep.subr.mxu0 0.0
        %1490 = vmatpush1.xpose.msra.mxu0 0.0
        %1491 = vmatprep.subr.mxu0 0.0
        %1492 = vmatpush1.xpose.msra.mxu0 %v1461
        %1493 = vmatprep.subr.mxu0 0.0
        %1494 = vmatpush1.xpose.msra.mxu0 %v1459
        %1495 = vmatprep.subr.mxu0 0.0
        %1496 = vmatpush2.xpose.msra.mxu0 0.0
        %1497 = vmatprep.subr.mxu0 0.0
        %1498 = vmatpush2.xpose.msra.mxu0 0.0
        %1499 = vmatprep.subr.mxu0 0.0
        %1500 = vmatpush2.xpose.msra.mxu0 0.0
        %1501 = vmatprep.subr.mxu0 0.0
        %1502 = vmatpush2.xpose.msra.mxu0 0.0
        %1503 = vmatprep.subr.mxu0 0.0
        %1504 = vmatpush2.xpose.msra.mxu0 0.0
        %1505 = vmatprep.subr.mxu0 0.0
        %1506 = vmatpush2.xpose.msra.mxu0 0.0
        %1507 = vmatprep.subr.mxu0 0.0
        %1508 = vmatpush2.xpose.msra.mxu0 0.0
        %1509 = vmatprep.subr.mxu0 0.0
        %1510 = vmatpush2.xpose.msra.mxu0 0.0
        %1511 = vmatprep.subr.mxu0 0.0
        %1512 = vmatpush2.xpose.msra.mxu0 0.0
        %1513 = vmatprep.subr.mxu0 0.0
        %1514 = vmatpush2.xpose.msra.mxu0 0.0
        %1515 = vmatprep.subr.mxu0 0.0
        %1516 = vmatpush2.xpose.msra.mxu0 0.0
        %1517 = vmatprep.subr.mxu0 0.0
        %1518 = vmatpush2.xpose.msra.mxu0 0.0
        %1519 = vmatprep.subr.mxu0 0.0
        %1520 = vmatpush2.xpose.msra.mxu0 0.0
        %1521 = vmatprep.subr.mxu0 0.0
        %1522 = vmatpush2.xpose.msra.mxu0 0.0
        %1523 = vmatprep.subr.mxu0 0.0
        %1524 = vmatpush2.xpose.msra.mxu0 0.0
        %1525 = vmatprep.subr.mxu0 0.0
        %1526 = vmatpush2.xpose.msra.mxu0 0.0
        %1527 = vmatprep.mubr.f32.mxu0 0.0
        %1528 = vmatmul.mubr.f32.gmra.mxu0 %v1457
        %v1529 = vpop.f32.mrf.mxu0
        %v1530 = vadd.f32 0.0, %v1529
        %v1531 = vpop.f32.mrf.mxu0
        %1532 = vdwg.mxu0
        %s1533 = scalar_lea.vmem [#allocation3], 24
        %v1534 = vld [vmem:[%s1533] sm:$0xff]
        %v1535 = vsel %vm940, %v1530, -inf
        %1536 = vmax.xlane.f32.xlu0 %v1535
        %v1537 = vpop.xlane.xlu0 %1536
        %v1538 = vmax.f32 %v1534, %v1537
        %v1539 = vsub.f32 %v1534, %v1538
        %v1540 = vmul.f32 %v1539, 1.442695
        %v1541 = vpow.pop %v1540
        %1543 = vset.pattern.permute.xlu0 0
        %1544 = vperm.xlu0 %1543, %v1538
        %v1545 = vpop.permute.xlu0 %1544
        %v1547 = vsub.f32 %v1530, %v1545
        %v1548 = vmul.f32 %v1547, 1.442695
        %v1549 = vpow.pop %v1548
        %s1550 = scalar_lea.vmem [#allocation4], 24
        %v1551 = vld [vmem:[%s1550] sm:$0xff]
        %v1552 = vmul.f32 %v1541, %v1551
        %v1553 = vsel %vm940, %v1549, 0.0
        %1554 = vadd.xlane.f32.xlu0 %v1553
        %v1555 = vpop.xlane.xlu0 %1554
        %v1556 = vadd.f32 %v1552, %v1555
        %1557 = vst.msk [vmem:[%s1550] sm:$0xff] %vm962, %v1556
        %1558 = vrot.lane.b32.xlu0 %v850, 104
        %v1559 = vpop.permute.xlu0 %1558
        %1560 = vrot.lane.b32.xlu0 %v855, 104
        %v1561 = vpop.permute.xlu0 %1560
        %v1565 = vsel %vm940, %v1549, 0
        %1567 = vmatprep.subr.mxu0 0.0
        %1568 = vmatpush1.msra.mxu0 0.0
        %1569 = vmatprep.subr.mxu0 0.0
        %1570 = vmatpush1.msra.mxu0 0.0
        %1571 = vmatprep.subr.mxu0 0.0
        %1572 = vmatpush1.msra.mxu0 0.0
        %1573 = vmatprep.subr.mxu0 0.0
        %1574 = vmatpush1.msra.mxu0 0.0
        %1575 = vmatprep.subr.mxu0 0.0
        %1576 = vmatpush1.msra.mxu0 0.0
        %1577 = vmatprep.subr.mxu0 0.0
        %1578 = vmatpush1.msra.mxu0 0.0
        %1579 = vmatprep.subr.mxu0 0.0
        %1580 = vmatpush1.msra.mxu0 0.0
        %1581 = vmatprep.subr.mxu0 0.0
        %1582 = vmatpush1.msra.mxu0 0.0
        %1583 = vmatprep.subr.mxu0 0.0
        %1584 = vmatpush1.msra.mxu0 0.0
        %1585 = vmatprep.subr.mxu0 0.0
        %1586 = vmatpush1.msra.mxu0 0.0
        %1587 = vmatprep.subr.mxu0 0.0
        %1588 = vmatpush1.msra.mxu0 0.0
        %1589 = vmatprep.subr.mxu0 0.0
        %1590 = vmatpush1.msra.mxu0 0.0
        %1591 = vmatprep.subr.mxu0 0.0
        %1592 = vmatpush1.msra.mxu0 0.0
        %1593 = vmatprep.subr.mxu0 0.0
        %1594 = vmatpush1.msra.mxu0 0.0
        %1595 = vmatprep.subr.mxu0 0.0
        %1596 = vmatpush1.msra.mxu0 %v1561
        %1597 = vmatprep.subr.mxu0 0.0
        %1598 = vmatpush1.msra.mxu0 %v1559
        %1599 = vmatprep.subr.mxu0 0.0
        %1600 = vmatpush2.msra.mxu0 0.0
        %1601 = vmatprep.subr.mxu0 0.0
        %1602 = vmatpush2.msra.mxu0 0.0
        %1603 = vmatprep.subr.mxu0 0.0
        %1604 = vmatpush2.msra.mxu0 0.0
        %1605 = vmatprep.subr.mxu0 0.0
        %1606 = vmatpush2.msra.mxu0 0.0
        %1607 = vmatprep.subr.mxu0 0.0
        %1608 = vmatpush2.msra.mxu0 0.0
        %1609 = vmatprep.subr.mxu0 0.0
        %1610 = vmatpush2.msra.mxu0 0.0
        %1611 = vmatprep.subr.mxu0 0.0
        %1612 = vmatpush2.msra.mxu0 0.0
        %1613 = vmatprep.subr.mxu0 0.0
        %1614 = vmatpush2.msra.mxu0 0.0
        %1615 = vmatprep.subr.mxu0 0.0
        %1616 = vmatpush2.msra.mxu0 0.0
        %1617 = vmatprep.subr.mxu0 0.0
        %1618 = vmatpush2.msra.mxu0 0.0
        %1619 = vmatprep.subr.mxu0 0.0
        %1620 = vmatpush2.msra.mxu0 0.0
        %1621 = vmatprep.subr.mxu0 0.0
        %1622 = vmatpush2.msra.mxu0 0.0
        %1623 = vmatprep.subr.mxu0 0.0
        %1624 = vmatpush2.msra.mxu0 0.0
        %1625 = vmatprep.subr.mxu0 0.0
        %1626 = vmatpush2.msra.mxu0 0.0
        %1627 = vmatprep.subr.mxu0 0.0
        %1628 = vmatpush2.msra.mxu0 0.0
        %1629 = vmatprep.subr.mxu0 0.0
        %1630 = vmatpush2.msra.mxu0 0.0
        %1631 = vmatprep.mubr.f32.mxu0 0.0
        %1632 = vmatmul.mubr.f32.gmra.mxu0 %v1565
        %v1633 = vpop.f32.mrf.mxu0
        %v1634 = vadd.f32 0.0, %v1633
        %v1635 = vpop.f32.mrf.mxu0
        %1636 = vdwg.mxu0
        %v1637 = vld [vmem:[#allocation5] sm:$0xff]
        %1639 = vset.pattern.permute.xlu0 0
        %1640 = vperm.xlu0 %1639, %v1541
        %v1641 = vpop.permute.xlu0 %1640
        %v1643 = vmul.f32 %v1641, %v1637
        %1645 = vrot.lane.b32.xlu0 %v1634, 24
        %v1646 = vpop.permute.xlu0 %1645
        %v1648 = vadd.f32 %v1643, %v1646
        %vm1649 = vcmask 261312
        %1650 = vst.msk [vmem:[#allocation5] sm:$0xff] %vm1649, %v1648
        %1651 = vst.msk [vmem:[%s1533] sm:$0xff] %vm962, %v1538
        %p1652 = scmp.eq.s32.totalorder %s33, 3
        // Predicated region
        $region81: #{tpu_custom_call.1} parent=75 // pred_check
          %p1653 = pneg %p1652
        $region82: #{tpu_custom_call.1} parent=75 // pred_check_branch
          %1655 = sbr.rel (%p1653) target = $region84
        $region83: #{tpu_custom_call.1} parent=75 // pred_region
          %v1656 = vld [vmem:[#allocation4] sm:$0xff]
          %v1657 = vld [vmem:[#allocation4 + $0x8] sm:$0xff]
          %v1658 = vld [vmem:[#allocation4 + $0x10] sm:$0xff]
          %v1659 = vld [vmem:[#allocation4 + $0x18] sm:$0xff]
          %v1660 = vrcp.pop %v1656
          %v1661 = vrcp.pop %v1657
          %v1662 = vrcp.pop %v1658
          %v1663 = vrcp.pop %v1659
          %v1664 = vld [vmem:[#allocation5] sm:$0xff]
          %1666 = vset.pattern.permute.xlu0 0
          %1667 = vperm.xlu0 %1666, %v1660
          %v1668 = vpop.permute.xlu0 %1667
          %v1670 = vmul.f32 %v1664, %v1668
          %1671 = vst.msk [vmem:[#allocation5] sm:$0xff] %vm859, %v1670
          %v1672 = vld [vmem:[#allocation5] sm:$0xff]
          %1674 = vset.pattern.permute.xlu0 0
          %1675 = vperm.xlu0 %1674, %v1661
          %v1676 = vpop.permute.xlu0 %1675
          %v1678 = vmul.f32 %v1672, %v1676
          %1679 = vst.msk [vmem:[#allocation5] sm:$0xff] %vm1247, %v1678
          %v1680 = vld [vmem:[#allocation5] sm:$0xff]
          %1682 = vset.pattern.permute.xlu0 0
          %1683 = vperm.xlu0 %1682, %v1662
          %v1684 = vpop.permute.xlu0 %1683
          %v1686 = vmul.f32 %v1680, %v1684
          %1687 = vst.msk [vmem:[#allocation5] sm:$0xff] %vm1448, %v1686
          %v1688 = vld [vmem:[#allocation5] sm:$0xff]
          %1690 = vset.pattern.permute.xlu0 0
          %1691 = vperm.xlu0 %1690, %v1663
          %v1692 = vpop.permute.xlu0 %1691
          %v1694 = vmul.f32 %v1688, %v1692
          %1695 = vst.msk [vmem:[#allocation5] sm:$0xff] %vm1649, %v1694
          %v1696 = vld [vmem:[#allocation5] sm:$0xff]
          %v1697 = vld [vmem:[%s7] sm:$0xff]
          %v1698 = vld [vmem:[%s7 + $0x8] sm:$0xff]
          %v1699 = vld [vmem:[%s7 + $0x10] sm:$0xff]
          %v1700 = vld [vmem:[%s7 + $0x18] sm:$0xff]
          %v1701 = vld [vmem:[%s11] sm:$0x1]
          %v1703 = vlaneseq
          %v1704 = vshrl.u32 %v1703, 7
          %v1705 = vsub.s32 0, %v1704
          %v1706 = vrot.slane %v1701, %v1705
          %v1709 = vsel %vm684, %v1696, 0
          %1711 = vmatprep.subr.mxu0 0.0
          %1712 = vmatpush1.msra.mxu0 0.0
          %1713 = vmatprep.subr.mxu0 0.0
          %1714 = vmatpush1.msra.mxu0 0.0
          %1715 = vmatprep.subr.mxu0 0.0
          %1716 = vmatpush1.msra.mxu0 0.0
          %1717 = vmatprep.subr.mxu0 0.0
          %1718 = vmatpush1.msra.mxu0 0.0
          %1719 = vmatprep.subr.mxu0 0.0
          %1720 = vmatpush1.msra.mxu0 0.0
          %1721 = vmatprep.subr.mxu0 0.0
          %1722 = vmatpush1.msra.mxu0 0.0
          %1723 = vmatprep.subr.mxu0 0.0
          %1724 = vmatpush1.msra.mxu0 0.0
          %1725 = vmatprep.subr.mxu0 0.0
          %1726 = vmatpush1.msra.mxu0 0.0
          %1727 = vmatprep.subr.mxu0 0.0
          %1728 = vmatpush1.msra.mxu0 0.0
          %1729 = vmatprep.subr.mxu0 0.0
          %1730 = vmatpush1.msra.mxu0 0.0
          %1731 = vmatprep.subr.mxu0 0.0
          %1732 = vmatpush1.msra.mxu0 0.0
          %1733 = vmatprep.subr.mxu0 0.0
          %1734 = vmatpush1.msra.mxu0 0.0
          %1735 = vmatprep.subr.mxu0 0.0
          %1736 = vmatpush1.msra.mxu0 %v1700
          %1737 = vmatprep.subr.mxu0 0.0
          %1738 = vmatpush1.msra.mxu0 %v1699
          %1739 = vmatprep.subr.mxu0 0.0
          %1740 = vmatpush1.msra.mxu0 %v1698
          %1741 = vmatprep.subr.mxu0 0.0
          %1742 = vmatpush1.msra.mxu0 %v1697
          %1743 = vmatprep.subr.mxu0 0.0
          %1744 = vmatpush2.msra.mxu0 0.0
          %1745 = vmatprep.subr.mxu0 0.0
          %1746 = vmatpush2.msra.mxu0 0.0
          %1747 = vmatprep.subr.mxu0 0.0
          %1748 = vmatpush2.msra.mxu0 0.0
          %1749 = vmatprep.subr.mxu0 0.0
          %1750 = vmatpush2.msra.mxu0 0.0
          %1751 = vmatprep.subr.mxu0 0.0
          %1752 = vmatpush2.msra.mxu0 0.0
          %1753 = vmatprep.subr.mxu0 0.0
          %1754 = vmatpush2.msra.mxu0 0.0
          %1755 = vmatprep.subr.mxu0 0.0
          %1756 = vmatpush2.msra.mxu0 0.0
          %1757 = vmatprep.subr.mxu0 0.0
          %1758 = vmatpush2.msra.mxu0 0.0
          %1759 = vmatprep.subr.mxu0 0.0
          %1760 = vmatpush2.msra.mxu0 0.0
          %1761 = vmatprep.subr.mxu0 0.0
          %1762 = vmatpush2.msra.mxu0 0.0
          %1763 = vmatprep.subr.mxu0 0.0
          %1764 = vmatpush2.msra.mxu0 0.0
          %1765 = vmatprep.subr.mxu0 0.0
          %1766 = vmatpush2.msra.mxu0 0.0
          %1767 = vmatprep.subr.mxu0 0.0
          %1768 = vmatpush2.msra.mxu0 0.0
          %1769 = vmatprep.subr.mxu0 0.0
          %1770 = vmatpush2.msra.mxu0 0.0
          %1771 = vmatprep.subr.mxu0 0.0
          %1772 = vmatpush2.msra.mxu0 0.0
          %1773 = vmatprep.subr.mxu0 0.0
          %1774 = vmatpush2.msra.mxu0 0.0
          %1775 = vmatprep.mubr.f32.mxu0 0.0
          %1776 = vmatmul.mubr.f32.gmra.mxu0 %v1709
          %v1777 = vpop.f32.mrf.mxu0
          %v1778 = vadd.f32 %v1706, %v1777
          %v1779 = vpop.f32.mrf.mxu0
          %1780 = vdwg.mxu0
          %v1781 = vld [vmem:[%s539] sm:$0xff]
          %v1782 = vadd.f32 %v1781, %v1778
          %v1783 = vsel %vm684, %v1782, 0.0
          %1784 = vadd.xlane.f32.xlu0 %v1783
          %v1785 = vpop.xlane.xlu0 %1784
          %v1786 = vrcp.pop 32.0
          %v1787 = vmul.f32 %v1785, %v1786
          %v1788 = vsub.f32 %v1782, %v1787
          %v1789 = vmul.f32 %v1788, %v1788
          %v1790 = vsel %vm684, %v1789, 0.0
          %1791 = vadd.xlane.f32.xlu0 %v1790
          %v1792 = vpop.xlane.xlu0 %1791
          %v1793 = vmul.f32 %v1792, %v1786
          %v1794 = vadd.f32 %v1793, 1e-05
          %v1795 = vrsqrt.pop %v1794
          %v1796 = vmul.f32 %v1788, %v1795
          %v1797 = vld [vmem:[%s12] sm:$0x1]
          %v1799 = vlaneseq
          %v1800 = vshrl.u32 %v1799, 7
          %v1801 = vsub.s32 0, %v1800
          %v1802 = vrot.slane %v1797, %v1801
          %v1804 = vmul.f32 %v1796, %v1802
          %v1805 = vld [vmem:[%s13] sm:$0x1]
          %v1807 = vlaneseq
          %v1808 = vshrl.u32 %v1807, 7
          %v1809 = vsub.s32 0, %v1808
          %v1810 = vrot.slane %v1805, %v1809
          %v1812 = vadd.f32 %v1804, %v1810
          %1813 = vst.msk [vmem:[%s535] sm:$0xff] %vm684, %v1812
        $region84: #{tpu_custom_call.1} parent=75 // pred_fallthru
          _
        %s1814 = sand.u32 %s366, 1
        %s1815 = scalar_lea.sflag [#allocation7], %s1814
        %s1816 = sand.u32 %s366, 1
        %s1817 = smul.addr %s1816, 8
        %s1818 = scalar_lea.vmem [#allocation6], %s1817
        // Predicated region
        $region85: #{tpu_custom_call.1} parent=75 // pred_check
          %p1819 = pneg %p376
        $region86: #{tpu_custom_call.1} parent=75 // pred_check_branch
          %1821 = sbr.rel (%p1819) target = $region88
        $region87: #{tpu_custom_call.1} parent=75 // pred_region
          %s1823 = ssub.s32 128, 128
          %1824 = vsyncadd %s1815, %s1823
          %s1825 = smul.addr %s32, 128
          %s1826 = scalar_lea.hbm %s14, %s1825
          %s1828 = sshll.u32 %s1818, 4
          %s1829 = int_to_ptr.vmem [resolvable:$true] %s1828
          %1831 = dma.vmem_to_hbm [thread:$0]  %s1829, 128, %s1826, %s1815
        $region88: #{tpu_custom_call.1} parent=75 // pred_fallthru
          _
      $region76: #{tpu_custom_call.1} parent=5 // pred_fallthru
        _
      %p1832 = scmp.le.s32.totalorder 2, %s23
      // Predicated region
      $region89: #{tpu_custom_call.1} parent=5 // pred_check
        %p1833 = pneg %p1832
      $region90: #{tpu_custom_call.1} parent=5 // pred_check_branch
        %1835 = sbr.rel (%p1833) target = $region92
      $region91: #{tpu_custom_call.1} parent=5 // pred_region
        %s1836 = ssub.s32 %s23, 2
        // Predicated region
        $region93: #{tpu_custom_call.1} parent=91 // pred_check
          %p1837 = pneg %p382
        $region94: #{tpu_custom_call.1} parent=91 // pred_check_branch
          %1839 = sbr.rel (%p1837) target = $region96
        $region95: #{tpu_custom_call.1} parent=91 // pred_region
          %s1840 = sand.u32 %s367, 1
          %s1841 = scalar_lea.sflag [#allocation7], %s1840
          %s1842 = sand.u32 %s367, 1
          %s1843 = smul.addr %s1842, 8
          %s1844 = scalar_lea.vmem [#allocation6], %s1843
          %1845 = dma.done %s1841, 128
        $region96: #{tpu_custom_call.1} parent=91 // pred_fallthru
          _
      $region92: #{tpu_custom_call.1} parent=5 // pred_fallthru
        _
    $region6: #{tpu_custom_call.1} parent=1 // loop_footer
      %s27 = sadd.s32 1, %s23
    $region7: #{tpu_custom_call.1} parent=1 // loop_footer_branch
      %22 = sbr.rel target = $region3
    $region8: #{tpu_custom_call.1} parent=1 // loop_exit
      _
    %1846 = vsyncpa [#allocation7], 1
    %s1847 = scalar_lea.sflag [#allocation7], 1
    %1848 = vsyncpa %s1847, 1

</llo_original>
